<compile_context>
chip_gen: v7x
topology: tpu7x:2x2x1
jax: 0.10.0
libtpu: 0.0.40
codegen_flags: <defaults>
</compile_context>

<pallas_src>
import jax
import jax.numpy as jnp
from jax.experimental import pallas as pl
from jax.experimental.pallas import tpu as pltpu

LANE = 128


def _round_up(v, m):
    return ((v + m - 1) // m) * m


def _vmem_limit_bytes():
    """Per-generation scoped-VMEM budget (leave headroom for compiler scratch)."""
    try:
        cap = int(pltpu.get_tpu_info().vmem_capacity_bytes)
    except Exception:
        cap = 64 * 1024 * 1024  # conservative fallback (v7x physical VMEM)
    return int(min(cap * 3 // 4, 100 * 1024 * 1024))


def _fused_gcn_kernel(a_ref, x_ref, w1_ref, b1_ref, w2_ref, b2_ref,
                      o_ref, z1_ref, z2_ref, acc1_ref, acc2_ref):
    phase = pl.program_id(0)   # 0: layer 1 -> Z2 scratch, 1: layer 2 -> output
    i = pl.program_id(1)       # node row block
    k = pl.program_id(2)       # reduction over A_norm columns
    nk = pl.num_programs(2)
    tm, tk = a_ref.shape

    col0 = pl.multiple_of(k * tk, tk)
    row0 = pl.multiple_of(i * tm, tm)

    # ----------------- phase 0: layer 1 (aggregate A @ Z1, epilogue -> Z2) ---------
    @pl.when(phase == 0)
    def _():
        # Dense transform Z1 = X @ W1 computed once (first row block only) and cached
        # in a bf16 VMEM scratch that persists for the rest of the grid.
        @pl.when(i == 0)
        def _():
            z1 = jnp.dot(x_ref[pl.ds(col0, tk), :], w1_ref[...],
                         preferred_element_type=jnp.float32)
            z1_ref[pl.ds(col0, tk), :] = z1.astype(jnp.bfloat16)

        @pl.when(k == 0)
        def _():
            acc1_ref[...] = jnp.zeros_like(acc1_ref)

        # layer-1 aggregation partial sum: A[rows_i, cols_k] @ Z1[cols_k, :]
        acc1_ref[...] += jnp.dot(a_ref[...], z1_ref[pl.ds(col0, tk), :],
                                 preferred_element_type=jnp.float32)

        @pl.when(k == nk - 1)
        def _():
            # h = relu(A_norm @ Z1 + b1).  NOTE: padded node rows (A row == 0) get
            # relu(b1) != 0 here; this is harmless ONLY because A_norm's *columns* for
            # padded nodes are exactly zero, so these rows never contribute in phase 1.
            h = jnp.maximum(acc1_ref[...] + b1_ref[...], 0.0)
            # Transform-first for layer 2: cache Z2 = h @ W2 (width ncls_pad) so the
            # phase-1 aggregation runs at the class width, not the hidden width.
            z2 = jnp.dot(h.astype(jnp.bfloat16), w2_ref[...],
                         preferred_element_type=jnp.float32)
            z2_ref[pl.ds(row0, tm), :] = z2.astype(jnp.bfloat16)

    # ----------------- phase 1: layer 2 (aggregate A @ Z2, epilogue -> out) --------
    @pl.when(phase == 1)
    def _():
        @pl.when(k == 0)
        def _():
            acc2_ref[...] = jnp.zeros_like(acc2_ref)

        # layer-2 aggregation partial sum: A[rows_i, cols_k] @ Z2[cols_k, :]
        acc2_ref[...] += jnp.dot(a_ref[...], z2_ref[pl.ds(col0, tk), :],
                                 preferred_element_type=jnp.float32)

        @pl.when(k == nk - 1)
        def _():
            # Phase 1 visits and fully writes every output row block (required since
            # phase 0 no longer touches the output).
            o_ref[...] = (acc2_ref[...] + b2_ref[...]).astype(o_ref.dtype)


def gcn_fused_forward(a_norm_pad, x, w1, b1, w2, b2, *, tile_n=512):
    """Both GCN layers in one Pallas call.

    `a_norm_pad` is the (n_pad, n_pad) bf16 normalized adjacency (padded rows/cols
    are zero).  Returns (N, num_classes) float32.
    """
    n, f_in = x.shape
    hid = w1.shape[1]
    ncls = w2.shape[1]

    n_pad = a_norm_pad.shape[0]
    tm = tk = tile_n
    assert n_pad % tile_n == 0, "adjacency must be padded to a multiple of tile_n"

    # Decoupled lane-dense feature widths (no common max-width padding).
    fin_pad = _round_up(f_in, LANE)
    hid_pad = _round_up(hid, LANE)
    ncls_pad = _round_up(ncls, LANE)

    def pad2(m, r, c, dtype):
        buf = jnp.zeros((r, c), dtype)
        return buf.at[: m.shape[0], : m.shape[1]].set(m.astype(dtype))

    x_p = pad2(x, n_pad, fin_pad, jnp.bfloat16)
    w1_p = pad2(w1, fin_pad, hid_pad, jnp.bfloat16)
    w2_p = pad2(w2, hid_pad, ncls_pad, jnp.bfloat16)
    b1_p = pad2(b1.reshape(1, -1), 1, hid_pad, jnp.float32)   # biases stay f32
    b2_p = pad2(b2.reshape(1, -1), 1, ncls_pad, jnp.float32)

    nb_m = n_pad // tm
    nb_k = n_pad // tk
    grid = (2, nb_m, nb_k)     # (phase, row block, reduction block) -- reduction last

    out_pad = pl.pallas_call(
        _fused_gcn_kernel,
        out_shape=jax.ShapeDtypeStruct((n_pad, ncls_pad), jnp.float32),
        grid_spec=pltpu.PrefetchScalarGridSpec(
            num_scalar_prefetch=0,
            grid=grid,
            in_specs=[
                # A_norm streamed in (tm, tk) bf16 tiles, auto double-buffered.
                pl.BlockSpec((tm, tk), lambda p, i, k: (i, k)),
                # X: VMEM-resident (constant block index -> DMA'd once, never refetched).
                pl.BlockSpec((n_pad, fin_pad), lambda p, i, k: (0, 0)),
                pl.BlockSpec((fin_pad, hid_pad), lambda p, i, k: (0, 0)),   # W1
                pl.BlockSpec((1, hid_pad), lambda p, i, k: (0, 0)),         # b1
                pl.BlockSpec((hid_pad, ncls_pad), lambda p, i, k: (0, 0)),  # W2
                pl.BlockSpec((1, ncls_pad), lambda p, i, k: (0, 0)),        # b2
            ],
            # Pin the output block to index 0 during phase 0 (where it is never
            # written): no per-row-block HBM writeback of throwaway data.
            out_specs=pl.BlockSpec((tm, ncls_pad), lambda p, i, k: (p * i, 0)),
            scratch_shapes=[
                pltpu.VMEM((n_pad, hid_pad), jnp.bfloat16),   # Z1 = X @ W1 (bf16)
                pltpu.VMEM((n_pad, ncls_pad), jnp.bfloat16),  # Z2 = relu(.) @ W2 (bf16)
                pltpu.VMEM((tm, hid_pad), jnp.float32),       # layer-1 accumulator
                pltpu.VMEM((tm, ncls_pad), jnp.float32),      # layer-2 accumulator
            ],
        ),
        compiler_params=pltpu.CompilerParams(
            # Sequential on all axes: phase 1 reads Z2 rows written by *every* row
            # block of phase 0 through per-core VMEM scratch, so no megacore sharding.
            dimension_semantics=("arbitrary", "arbitrary", "arbitrary"),
            # ~96 MiB on v5e/v6e (128 MiB physical), ~48 MiB on v7x (64 MiB physical).
            vmem_limit_bytes=_vmem_limit_bytes(),
        ),
    )(a_norm_pad, x_p, w1_p, b1_p, w2_p, b2_p)

    return out_pad[:n, :ncls]


def build_normalized_adjacency_padded(edge_index, num_nodes, n_pad):
    """Dense GCN normalization built directly at the padded size, emitted as bf16.

    A_hat = A + I (self loops on real nodes only), A_norm = D^-1/2 A_hat D^-1/2.
    Padded rows/columns are exactly zero -- the kernel's padding correctness relies
    on the padded *columns* being zero.
    """
    src, dst = edge_index[0], edge_index[1]
    a = jnp.zeros((n_pad, n_pad), jnp.float32)
    # scatter-ADD so duplicate/parallel edges accumulate exactly like PyG's GCNConv
    a = a.at[dst, src].add(1.0)
    diag = jnp.arange(num_nodes)
    a = a.at[diag, diag].add(1.0)                 # self loops (real nodes only)
    deg = jnp.sum(a, axis=1)
    dinv = jnp.where(deg > 0, 1.0 / jnp.sqrt(deg), 0.0)
    # single fused scale + cast pass over the N^2 array (no extra pad copy)
    return (dinv[:, None] * a * dinv[None, :]).astype(jnp.bfloat16)


def gnn_forward(x, edge_index, params, *, tile_n=512):
    n = x.shape[0]
    n_pad = _round_up(n, tile_n)
    a_norm_pad = build_normalized_adjacency_padded(edge_index, n, n_pad)
    return gcn_fused_forward(a_norm_pad, x, params["w1"], params["b1"],
                             params["w2"], params["b2"], tile_n=tile_n)


def gnn_reference(x, edge_index, params):
    """Pure-JAX f32 reference of the same forward pass (for a sanity check)."""
    n = x.shape[0]
    src, dst = edge_index[0], edge_index[1]
    a = jnp.zeros((n, n), jnp.float32).at[dst, src].add(1.0)
    a = a + jnp.eye(n, dtype=jnp.float32)
    deg = jnp.sum(a, axis=1)
    dinv = jnp.where(deg > 0, 1.0 / jnp.sqrt(deg), 0.0)
    a_norm = dinv[:, None] * a * dinv[None, :]
    h = jnp.maximum(a_norm @ (x @ params["w1"]) + params["b1"], 0.0)
    return a_norm @ (h @ params["w2"]) + params["b2"]


if __name__ == "__main__":
    # Small synthetic graph consistent with the module's forward:
    #   num_features=16, hidden_channels=32, num_classes=4, num_nodes=8
    num_nodes = 8
    num_features = 16
    hidden_channels = 32
    num_classes = 4

    key = jax.random.PRNGKey(0)
    k_x, k_w1, k_w2 = jax.random.split(key, 3)

    x = jax.random.normal(k_x, (num_nodes, num_features), dtype=jnp.float32)

    # Deterministic ring graph (bidirectional edges), edge_index shape (2, E)
    src = jnp.arange(num_nodes, dtype=jnp.int32)
    dst = (src + 1) % num_nodes
    edge_index = jnp.stack(
        [jnp.concatenate([src, dst]), jnp.concatenate([dst, src])], axis=0
    )

    # Deterministic parameter init (Glorot-style scaling)
    w1 = jax.random.normal(k_w1, (num_features, hidden_channels), jnp.float32) * (
        1.0 / jnp.sqrt(num_features)
    )
    b1 = jnp.zeros((hidden_channels,), jnp.float32)
    w2 = jax.random.normal(k_w2, (hidden_channels, num_classes), jnp.float32) * (
        1.0 / jnp.sqrt(hidden_channels)
    )
    b2 = jnp.zeros((num_classes,), jnp.float32)
    params = {"w1": w1, "b1": b1, "w2": w2, "b2": b2}

    out = gnn_forward(x, edge_index, params)
    out = jax.block_until_ready(out)
    assert out.shape == (num_nodes, num_classes)

    # sanity check against the f32 reference (loose tolerance: bf16 MXU operands)
    ref = jax.block_until_ready(gnn_reference(x, edge_index, params))
    max_err = float(jnp.max(jnp.abs(out - ref)))
    assert max_err < 0.2, f"max abs error vs reference too large: {max_err}"

    print("KERNEL_OK")
</pallas_src>

<mosaic_0001>
module attributes {stable_mosaic.version = 11 : i64} {
  func.func @_fused_gcn_kernel(%arg0: i32, %arg1: i32, %arg2: i32, %arg3: memref<512x512xbf16, #tpu.memory_space<vmem>>, %arg4: memref<512x128xbf16, #tpu.memory_space<vmem>>, %arg5: memref<128x128xbf16, #tpu.memory_space<vmem>>, %arg6: memref<1x128xf32, #tpu.memory_space<vmem>>, %arg7: memref<128x128xbf16, #tpu.memory_space<vmem>>, %arg8: memref<1x128xf32, #tpu.memory_space<vmem>>, %arg9: memref<512x128xf32, #tpu.memory_space<vmem>>, %arg10: memref<512x128xbf16, #tpu.memory_space<vmem>>, %arg11: memref<512x128xbf16, #tpu.memory_space<vmem>>, %arg12: memref<512x128xf32, #tpu.memory_space<vmem>>, %arg13: memref<512x128xf32, #tpu.memory_space<vmem>>) attributes {dimension_semantics = [#tpu.dimension_semantics<arbitrary>, #tpu.dimension_semantics<arbitrary>, #tpu.dimension_semantics<arbitrary>], iteration_bounds = array<i64: 2, 1, 1>, scalar_prefetch = 0 : i64, scratch_operands = 4 : i64, tpu.core_type = #tpu.core_type<tc>, window_params = [{transform_indices = @transform_0, window_bounds = array<i64: 512, 512>}, {pipeline_mode = #tpu.pipeline_mode<synchronous>, transform_indices = @transform_1, window_bounds = array<i64: 512, 128>}, {pipeline_mode = #tpu.pipeline_mode<synchronous>, transform_indices = @transform_2, window_bounds = array<i64: 128, 128>}, {pipeline_mode = #tpu.pipeline_mode<synchronous>, transform_indices = @transform_3, window_bounds = array<i64: 1, 128>}, {pipeline_mode = #tpu.pipeline_mode<synchronous>, transform_indices = @transform_4, window_bounds = array<i64: 128, 128>}, {pipeline_mode = #tpu.pipeline_mode<synchronous>, transform_indices = @transform_5, window_bounds = array<i64: 1, 128>}, {transform_indices = @transform_6, window_bounds = array<i64: 512, 128>}]} {
    %c512_i32 = arith.constant 512 : i32
    %0 = arith.muli %arg2, %c512_i32 : i32
    %1 = tpu.assume_multiple %0, 512 : i32
    %c512_i32_0 = arith.constant 512 : i32
    %2 = arith.muli %arg1, %c512_i32_0 : i32
    %3 = tpu.assume_multiple %2, 512 : i32
    %c0_i32 = arith.constant 0 : i32
    %4 = arith.cmpi eq, %arg0, %c0_i32 : i32
    %5 = arith.extui %4 : i1 to i32
    %c0_i32_1 = arith.constant 0 : i32
    %6 = arith.cmpi ne, %5, %c0_i32_1 : i32
    scf.if %6 {
      %c0_i32_3 = arith.constant 0 : i32
      %10 = arith.cmpi eq, %arg1, %c0_i32_3 : i32
      %11 = arith.extui %10 : i1 to i32
      %c0_i32_4 = arith.constant 0 : i32
      %12 = arith.cmpi ne, %11, %c0_i32_4 : i32
      scf.if %12 {
        %26 = arith.index_cast %1 : i32 to index
        %c0_15 = arith.constant 0 : index
        %27 = vector.load %arg4[%26, %c0_15] : memref<512x128xbf16, #tpu.memory_space<vmem>>, vector<512x128xbf16>
        %c0_16 = arith.constant 0 : index
        %c0_17 = arith.constant 0 : index
        %28 = vector.load %arg5[%c0_16, %c0_17] : memref<128x128xbf16, #tpu.memory_space<vmem>>, vector<128x128xbf16>
        %cst_18 = arith.constant dense<0.000000e+00> : vector<512x128xf32>
        %29 = tpu.matmul %27, %28, %cst_18 {dimension_numbers = #tpu.dot_dimension_numbers<[1], [0], [0], [1], [0, 0, 1, 1], [], []>} : vector<512x128xbf16>, vector<128x128xbf16>, vector<512x128xf32> -> vector<512x128xf32>
        %30 = arith.truncf %29 : vector<512x128xf32> to vector<512x128xbf16>
        %31 = arith.index_cast %1 : i32 to index
        %c0_19 = arith.constant 0 : index
        %32 = vector.load %arg10[%31, %c0_19] : memref<512x128xbf16, #tpu.memory_space<vmem>>, vector<512x128xbf16>
        tpu.vector_store %arg10[%31, %c0_19], %30 {strides = array<i32>} : memref<512x128xbf16, #tpu.memory_space<vmem>>, vector<512x128xbf16>,
      } else {
      }
      %c0_i32_5 = arith.constant 0 : i32
      %13 = arith.cmpi eq, %arg2, %c0_i32_5 : i32
      %14 = arith.extui %13 : i1 to i32
      %c0_i32_6 = arith.constant 0 : i32
      %15 = arith.cmpi ne, %14, %c0_i32_6 : i32
      scf.if %15 {
        %cst_15 = arith.constant 0.000000e+00 : f32
        %26 = vector.broadcast %cst_15 : f32 to vector<512x128xf32>
        %c0_16 = arith.constant 0 : index
        %c0_17 = arith.constant 0 : index
        %27 = vector.load %arg12[%c0_16, %c0_17] : memref<512x128xf32, #tpu.memory_space<vmem>>, vector<512x128xf32>
        tpu.vector_store %arg12[%c0_16, %c0_17], %26 {strides = array<i32>} : memref<512x128xf32, #tpu.memory_space<vmem>>, vector<512x128xf32>,
      } else {
      }
      %c0 = arith.constant 0 : index
      %c0_7 = arith.constant 0 : index
      %16 = vector.load %arg12[%c0, %c0_7] : memref<512x128xf32, #tpu.memory_space<vmem>>, vector<512x128xf32>
      %c0_8 = arith.constant 0 : index
      %c0_9 = arith.constant 0 : index
      %17 = vector.load %arg3[%c0_8, %c0_9] : memref<512x512xbf16, #tpu.memory_space<vmem>>, vector<512x512xbf16>
      %18 = arith.index_cast %1 : i32 to index
      %c0_10 = arith.constant 0 : index
      %19 = vector.load %arg10[%18, %c0_10] : memref<512x128xbf16, #tpu.memory_space<vmem>>, vector<512x128xbf16>
      %cst = arith.constant dense<0.000000e+00> : vector<512x128xf32>
      %20 = tpu.matmul %17, %19, %cst {dimension_numbers = #tpu.dot_dimension_numbers<[1], [0], [0], [1], [0, 0, 1, 1], [], []>} : vector<512x512xbf16>, vector<512x128xbf16>, vector<512x128xf32> -> vector<512x128xf32>
      %21 = arith.addf %16, %20 : vector<512x128xf32>
      %c0_11 = arith.constant 0 : index
      %c0_12 = arith.constant 0 : index
      %22 = vector.load %arg12[%c0_11, %c0_12] : memref<512x128xf32, #tpu.memory_space<vmem>>, vector<512x128xf32>
      tpu.vector_store %arg12[%c0_11, %c0_12], %21 {strides = array<i32>} : memref<512x128xf32, #tpu.memory_space<vmem>>, vector<512x128xf32>,
      %c0_i32_13 = arith.constant 0 : i32
      %23 = arith.cmpi eq, %arg2, %c0_i32_13 : i32
      %24 = arith.extui %23 : i1 to i32
      %c0_i32_14 = arith.constant 0 : i32
      %25 = arith.cmpi ne, %24, %c0_i32_14 : i32
      scf.if %25 {
        %c0_15 = arith.constant 0 : index
        %c0_16 = arith.constant 0 : index
        %26 = vector.load %arg12[%c0_15, %c0_16] : memref<512x128xf32, #tpu.memory_space<vmem>>, vector<512x128xf32>
        %c0_17 = arith.constant 0 : index
        %c0_18 = arith.constant 0 : index
        %27 = vector.load %arg6[%c0_17, %c0_18] : memref<1x128xf32, #tpu.memory_space<vmem>>, vector<1x128xf32>
        %28 = vector.broadcast %27 : vector<1x128xf32> to vector<512x128xf32>
        %29 = arith.addf %26, %28 : vector<512x128xf32>
        %cst_19 = arith.constant 0.000000e+00 : f32
        %30 = vector.broadcast %cst_19 : f32 to vector<512x128xf32>
        %31 = arith.maximumf %29, %30 : vector<512x128xf32>
        %32 = arith.truncf %31 : vector<512x128xf32> to vector<512x128xbf16>
        %c0_20 = arith.constant 0 : index
        %c0_21 = arith.constant 0 : index
        %33 = vector.load %arg7[%c0_20, %c0_21] : memref<128x128xbf16, #tpu.memory_space<vmem>>, vector<128x128xbf16>
        %cst_22 = arith.constant dense<0.000000e+00> : vector<512x128xf32>
        %34 = tpu.matmul %32, %33, %cst_22 {dimension_numbers = #tpu.dot_dimension_numbers<[1], [0], [0], [1], [0, 0, 1, 1], [], []>} : vector<512x128xbf16>, vector<128x128xbf16>, vector<512x128xf32> -> vector<512x128xf32>
        %35 = arith.truncf %34 : vector<512x128xf32> to vector<512x128xbf16>
        %36 = arith.index_cast %3 : i32 to index
        %c0_23 = arith.constant 0 : index
        %37 = vector.load %arg11[%36, %c0_23] : memref<512x128xbf16, #tpu.memory_space<vmem>>, vector<512x128xbf16>
        tpu.vector_store %arg11[%36, %c0_23], %35 {strides = array<i32>} : memref<512x128xbf16, #tpu.memory_space<vmem>>, vector<512x128xbf16>,
      } else {
      }
    } else {
    }
    %c1_i32 = arith.constant 1 : i32
    %7 = arith.cmpi eq, %arg0, %c1_i32 : i32
    %8 = arith.extui %7 : i1 to i32
    %c0_i32_2 = arith.constant 0 : i32
    %9 = arith.cmpi ne, %8, %c0_i32_2 : i32
    scf.if %9 {
      %c0_i32_3 = arith.constant 0 : i32
      %10 = arith.cmpi eq, %arg2, %c0_i32_3 : i32
      %11 = arith.extui %10 : i1 to i32
      %c0_i32_4 = arith.constant 0 : i32
      %12 = arith.cmpi ne, %11, %c0_i32_4 : i32
      scf.if %12 {
        %cst_13 = arith.constant 0.000000e+00 : f32
        %23 = vector.broadcast %cst_13 : f32 to vector<512x128xf32>
        %c0_14 = arith.constant 0 : index
        %c0_15 = arith.constant 0 : index
        %24 = vector.load %arg13[%c0_14, %c0_15] : memref<512x128xf32, #tpu.memory_space<vmem>>, vector<512x128xf32>
        tpu.vector_store %arg13[%c0_14, %c0_15], %23 {strides = array<i32>} : memref<512x128xf32, #tpu.memory_space<vmem>>, vector<512x128xf32>,
      } else {
      }
      %c0 = arith.constant 0 : index
      %c0_5 = arith.constant 0 : index
      %13 = vector.load %arg13[%c0, %c0_5] : memref<512x128xf32, #tpu.memory_space<vmem>>, vector<512x128xf32>
      %c0_6 = arith.constant 0 : index
      %c0_7 = arith.constant 0 : index
      %14 = vector.load %arg3[%c0_6, %c0_7] : memref<512x512xbf16, #tpu.memory_space<vmem>>, vector<512x512xbf16>
      %15 = arith.index_cast %1 : i32 to index
      %c0_8 = arith.constant 0 : index
      %16 = vector.load %arg11[%15, %c0_8] : memref<512x128xbf16, #tpu.memory_space<vmem>>, vector<512x128xbf16>
      %cst = arith.constant dense<0.000000e+00> : vector<512x128xf32>
      %17 = tpu.matmul %14, %16, %cst {dimension_numbers = #tpu.dot_dimension_numbers<[1], [0], [0], [1], [0, 0, 1, 1], [], []>} : vector<512x512xbf16>, vector<512x128xbf16>, vector<512x128xf32> -> vector<512x128xf32>
      %18 = arith.addf %13, %17 : vector<512x128xf32>
      %c0_9 = arith.constant 0 : index
      %c0_10 = arith.constant 0 : index
      %19 = vector.load %arg13[%c0_9, %c0_10] : memref<512x128xf32, #tpu.memory_space<vmem>>, vector<512x128xf32>
      tpu.vector_store %arg13[%c0_9, %c0_10], %18 {strides = array<i32>} : memref<512x128xf32, #tpu.memory_space<vmem>>, vector<512x128xf32>,
      %c0_i32_11 = arith.constant 0 : i32
      %20 = arith.cmpi eq, %arg2, %c0_i32_11 : i32
      %21 = arith.extui %20 : i1 to i32
      %c0_i32_12 = arith.constant 0 : i32
      %22 = arith.cmpi ne, %21, %c0_i32_12 : i32
      scf.if %22 {
        %c0_13 = arith.constant 0 : index
        %c0_14 = arith.constant 0 : index
        %23 = vector.load %arg13[%c0_13, %c0_14] : memref<512x128xf32, #tpu.memory_space<vmem>>, vector<512x128xf32>
        %c0_15 = arith.constant 0 : index
        %c0_16 = arith.constant 0 : index
        %24 = vector.load %arg8[%c0_15, %c0_16] : memref<1x128xf32, #tpu.memory_space<vmem>>, vector<1x128xf32>
        %25 = vector.broadcast %24 : vector<1x128xf32> to vector<512x128xf32>
        %26 = arith.addf %23, %25 : vector<512x128xf32>
        %c0_17 = arith.constant 0 : index
        %c0_18 = arith.constant 0 : index
        %27 = vector.load %arg9[%c0_17, %c0_18] : memref<512x128xf32, #tpu.memory_space<vmem>>, vector<512x128xf32>
        tpu.vector_store %arg9[%c0_17, %c0_18], %26 {strides = array<i32>} : memref<512x128xf32, #tpu.memory_space<vmem>>, vector<512x128xf32>,
      } else {
      }
    } else {
    }
    return
  }
  func.func @transform_0(%arg0: i32, %arg1: i32, %arg2: i32) -> (i32, i32) {
    %c0_i32 = arith.constant 0 : i32
    return %arg1, %arg2 : i32, i32
  }
  func.func @transform_1(%arg0: i32, %arg1: i32, %arg2: i32) -> (i32, i32) {
    %c0_i32 = arith.constant 0 : i32
    %c0_i32_0 = arith.constant 0 : i32
    %c0_i32_1 = arith.constant 0 : i32
    return %c0_i32, %c0_i32_0 : i32, i32
  }
  func.func @transform_2(%arg0: i32, %arg1: i32, %arg2: i32) -> (i32, i32) {
    %c0_i32 = arith.constant 0 : i32
    %c0_i32_0 = arith.constant 0 : i32
    %c0_i32_1 = arith.constant 0 : i32
    return %c0_i32, %c0_i32_0 : i32, i32
  }
  func.func @transform_3(%arg0: i32, %arg1: i32, %arg2: i32) -> (i32, i32) {
    %c0_i32 = arith.constant 0 : i32
    %c0_i32_0 = arith.constant 0 : i32
    %c0_i32_1 = arith.constant 0 : i32
    return %c0_i32, %c0_i32_0 : i32, i32
  }
  func.func @transform_4(%arg0: i32, %arg1: i32, %arg2: i32) -> (i32, i32) {
    %c0_i32 = arith.constant 0 : i32
    %c0_i32_0 = arith.constant 0 : i32
    %c0_i32_1 = arith.constant 0 : i32
    return %c0_i32, %c0_i32_0 : i32, i32
  }
  func.func @transform_5(%arg0: i32, %arg1: i32, %arg2: i32) -> (i32, i32) {
    %c0_i32 = arith.constant 0 : i32
    %c0_i32_0 = arith.constant 0 : i32
    %c0_i32_1 = arith.constant 0 : i32
    return %c0_i32, %c0_i32_0 : i32, i32
  }
  func.func @transform_6(%arg0: i32, %arg1: i32, %arg2: i32) -> (i32, i32) {
    %0 = arith.muli %arg0, %arg1 : i32
    %c0_i32 = arith.constant 0 : i32
    %c0_i32_0 = arith.constant 0 : i32
    return %0, %c0_i32 : i32, i32
  }
}

</mosaic_0001>

<llo_original>
// kernel: tpu_custom_call.1
$region0: #{tpu_custom_call.1}
  #allocation0 [shape = 'u32[]', space=smem, size = 0x4, offset = 0x4, fixed_abs, tag = 'smem constant byte address 0x4 - core index']
  #allocation1 [shape = 'u32[144,128]{1,0:T(1,128)}', space=vmem, size = 0x12000, scoped, tag = 'internal scratch']
  #allocation2 [shape = 'bf16[512,128]{1,0:T(16,128)(2,1)}', space=vmem, size = 0x20000, scoped, tag = 'scratch operand']
  #allocation3 [shape = 'bf16[512,128]{1,0:T(16,128)(2,1)}', space=vmem, size = 0x20000, scoped, tag = 'scratch operand']
  #allocation4 [shape = 'f32[512,128]{1,0:T(8,128)}', space=vmem, size = 0x40000, scoped, tag = 'scratch operand']
  #allocation5 [shape = 'f32[512,128]{1,0:T(8,128)}', space=vmem, size = 0x40000, scoped, tag = 'scratch operand']
  %s0 = inlined_call_operand.hbm [shape: bf16[512,512], index: 0, kind: input, shape index: {}]
  %s1 = inlined_call_operand.hbm [shape: bf16[512,128], index: 1, kind: input, shape index: {}]
  %s2 = inlined_call_operand.hbm [shape: bf16[128,128], index: 2, kind: input, shape index: {}]
  %s3 = inlined_call_operand.vmem [shape: f32[1,128], index: 3, kind: input, shape index: {}]
  %s4 = inlined_call_operand.hbm [shape: bf16[128,128], index: 4, kind: input, shape index: {}]
  %s5 = inlined_call_operand.vmem [shape: f32[1,128], index: 5, kind: input, shape index: {}]
  %s6 = inlined_call_operand.hbm [shape: f32[512,128], index: 6, kind: output, shape index: {}]
  %s7 = sld [smem:[#allocation0]]
  $region101: #{tpu_custom_call.1} parent=0
    _
  %s9 = ssub.s32 1, %s7
  %s10 = scalar_select 0, %s9, %s7
  $region1: #{tpu_custom_call.1} parent=0
    #allocation6 [shape = 'u8[524288]{0}', space=vmem, size = 0x80000, scoped, tag = 'input window, operand 0, single buffered']
    #allocation7 [shape = 's32[2]{0}', space=sflag, size = 0x8, scoped, tag = 'scoped memory for tpu_custom_call.1']
    #allocation8 [shape = 's32[2]{0}', space=sflag, size = 0x8, scoped, tag = 'scoped memory for tpu_custom_call.1']
    #allocation9 [shape = 'u8[131072]{0}', space=vmem, size = 0x20000, scoped, tag = 'input window, operand 1, single buffered']
    #allocation10 [shape = 's32[1]{0}', space=sflag, size = 0x4, scoped, tag = 'scoped memory for tpu_custom_call.1']
    #allocation11 [shape = 'u8[32768]{0}', space=vmem, size = 0x8000, scoped, tag = 'input window, operand 2, single buffered']
    #allocation12 [shape = 'u8[32768]{0}', space=vmem, size = 0x8000, scoped, tag = 'input window, operand 4, single buffered']
    #allocation13 [shape = 's32[1]{0}', space=sflag, size = 0x4, scoped, tag = 'scoped memory for tpu_custom_call.1']
    #allocation14 [shape = 'u8[524288]{0}', space=vmem, size = 0x80000, scoped, tag = 'output window, operand 0']
    %11 = vsyncpa [#allocation7], 0
    %12 = vsyncpa [#allocation10], 0
    %13 = vsyncpa [#allocation13], 0
    %14 = vsyncpa [#allocation8], 0
    %s15 = scalar_lea.sflag [#allocation8], 1
    %16 = vsyncpa %s15, 0
    loop: start=0, step=1, limit=4
    $region2: #{tpu_custom_call.1} parent=1 // loop_pre_header
      _
    $region3: #{tpu_custom_call.1} parent=1 // loop_header
      %s18 = sphi 0, %s22
      %p19 = scmp.ge.s32.totalorder %s18, 4
      %s25 = sphi 0, %s44
      %s26 = sphi 0, %s40
      %s27 = sphi 0, %s36
      %s28 = sphi 0, %s25
      %s29 = sphi 0, %s26
      %s30 = sphi 0, %s27
      %s31 = sphi 0, %s28
      %s32 = sphi 0, %s29
      %s33 = sphi 0, %s30
      %s49 = sphi 0, %s51
      %s52 = sphi 0, %s49
      %s53 = sphi 0, %s52
      %s69 = sphi 0, %s53
      %s73 = sphi 0, %s73
      %s75 = sphi 0, %s73
      %s76 = sphi 0, %s75
      %s90 = sphi 0, %s76
      %s94 = sphi 0, %s94
      %s96 = sphi 0, %s94
      %s97 = sphi 0, %s96
      %s111 = sphi 0, %s97
      %s115 = sphi 0, %s115
      %s117 = sphi 0, %s115
      %s118 = sphi 0, %s117
      %s132 = sphi 0, %s118
      %s136 = sphi 0, %s136
      %s138 = sphi 0, %s136
      %s139 = sphi 0, %s138
      %s153 = sphi 0, %s139
      %s157 = sphi 0, %s157
      %s159 = sphi 0, %s157
      %s160 = sphi 0, %s159
      %s174 = sphi 0, %s160
      %s182 = sphi 0, %s184
      %s185 = sphi 0, %s182
      %s186 = sphi 0, %s185
      %s202 = sphi 0, %s186
    $region4: #{tpu_custom_call.1} parent=1 // loop_header_branch
      %21 = sbr.rel (%p19) target = $region8
    $region5: #{tpu_custom_call.1} parent=1 // loop_body
      %s23 = ssub.s32 %s18, 1
      %s24 = ssub.s32 %s18, 2
      %s34 = sadd.s32 1, %s27
      %p35 = scmp.ge.s32.totalorder %s34, 1
      %s36 = scalar_select %p35, 0, %s34
      %s37 = sadd.s32 1, %s26
      %s38 = scalar_select %p35, %s37, %s26
      %p39 = scmp.ge.s32.totalorder %s38, 1
      %s40 = scalar_select %p39, 0, %s38
      %s41 = sadd.s32 1, %s25
      %s42 = scalar_select %p39, %s41, %s25
      %p43 = scmp.ge.s32.totalorder %s42, 2
      %s44 = scalar_select %p43, 0, %s42
      %s45 = ssub.s32 %s26, %s40
      %s46 = ssub.s32 %s27, %s36
      %s47 = sor.u32 %s45, %s46
      %p48 = scmp.eq.s32.totalorder %s47, 0
      %s50 = sadd.s32 %s49, 1
      %s51 = scalar_select %p48, %s49, %s50
      %p54 = pneg %p48
      %p55 = scmp.eq.s32.totalorder %s18, 1
      %p56 = por %p54, %p55
      %p57 = scmp.ne.s32.totalorder %s49, %s52
      %p58 = scmp.eq.s32.totalorder %s18, 0
      %p59 = por %p57, %p58
      %p60 = scmp.ne.s32.totalorder %s49, %s52
      %p61 = scmp.eq.s32.totalorder %s23, 1
      %p62 = por %p60, %p61
      %p63 = scmp.ne.s32.totalorder %s52, %s53
      %p64 = scmp.eq.s32.totalorder %s23, 0
      %p65 = por %p63, %p64
      %p66 = scmp.ne.s32.totalorder %s52, %s53
      %p67 = scmp.eq.s32.totalorder %s24, 1
      %p68 = por %p66, %p67
      %p70 = scmp.ne.s32.totalorder %s53, %s69
      %p71 = scmp.eq.s32.totalorder %s24, 0
      %p72 = por %p70, %p71
      %s74 = sadd.s32 %s73, 1
      %p77 = scmp.eq.s32.totalorder %s18, 1
      %p78 = scmp.ne.s32.totalorder %s73, %s75
      %p79 = scmp.eq.s32.totalorder %s18, 0
      %p80 = por %p78, %p79
      %p81 = scmp.ne.s32.totalorder %s73, %s75
      %p82 = scmp.eq.s32.totalorder %s23, 1
      %p83 = por %p81, %p82
      %p84 = scmp.ne.s32.totalorder %s75, %s76
      %p85 = scmp.eq.s32.totalorder %s23, 0
      %p86 = por %p84, %p85
      %p87 = scmp.ne.s32.totalorder %s75, %s76
      %p88 = scmp.eq.s32.totalorder %s24, 1
      %p89 = por %p87, %p88
      %p91 = scmp.ne.s32.totalorder %s76, %s90
      %p92 = scmp.eq.s32.totalorder %s24, 0
      %p93 = por %p91, %p92
      %s95 = sadd.s32 %s94, 1
      %p98 = scmp.eq.s32.totalorder %s18, 1
      %p99 = scmp.ne.s32.totalorder %s94, %s96
      %p100 = scmp.eq.s32.totalorder %s18, 0
      %p101 = por %p99, %p100
      %p102 = scmp.ne.s32.totalorder %s94, %s96
      %p103 = scmp.eq.s32.totalorder %s23, 1
      %p104 = por %p102, %p103
      %p105 = scmp.ne.s32.totalorder %s96, %s97
      %p106 = scmp.eq.s32.totalorder %s23, 0
      %p107 = por %p105, %p106
      %p108 = scmp.ne.s32.totalorder %s96, %s97
      %p109 = scmp.eq.s32.totalorder %s24, 1
      %p110 = por %p108, %p109
      %p112 = scmp.ne.s32.totalorder %s97, %s111
      %p113 = scmp.eq.s32.totalorder %s24, 0
      %p114 = por %p112, %p113
      %s116 = sadd.s32 %s115, 1
      %p119 = scmp.eq.s32.totalorder %s18, 1
      %p120 = scmp.ne.s32.totalorder %s115, %s117
      %p121 = scmp.eq.s32.totalorder %s18, 0
      %p122 = por %p120, %p121
      %p123 = scmp.ne.s32.totalorder %s115, %s117
      %p124 = scmp.eq.s32.totalorder %s23, 1
      %p125 = por %p123, %p124
      %p126 = scmp.ne.s32.totalorder %s117, %s118
      %p127 = scmp.eq.s32.totalorder %s23, 0
      %p128 = por %p126, %p127
      %p129 = scmp.ne.s32.totalorder %s117, %s118
      %p130 = scmp.eq.s32.totalorder %s24, 1
      %p131 = por %p129, %p130
      %p133 = scmp.ne.s32.totalorder %s118, %s132
      %p134 = scmp.eq.s32.totalorder %s24, 0
      %p135 = por %p133, %p134
      %s137 = sadd.s32 %s136, 1
      %p140 = scmp.eq.s32.totalorder %s18, 1
      %p141 = scmp.ne.s32.totalorder %s136, %s138
      %p142 = scmp.eq.s32.totalorder %s18, 0
      %p143 = por %p141, %p142
      %p144 = scmp.ne.s32.totalorder %s136, %s138
      %p145 = scmp.eq.s32.totalorder %s23, 1
      %p146 = por %p144, %p145
      %p147 = scmp.ne.s32.totalorder %s138, %s139
      %p148 = scmp.eq.s32.totalorder %s23, 0
      %p149 = por %p147, %p148
      %p150 = scmp.ne.s32.totalorder %s138, %s139
      %p151 = scmp.eq.s32.totalorder %s24, 1
      %p152 = por %p150, %p151
      %p154 = scmp.ne.s32.totalorder %s139, %s153
      %p155 = scmp.eq.s32.totalorder %s24, 0
      %p156 = por %p154, %p155
      %s158 = sadd.s32 %s157, 1
      %p161 = scmp.eq.s32.totalorder %s18, 1
      %p162 = scmp.ne.s32.totalorder %s157, %s159
      %p163 = scmp.eq.s32.totalorder %s18, 0
      %p164 = por %p162, %p163
      %p165 = scmp.ne.s32.totalorder %s157, %s159
      %p166 = scmp.eq.s32.totalorder %s23, 1
      %p167 = por %p165, %p166
      %p168 = scmp.ne.s32.totalorder %s159, %s160
      %p169 = scmp.eq.s32.totalorder %s23, 0
      %p170 = por %p168, %p169
      %p171 = scmp.ne.s32.totalorder %s159, %s160
      %p172 = scmp.eq.s32.totalorder %s24, 1
      %p173 = por %p171, %p172
      %p175 = scmp.ne.s32.totalorder %s160, %s174
      %p176 = scmp.eq.s32.totalorder %s24, 0
      %p177 = por %p175, %p176
      %s178 = smul.u32 %s25, %s26
      %s179 = smul.u32 %s44, %s40
      %s180 = ssub.s32 %s178, %s179
      %p181 = scmp.eq.s32.totalorder %s180, 0
      %s183 = sadd.s32 %s182, 1
      %s184 = scalar_select %p181, %s182, %s183
      %p187 = pneg %p181
      %p188 = scmp.eq.s32.totalorder %s18, 1
      %p189 = por %p187, %p188
      %p190 = scmp.ne.s32.totalorder %s182, %s185
      %p191 = scmp.eq.s32.totalorder %s18, 0
      %p192 = por %p190, %p191
      %p193 = scmp.ne.s32.totalorder %s182, %s185
      %p194 = scmp.eq.s32.totalorder %s23, 1
      %p195 = por %p193, %p194
      %p196 = scmp.ne.s32.totalorder %s185, %s186
      %p197 = scmp.eq.s32.totalorder %s23, 0
      %p198 = por %p196, %p197
      %p199 = scmp.ne.s32.totalorder %s185, %s186
      %p200 = scmp.eq.s32.totalorder %s24, 1
      %p201 = por %p199, %p200
      %p203 = scmp.ne.s32.totalorder %s186, %s202
      %p204 = scmp.eq.s32.totalorder %s24, 0
      %p205 = por %p203, %p204
      %p206 = scmp.le.s32.totalorder 1, %s18
      %p207 = scmp.lt.s32.totalorder %s18, 3
      %p208 = pnand %p206, %p207
      %p209 = pneg %p208
      // Predicated region
      $region9: #{tpu_custom_call.1} parent=5 // pred_check
        _
      $region10: #{tpu_custom_call.1} parent=5 // pred_check_branch
        %211 = sbr.rel (%p208) target = $region12
      $region11: #{tpu_custom_call.1} parent=5 // pred_region
        %s212 = ssub.s32 %s18, 1
        // Predicated region
        $region13: #{tpu_custom_call.1} parent=11 // pred_check
          %p213 = pneg %p65
        $region14: #{tpu_custom_call.1} parent=11 // pred_check_branch
          %215 = sbr.rel (%p213) target = $region16
        $region15: #{tpu_custom_call.1} parent=11 // pred_region
          %s216 = smul.u32 64, %s29
          %s217 = smul.u32 4, %s30
          %s219 = ssub.s32 16384, 16384
          %220 = vsyncadd [#allocation7], %s219
          %s221 = smul.addr %s216, 4
          %s222 = sadd.s32 %s217, %s221
          %s223 = smul.addr %s222, 64
          %s224 = scalar_lea.hbm %s0, %s223
          %s225 = sshll.u32 [#allocation6], 4
          %s226 = int_to_ptr.vmem [resolvable:$true] %s225
          %231 = dma.hbm_to_vmem [thread:$0]  %s224, 16384, %s226, [#allocation7], 256, 256, 16
        $region16: #{tpu_custom_call.1} parent=11 // pred_fallthru
          _
        // Predicated region
        $region17: #{tpu_custom_call.1} parent=11 // pred_check
          %p232 = pneg %p86
        $region18: #{tpu_custom_call.1} parent=11 // pred_check_branch
          %234 = sbr.rel (%p232) target = $region20
        $region19: #{tpu_custom_call.1} parent=11 // pred_region
          %s236 = ssub.s32 4096, 4096
          %237 = vsyncadd [#allocation10], %s236
          %s238 = sshll.u32 [#allocation9], 4
          %s239 = int_to_ptr.vmem [resolvable:$true] %s238
          %244 = dma.hbm_to_vmem [thread:$0]  %s1, 4096, %s239, [#allocation10], 64, 64, 4
        $region20: #{tpu_custom_call.1} parent=11 // pred_fallthru
          _
        // Predicated region
        $region21: #{tpu_custom_call.1} parent=11 // pred_check
          %p245 = pneg %p107
        $region22: #{tpu_custom_call.1} parent=11 // pred_check_branch
          %247 = sbr.rel (%p245) target = $region24
        $region23: #{tpu_custom_call.1} parent=11 // pred_region
          %s249 = ssub.s32 1024, 1024
          %250 = vsyncadd [#allocation10], %s249
          %s251 = sshll.u32 [#allocation11], 4
          %s252 = int_to_ptr.vmem [resolvable:$true] %s251
          %257 = dma.hbm_to_vmem [thread:$0]  %s2, 1024, %s252, [#allocation10], 64, 64, 4
        $region24: #{tpu_custom_call.1} parent=11 // pred_fallthru
          _
        // Predicated region
        $region25: #{tpu_custom_call.1} parent=11 // pred_check
          %p258 = pneg %p128
        $region26: #{tpu_custom_call.1} parent=11 // pred_check_branch
          %260 = sbr.rel (%p258) target = $region28
        $region27: #{tpu_custom_call.1} parent=11 // pred_region
          _
        $region28: #{tpu_custom_call.1} parent=11 // pred_fallthru
          _
        // Predicated region
        $region29: #{tpu_custom_call.1} parent=11 // pred_check
          %p261 = pneg %p149
        $region30: #{tpu_custom_call.1} parent=11 // pred_check_branch
          %263 = sbr.rel (%p261) target = $region32
        $region31: #{tpu_custom_call.1} parent=11 // pred_region
          %s265 = ssub.s32 1024, 1024
          %266 = vsyncadd [#allocation13], %s265
          %s267 = sshll.u32 [#allocation12], 4
          %s268 = int_to_ptr.vmem [resolvable:$true] %s267
          %273 = dma.hbm_to_vmem [thread:$0]  %s4, 1024, %s268, [#allocation13], 64, 64, 4
        $region32: #{tpu_custom_call.1} parent=11 // pred_fallthru
          _
        // Predicated region
        $region33: #{tpu_custom_call.1} parent=11 // pred_check
          %p274 = pneg %p170
        $region34: #{tpu_custom_call.1} parent=11 // pred_check_branch
          %276 = sbr.rel (%p274) target = $region36
        $region35: #{tpu_custom_call.1} parent=11 // pred_region
          _
        $region36: #{tpu_custom_call.1} parent=11 // pred_fallthru
          _
      $region12: #{tpu_custom_call.1} parent=5 // pred_fallthru
        _
      %p277 = scmp.lt.s32.totalorder %s18, 2
      // Predicated region
      $region37: #{tpu_custom_call.1} parent=5 // pred_check
        %p278 = pneg %p277
      $region38: #{tpu_custom_call.1} parent=5 // pred_check_branch
        %280 = sbr.rel (%p278) target = $region40
      $region39: #{tpu_custom_call.1} parent=5 // pred_region
        _
      $region40: #{tpu_custom_call.1} parent=5 // pred_fallthru
        _
      %p281 = scmp.le.s32.totalorder 1, %s18
      %p282 = scmp.lt.s32.totalorder %s18, 3
      %p283 = pnand %p281, %p282
      %p284 = pneg %p283
      // Predicated region
      $region41: #{tpu_custom_call.1} parent=5 // pred_check
        _
      $region42: #{tpu_custom_call.1} parent=5 // pred_check_branch
        %286 = sbr.rel (%p283) target = $region44
      $region43: #{tpu_custom_call.1} parent=5 // pred_region
        %s287 = ssub.s32 %s18, 1
        // Predicated region
        $region45: #{tpu_custom_call.1} parent=43 // pred_check
          %p288 = pneg %p65
        $region46: #{tpu_custom_call.1} parent=43 // pred_check_branch
          %290 = sbr.rel (%p288) target = $region48
        $region47: #{tpu_custom_call.1} parent=43 // pred_region
          %291 = dma.done [#allocation7], 16384
        $region48: #{tpu_custom_call.1} parent=43 // pred_fallthru
          _
        // Predicated region
        $region49: #{tpu_custom_call.1} parent=43 // pred_check
          %p292 = pneg %p86
        $region50: #{tpu_custom_call.1} parent=43 // pred_check_branch
          %294 = sbr.rel (%p292) target = $region52
        $region51: #{tpu_custom_call.1} parent=43 // pred_region
          %295 = dma.done [#allocation10], 4096
        $region52: #{tpu_custom_call.1} parent=43 // pred_fallthru
          _
        // Predicated region
        $region53: #{tpu_custom_call.1} parent=43 // pred_check
          %p296 = pneg %p107
        $region54: #{tpu_custom_call.1} parent=43 // pred_check_branch
          %298 = sbr.rel (%p296) target = $region56
        $region55: #{tpu_custom_call.1} parent=43 // pred_region
          %299 = dma.done [#allocation10], 1024
        $region56: #{tpu_custom_call.1} parent=43 // pred_fallthru
          _
        // Predicated region
        $region57: #{tpu_custom_call.1} parent=43 // pred_check
          %p300 = pneg %p149
        $region58: #{tpu_custom_call.1} parent=43 // pred_check_branch
          %302 = sbr.rel (%p300) target = $region60
        $region59: #{tpu_custom_call.1} parent=43 // pred_region
          %303 = dma.done [#allocation13], 1024
        $region60: #{tpu_custom_call.1} parent=43 // pred_fallthru
          _
        %p304 = pneg %p65
        %p305 = pneg %p62
        %p306 = pneg %p86
        %p307 = pneg %p83
        %p308 = pneg %p107
        %p309 = pneg %p104
        %p310 = pneg %p128
        %p311 = pneg %p125
        %p312 = pneg %p149
        %p313 = pneg %p146
        %p314 = pneg %p170
        %p315 = pneg %p167
        %p316 = pneg %p198
        %p317 = pneg %p195
        %s318 = sand.u32 %s185, 1
        %s319 = scalar_lea.sflag [#allocation8], %s318
        %s320 = sand.u32 %s185, 1
        %s321 = smul.addr %s320, 512
        %s322 = scalar_lea.vmem [#allocation14], %s321
        %s323 = smul.u32 64, %s29
        %s324 = smul.u32 4, %s30
        %s325 = smul.u32 %s28, %s29
        %s326 = smul.u32 64, %s325
        %s328 = smul.u32 %s30, 512
        %s329 = smul.u32 %s29, 512
        %p330 = scmp.eq.s32.totalorder %s28, 0
        // Predicated region
        $region61: #{tpu_custom_call.1} parent=43 // pred_check
          %p331 = pneg %p330
        $region62: #{tpu_custom_call.1} parent=43 // pred_check_branch
          %333 = sbr.rel (%p331) target = $region64
        $region63: #{tpu_custom_call.1} parent=43 // pred_region
          %p334 = scmp.eq.s32.totalorder %s29, 0
          // Predicated region
          $region65: #{tpu_custom_call.1} parent=63 // pred_check
            %p335 = pneg %p334
          $region66: #{tpu_custom_call.1} parent=63 // pred_check_branch
            %337 = sbr.rel (%p335) target = $region68
          $region67: #{tpu_custom_call.1} parent=63 // pred_region
            %s338 = sshra.s32 %s328, 3
            %s339 = sand.u32 %s328, 7
            %s340 = smul.addr %s338, 4
            %s341 = scalar_lea.vmem [#allocation9], %s340
            %v342 = vld [vmem:[%s341] sm:$0xf]
            %v343 = vld [vmem:[%s341 + $0x4] sm:$0xf]
            %v344 = vld [vmem:[%s341 + $0x8] sm:$0xf]
            %v345 = vld [vmem:[%s341 + $0xc] sm:$0xf]
            %v346 = vld [vmem:[%s341 + $0x10] sm:$0xf]
            %v347 = vld [vmem:[%s341 + $0x14] sm:$0xf]
            %v348 = vld [vmem:[%s341 + $0x18] sm:$0xf]
            %v349 = vld [vmem:[%s341 + $0x1c] sm:$0xf]
            %v350 = vld [vmem:[%s341 + $0x20] sm:$0xf]
            %v351 = vld [vmem:[%s341 + $0x24] sm:$0xf]
            %v352 = vld [vmem:[%s341 + $0x28] sm:$0xf]
            %v353 = vld [vmem:[%s341 + $0x2c] sm:$0xf]
            %v354 = vld [vmem:[%s341 + $0x30] sm:$0xf]
            %v355 = vld [vmem:[%s341 + $0x34] sm:$0xf]
            %v356 = vld [vmem:[%s341 + $0x38] sm:$0xf]
            %v357 = vld [vmem:[%s341 + $0x3c] sm:$0xf]
            %v358 = vld [vmem:[%s341 + $0x40] sm:$0xf]
            %v359 = vld [vmem:[%s341 + $0x44] sm:$0xf]
            %v360 = vld [vmem:[%s341 + $0x48] sm:$0xf]
            %v361 = vld [vmem:[%s341 + $0x4c] sm:$0xf]
            %v362 = vld [vmem:[%s341 + $0x50] sm:$0xf]
            %v363 = vld [vmem:[%s341 + $0x54] sm:$0xf]
            %v364 = vld [vmem:[%s341 + $0x58] sm:$0xf]
            %v365 = vld [vmem:[%s341 + $0x5c] sm:$0xf]
            %v366 = vld [vmem:[%s341 + $0x60] sm:$0xf]
            %v367 = vld [vmem:[%s341 + $0x64] sm:$0xf]
            %v368 = vld [vmem:[%s341 + $0x68] sm:$0xf]
            %v369 = vld [vmem:[%s341 + $0x6c] sm:$0xf]
            %v370 = vld [vmem:[%s341 + $0x70] sm:$0xf]
            %v371 = vld [vmem:[%s341 + $0x74] sm:$0xf]
            %v372 = vld [vmem:[%s341 + $0x78] sm:$0xf]
            %v373 = vld [vmem:[%s341 + $0x7c] sm:$0xf]
            %v374 = vld [vmem:[%s341 + $0x80] sm:$0xf]
            %v375 = vld [vmem:[%s341 + $0x84] sm:$0xf]
            %v376 = vld [vmem:[%s341 + $0x88] sm:$0xf]
            %v377 = vld [vmem:[%s341 + $0x8c] sm:$0xf]
            %v378 = vld [vmem:[%s341 + $0x90] sm:$0xf]
            %v379 = vld [vmem:[%s341 + $0x94] sm:$0xf]
            %v380 = vld [vmem:[%s341 + $0x98] sm:$0xf]
            %v381 = vld [vmem:[%s341 + $0x9c] sm:$0xf]
            %v382 = vld [vmem:[%s341 + $0xa0] sm:$0xf]
            %v383 = vld [vmem:[%s341 + $0xa4] sm:$0xf]
            %v384 = vld [vmem:[%s341 + $0xa8] sm:$0xf]
            %v385 = vld [vmem:[%s341 + $0xac] sm:$0xf]
            %v386 = vld [vmem:[%s341 + $0xb0] sm:$0xf]
            %v387 = vld [vmem:[%s341 + $0xb4] sm:$0xf]
            %v388 = vld [vmem:[%s341 + $0xb8] sm:$0xf]
            %v389 = vld [vmem:[%s341 + $0xbc] sm:$0xf]
            %v390 = vld [vmem:[%s341 + $0xc0] sm:$0xf]
            %v391 = vld [vmem:[%s341 + $0xc4] sm:$0xf]
            %v392 = vld [vmem:[%s341 + $0xc8] sm:$0xf]
            %v393 = vld [vmem:[%s341 + $0xcc] sm:$0xf]
            %v394 = vld [vmem:[%s341 + $0xd0] sm:$0xf]
            %v395 = vld [vmem:[%s341 + $0xd4] sm:$0xf]
            %v396 = vld [vmem:[%s341 + $0xd8] sm:$0xf]
            %v397 = vld [vmem:[%s341 + $0xdc] sm:$0xf]
            %v398 = vld [vmem:[%s341 + $0xe0] sm:$0xf]
            %v399 = vld [vmem:[%s341 + $0xe4] sm:$0xf]
            %v400 = vld [vmem:[%s341 + $0xe8] sm:$0xf]
            %v401 = vld [vmem:[%s341 + $0xec] sm:$0xf]
            %v402 = vld [vmem:[%s341 + $0xf0] sm:$0xf]
            %v403 = vld [vmem:[%s341 + $0xf4] sm:$0xf]
            %v404 = vld [vmem:[%s341 + $0xf8] sm:$0xf]
            %v405 = vld [vmem:[%s341 + $0xfc] sm:$0xf]
            %v406 = vld [vmem:[#allocation11] sm:$0xf]
            %v407 = vld [vmem:[#allocation11 + $0x4] sm:$0xf]
            %v408 = vld [vmem:[#allocation11 + $0x8] sm:$0xf]
            %v409 = vld [vmem:[#allocation11 + $0xc] sm:$0xf]
            %v410 = vld [vmem:[#allocation11 + $0x10] sm:$0xf]
            %v411 = vld [vmem:[#allocation11 + $0x14] sm:$0xf]
            %v412 = vld [vmem:[#allocation11 + $0x18] sm:$0xf]
            %v413 = vld [vmem:[#allocation11 + $0x1c] sm:$0xf]
            %v414 = vld [vmem:[#allocation11 + $0x20] sm:$0xf]
            %v415 = vld [vmem:[#allocation11 + $0x24] sm:$0xf]
            %v416 = vld [vmem:[#allocation11 + $0x28] sm:$0xf]
            %v417 = vld [vmem:[#allocation11 + $0x2c] sm:$0xf]
            %v418 = vld [vmem:[#allocation11 + $0x30] sm:$0xf]
            %v419 = vld [vmem:[#allocation11 + $0x34] sm:$0xf]
            %v420 = vld [vmem:[#allocation11 + $0x38] sm:$0xf]
            %v421 = vld [vmem:[#allocation11 + $0x3c] sm:$0xf]
            %v486 = vunpack.c.l.b16 %v342
            %v487 = vunpack.c.l.b16 %v343
            %v488 = vunpack.c.l.b16 %v344
            %v489 = vunpack.c.l.b16 %v345
            %v490 = vunpack.c.l.b16 %v346
            %v491 = vunpack.c.l.b16 %v347
            %v492 = vunpack.c.l.b16 %v348
            %v493 = vunpack.c.l.b16 %v349
            %v494 = vunpack.c.l.b16 %v350
            %v495 = vunpack.c.l.b16 %v351
            %v496 = vunpack.c.l.b16 %v352
            %v497 = vunpack.c.l.b16 %v353
            %v498 = vunpack.c.l.b16 %v354
            %v499 = vunpack.c.l.b16 %v355
            %v500 = vunpack.c.l.b16 %v356
            %v501 = vunpack.c.l.b16 %v357
            %v502 = vunpack.c.l.b16 %v358
            %v503 = vunpack.c.l.b16 %v359
            %v504 = vunpack.c.l.b16 %v360
            %v505 = vunpack.c.l.b16 %v361
            %v506 = vunpack.c.l.b16 %v362
            %v507 = vunpack.c.l.b16 %v363
            %v508 = vunpack.c.l.b16 %v364
            %v509 = vunpack.c.l.b16 %v365
            %v510 = vunpack.c.l.b16 %v366
            %v511 = vunpack.c.l.b16 %v367
            %v512 = vunpack.c.l.b16 %v368
            %v513 = vunpack.c.l.b16 %v369
            %v514 = vunpack.c.l.b16 %v370
            %v515 = vunpack.c.l.b16 %v371
            %v516 = vunpack.c.l.b16 %v372
            %v517 = vunpack.c.l.b16 %v373
            %v518 = vunpack.c.l.b16 %v374
            %v519 = vunpack.c.l.b16 %v375
            %v520 = vunpack.c.l.b16 %v376
            %v521 = vunpack.c.l.b16 %v377
            %v522 = vunpack.c.l.b16 %v378
            %v523 = vunpack.c.l.b16 %v379
            %v524 = vunpack.c.l.b16 %v380
            %v525 = vunpack.c.l.b16 %v381
            %v526 = vunpack.c.l.b16 %v382
            %v527 = vunpack.c.l.b16 %v383
            %v528 = vunpack.c.l.b16 %v384
            %v529 = vunpack.c.l.b16 %v385
            %v530 = vunpack.c.l.b16 %v386
            %v531 = vunpack.c.l.b16 %v387
            %v532 = vunpack.c.l.b16 %v388
            %v533 = vunpack.c.l.b16 %v389
            %v534 = vunpack.c.l.b16 %v390
            %v535 = vunpack.c.l.b16 %v391
            %v536 = vunpack.c.l.b16 %v392
            %v537 = vunpack.c.l.b16 %v393
            %v538 = vunpack.c.l.b16 %v394
            %v539 = vunpack.c.l.b16 %v395
            %v540 = vunpack.c.l.b16 %v396
            %v541 = vunpack.c.l.b16 %v397
            %v542 = vunpack.c.l.b16 %v398
            %v543 = vunpack.c.l.b16 %v399
            %v544 = vunpack.c.l.b16 %v400
            %v545 = vunpack.c.l.b16 %v401
            %v546 = vunpack.c.l.b16 %v402
            %v547 = vunpack.c.l.b16 %v403
            %v548 = vunpack.c.l.b16 %v404
            %v549 = vunpack.c.l.b16 %v405
            %v550 = vpack.c.b16 %v487, %v486
            %v551 = vpack.c.b16 %v489, %v488
            %v552 = vpack.c.b16 %v491, %v490
            %v553 = vpack.c.b16 %v493, %v492
            %v554 = vpack.c.b16 %v495, %v494
            %v555 = vpack.c.b16 %v497, %v496
            %v556 = vpack.c.b16 %v499, %v498
            %v557 = vpack.c.b16 %v501, %v500
            %v558 = vpack.c.b16 %v503, %v502
            %v559 = vpack.c.b16 %v505, %v504
            %v560 = vpack.c.b16 %v507, %v506
            %v561 = vpack.c.b16 %v509, %v508
            %v562 = vpack.c.b16 %v511, %v510
            %v563 = vpack.c.b16 %v513, %v512
            %v564 = vpack.c.b16 %v515, %v514
            %v565 = vpack.c.b16 %v517, %v516
            %v566 = vpack.c.b16 %v519, %v518
            %v567 = vpack.c.b16 %v521, %v520
            %v568 = vpack.c.b16 %v523, %v522
            %v569 = vpack.c.b16 %v525, %v524
            %v570 = vpack.c.b16 %v527, %v526
            %v571 = vpack.c.b16 %v529, %v528
            %v572 = vpack.c.b16 %v531, %v530
            %v573 = vpack.c.b16 %v533, %v532
            %v574 = vpack.c.b16 %v535, %v534
            %v575 = vpack.c.b16 %v537, %v536
            %v576 = vpack.c.b16 %v539, %v538
            %v577 = vpack.c.b16 %v541, %v540
            %v578 = vpack.c.b16 %v543, %v542
            %v579 = vpack.c.b16 %v545, %v544
            %v580 = vpack.c.b16 %v547, %v546
            %v581 = vpack.c.b16 %v549, %v548
            %v630 = vunpack.c.l.b16 %v406
            %v631 = vunpack.c.l.b16 %v407
            %v632 = vunpack.c.l.b16 %v408
            %v633 = vunpack.c.l.b16 %v409
            %v634 = vunpack.c.l.b16 %v410
            %v635 = vunpack.c.l.b16 %v411
            %v636 = vunpack.c.l.b16 %v412
            %v637 = vunpack.c.l.b16 %v413
            %v638 = vunpack.c.l.b16 %v414
            %v639 = vunpack.c.l.b16 %v415
            %v640 = vunpack.c.l.b16 %v416
            %v641 = vunpack.c.l.b16 %v417
            %v642 = vunpack.c.l.b16 %v418
            %v643 = vunpack.c.l.b16 %v419
            %v644 = vunpack.c.l.b16 %v420
            %v645 = vunpack.c.l.b16 %v421
            %v646 = vpack.c.b16 %v631, %v630
            %v647 = vpack.c.b16 %v633, %v632
            %v648 = vpack.c.b16 %v635, %v634
            %v649 = vpack.c.b16 %v637, %v636
            %v650 = vpack.c.b16 %v639, %v638
            %v651 = vpack.c.b16 %v641, %v640
            %v652 = vpack.c.b16 %v643, %v642
            %v653 = vpack.c.b16 %v645, %v644
            %662 = vmatprep.subr.bf16.mxu0 0
            %663 = vmatpush1.bf16.msra.mxu0 %v646
            %664 = vmatprep.subr.bf16.mxu0 0
            %665 = vmatpush1.bf16.msra.mxu0 %v647
            %666 = vmatprep.subr.bf16.mxu0 0
            %667 = vmatpush1.bf16.msra.mxu0 %v648
            %668 = vmatprep.subr.bf16.mxu0 0
            %669 = vmatpush1.bf16.msra.mxu0 %v649
            %670 = vmatprep.subr.bf16.mxu0 0
            %671 = vmatpush1.bf16.msra.mxu0 %v650
            %672 = vmatprep.subr.bf16.mxu0 0
            %673 = vmatpush1.bf16.msra.mxu0 %v651
            %674 = vmatprep.subr.bf16.mxu0 0
            %675 = vmatpush1.bf16.msra.mxu0 %v652
            %676 = vmatprep.subr.bf16.mxu0 0
            %677 = vmatpush1.bf16.msra.mxu0 %v653
            %678 = vmatprep.subr.bf16.mxu0 0
            %679 = vmatpush1.bf16.msra.mxu0 0
            %680 = vmatprep.subr.bf16.mxu0 0
            %681 = vmatpush1.bf16.msra.mxu0 0
            %682 = vmatprep.subr.bf16.mxu0 0
            %683 = vmatpush1.bf16.msra.mxu0 0
            %684 = vmatprep.subr.bf16.mxu0 0
            %685 = vmatpush1.bf16.msra.mxu0 0
            %686 = vmatprep.subr.bf16.mxu0 0
            %687 = vmatpush1.bf16.msra.mxu0 0
            %688 = vmatprep.subr.bf16.mxu0 0
            %689 = vmatpush1.bf16.msra.mxu0 0
            %690 = vmatprep.subr.bf16.mxu0 0
            %691 = vmatpush1.bf16.msra.mxu0 0
            %692 = vmatprep.subr.bf16.mxu0 0
            %693 = vmatpush1.bf16.msra.mxu0 0
            %694 = vmatprep.mubr.bf16.mxu0 0
            %695 = vmatmul.mubr.bf16.gmra.mrb[0].mxu0 %v550
            %v696 = vpop.f32.mrb[0].mxu0
            %v697 = vadd.f32 0.0, %v696
            %v698 = vpop.f32.mrb[0].mxu0
            %v699 = vpop.f32.mrb[0].mxu0
            %v700 = vadd.f32 0.0, %v699
            %v701 = vpop.f32.mrb[0].mxu0
            %702 = vmatprep.mubr.bf16.mxu0 0
            %703 = vmatmul.mubr.bf16.gmra.mrb[0].mxu0 %v551
            %v704 = vpop.f32.mrb[0].mxu0
            %v705 = vadd.f32 0.0, %v704
            %v706 = vpop.f32.mrb[0].mxu0
            %v707 = vpop.f32.mrb[0].mxu0
            %v708 = vadd.f32 0.0, %v707
            %v709 = vpop.f32.mrb[0].mxu0
            %710 = vmatprep.mubr.bf16.mxu0 0
            %711 = vmatmul.mubr.bf16.gmra.mrb[0].mxu0 %v552
            %v712 = vpop.f32.mrb[0].mxu0
            %v713 = vadd.f32 0.0, %v712
            %v714 = vpop.f32.mrb[0].mxu0
            %v715 = vpop.f32.mrb[0].mxu0
            %v716 = vadd.f32 0.0, %v715
            %v717 = vpop.f32.mrb[0].mxu0
            %718 = vmatprep.mubr.bf16.mxu0 0
            %719 = vmatmul.mubr.bf16.gmra.mrb[0].mxu0 %v553
            %v720 = vpop.f32.mrb[0].mxu0
            %v721 = vadd.f32 0.0, %v720
            %v722 = vpop.f32.mrb[0].mxu0
            %v723 = vpop.f32.mrb[0].mxu0
            %v724 = vadd.f32 0.0, %v723
            %v725 = vpop.f32.mrb[0].mxu0
            %726 = vmatprep.mubr.bf16.mxu0 0
            %727 = vmatmul.mubr.bf16.gmra.mrb[0].mxu0 %v554
            %v728 = vpop.f32.mrb[0].mxu0
            %v729 = vadd.f32 0.0, %v728
            %v730 = vpop.f32.mrb[0].mxu0
            %v731 = vpop.f32.mrb[0].mxu0
            %v732 = vadd.f32 0.0, %v731
            %v733 = vpop.f32.mrb[0].mxu0
            %734 = vmatprep.mubr.bf16.mxu0 0
            %735 = vmatmul.mubr.bf16.gmra.mrb[0].mxu0 %v555
            %v736 = vpop.f32.mrb[0].mxu0
            %v737 = vadd.f32 0.0, %v736
            %v738 = vpop.f32.mrb[0].mxu0
            %v739 = vpop.f32.mrb[0].mxu0
            %v740 = vadd.f32 0.0, %v739
            %v741 = vpop.f32.mrb[0].mxu0
            %742 = vmatprep.mubr.bf16.mxu0 0
            %743 = vmatmul.mubr.bf16.gmra.mrb[0].mxu0 %v556
            %v744 = vpop.f32.mrb[0].mxu0
            %v745 = vadd.f32 0.0, %v744
            %v746 = vpop.f32.mrb[0].mxu0
            %v747 = vpop.f32.mrb[0].mxu0
            %v748 = vadd.f32 0.0, %v747
            %v749 = vpop.f32.mrb[0].mxu0
            %750 = vmatprep.mubr.bf16.mxu0 0
            %751 = vmatmul.mubr.bf16.gmra.mrb[0].mxu0 %v557
            %v752 = vpop.f32.mrb[0].mxu0
            %v753 = vadd.f32 0.0, %v752
            %v754 = vpop.f32.mrb[0].mxu0
            %v755 = vpop.f32.mrb[0].mxu0
            %v756 = vadd.f32 0.0, %v755
            %v757 = vpop.f32.mrb[0].mxu0
            %758 = vmatprep.mubr.bf16.mxu0 0
            %759 = vmatmul.mubr.bf16.gmra.mrb[0].mxu0 %v558
            %v760 = vpop.f32.mrb[0].mxu0
            %v761 = vadd.f32 0.0, %v760
            %v762 = vpop.f32.mrb[0].mxu0
            %v763 = vpop.f32.mrb[0].mxu0
            %v764 = vadd.f32 0.0, %v763
            %v765 = vpop.f32.mrb[0].mxu0
            %766 = vmatprep.mubr.bf16.mxu0 0
            %767 = vmatmul.mubr.bf16.gmra.mrb[0].mxu0 %v559
            %v768 = vpop.f32.mrb[0].mxu0
            %v769 = vadd.f32 0.0, %v768
            %v770 = vpop.f32.mrb[0].mxu0
            %v771 = vpop.f32.mrb[0].mxu0
            %v772 = vadd.f32 0.0, %v771
            %v773 = vpop.f32.mrb[0].mxu0
            %774 = vmatprep.mubr.bf16.mxu0 0
            %775 = vmatmul.mubr.bf16.gmra.mrb[0].mxu0 %v560
            %v776 = vpop.f32.mrb[0].mxu0
            %v777 = vadd.f32 0.0, %v776
            %v778 = vpop.f32.mrb[0].mxu0
            %v779 = vpop.f32.mrb[0].mxu0
            %v780 = vadd.f32 0.0, %v779
            %v781 = vpop.f32.mrb[0].mxu0
            %782 = vmatprep.mubr.bf16.mxu0 0
            %783 = vmatmul.mubr.bf16.gmra.mrb[0].mxu0 %v561
            %v784 = vpop.f32.mrb[0].mxu0
            %v785 = vadd.f32 0.0, %v784
            %v786 = vpop.f32.mrb[0].mxu0
            %v787 = vpop.f32.mrb[0].mxu0
            %v788 = vadd.f32 0.0, %v787
            %v789 = vpop.f32.mrb[0].mxu0
            %790 = vmatprep.mubr.bf16.mxu0 0
            %791 = vmatmul.mubr.bf16.gmra.mrb[0].mxu0 %v562
            %v792 = vpop.f32.mrb[0].mxu0
            %v793 = vadd.f32 0.0, %v792
            %v794 = vpop.f32.mrb[0].mxu0
            %v795 = vpop.f32.mrb[0].mxu0
            %v796 = vadd.f32 0.0, %v795
            %v797 = vpop.f32.mrb[0].mxu0
            %798 = vmatprep.mubr.bf16.mxu0 0
            %799 = vmatmul.mubr.bf16.gmra.mrb[0].mxu0 %v563
            %v800 = vpop.f32.mrb[0].mxu0
            %v801 = vadd.f32 0.0, %v800
            %v802 = vpop.f32.mrb[0].mxu0
            %v803 = vpop.f32.mrb[0].mxu0
            %v804 = vadd.f32 0.0, %v803
            %v805 = vpop.f32.mrb[0].mxu0
            %806 = vmatprep.mubr.bf16.mxu0 0
            %807 = vmatmul.mubr.bf16.gmra.mrb[0].mxu0 %v564
            %v808 = vpop.f32.mrb[0].mxu0
            %v809 = vadd.f32 0.0, %v808
            %v810 = vpop.f32.mrb[0].mxu0
            %v811 = vpop.f32.mrb[0].mxu0
            %v812 = vadd.f32 0.0, %v811
            %v813 = vpop.f32.mrb[0].mxu0
            %814 = vmatprep.mubr.bf16.mxu0 0
            %815 = vmatmul.mubr.bf16.gmra.mrb[0].mxu0 %v565
            %v816 = vpop.f32.mrb[0].mxu0
            %v817 = vadd.f32 0.0, %v816
            %v818 = vpop.f32.mrb[0].mxu0
            %v819 = vpop.f32.mrb[0].mxu0
            %v820 = vadd.f32 0.0, %v819
            %v821 = vpop.f32.mrb[0].mxu0
            %822 = vmatprep.mubr.bf16.mxu0 0
            %823 = vmatmul.mubr.bf16.gmra.mrb[0].mxu0 %v566
            %v824 = vpop.f32.mrb[0].mxu0
            %v825 = vadd.f32 0.0, %v824
            %v826 = vpop.f32.mrb[0].mxu0
            %v827 = vpop.f32.mrb[0].mxu0
            %v828 = vadd.f32 0.0, %v827
            %v829 = vpop.f32.mrb[0].mxu0
            %830 = vmatprep.mubr.bf16.mxu0 0
            %831 = vmatmul.mubr.bf16.gmra.mrb[0].mxu0 %v567
            %v832 = vpop.f32.mrb[0].mxu0
            %v833 = vadd.f32 0.0, %v832
            %v834 = vpop.f32.mrb[0].mxu0
            %v835 = vpop.f32.mrb[0].mxu0
            %v836 = vadd.f32 0.0, %v835
            %v837 = vpop.f32.mrb[0].mxu0
            %838 = vmatprep.mubr.bf16.mxu0 0
            %839 = vmatmul.mubr.bf16.gmra.mrb[0].mxu0 %v568
            %v840 = vpop.f32.mrb[0].mxu0
            %v841 = vadd.f32 0.0, %v840
            %v842 = vpop.f32.mrb[0].mxu0
            %v843 = vpop.f32.mrb[0].mxu0
            %v844 = vadd.f32 0.0, %v843
            %v845 = vpop.f32.mrb[0].mxu0
            %846 = vmatprep.mubr.bf16.mxu0 0
            %847 = vmatmul.mubr.bf16.gmra.mrb[0].mxu0 %v569
            %v848 = vpop.f32.mrb[0].mxu0
            %v849 = vadd.f32 0.0, %v848
            %v850 = vpop.f32.mrb[0].mxu0
            %v851 = vpop.f32.mrb[0].mxu0
            %v852 = vadd.f32 0.0, %v851
            %v853 = vpop.f32.mrb[0].mxu0
            %854 = vmatprep.mubr.bf16.mxu0 0
            %855 = vmatmul.mubr.bf16.gmra.mrb[0].mxu0 %v570
            %v856 = vpop.f32.mrb[0].mxu0
            %v857 = vadd.f32 0.0, %v856
            %v858 = vpop.f32.mrb[0].mxu0
            %v859 = vpop.f32.mrb[0].mxu0
            %v860 = vadd.f32 0.0, %v859
            %v861 = vpop.f32.mrb[0].mxu0
            %862 = vmatprep.mubr.bf16.mxu0 0
            %863 = vmatmul.mubr.bf16.gmra.mrb[0].mxu0 %v571
            %v864 = vpop.f32.mrb[0].mxu0
            %v865 = vadd.f32 0.0, %v864
            %v866 = vpop.f32.mrb[0].mxu0
            %v867 = vpop.f32.mrb[0].mxu0
            %v868 = vadd.f32 0.0, %v867
            %v869 = vpop.f32.mrb[0].mxu0
            %870 = vmatprep.mubr.bf16.mxu0 0
            %871 = vmatmul.mubr.bf16.gmra.mrb[0].mxu0 %v572
            %v872 = vpop.f32.mrb[0].mxu0
            %v873 = vadd.f32 0.0, %v872
            %v874 = vpop.f32.mrb[0].mxu0
            %v875 = vpop.f32.mrb[0].mxu0
            %v876 = vadd.f32 0.0, %v875
            %v877 = vpop.f32.mrb[0].mxu0
            %878 = vmatprep.mubr.bf16.mxu0 0
            %879 = vmatmul.mubr.bf16.gmra.mrb[0].mxu0 %v573
            %v880 = vpop.f32.mrb[0].mxu0
            %v881 = vadd.f32 0.0, %v880
            %v882 = vpop.f32.mrb[0].mxu0
            %v883 = vpop.f32.mrb[0].mxu0
            %v884 = vadd.f32 0.0, %v883
            %v885 = vpop.f32.mrb[0].mxu0
            %886 = vmatprep.mubr.bf16.mxu0 0
            %887 = vmatmul.mubr.bf16.gmra.mrb[0].mxu0 %v574
            %v888 = vpop.f32.mrb[0].mxu0
            %v889 = vadd.f32 0.0, %v888
            %v890 = vpop.f32.mrb[0].mxu0
            %v891 = vpop.f32.mrb[0].mxu0
            %v892 = vadd.f32 0.0, %v891
            %v893 = vpop.f32.mrb[0].mxu0
            %894 = vmatprep.mubr.bf16.mxu0 0
            %895 = vmatmul.mubr.bf16.gmra.mrb[0].mxu0 %v575
            %v896 = vpop.f32.mrb[0].mxu0
            %v897 = vadd.f32 0.0, %v896
            %v898 = vpop.f32.mrb[0].mxu0
            %v899 = vpop.f32.mrb[0].mxu0
            %v900 = vadd.f32 0.0, %v899
            %v901 = vpop.f32.mrb[0].mxu0
            %902 = vmatprep.mubr.bf16.mxu0 0
            %903 = vmatmul.mubr.bf16.gmra.mrb[0].mxu0 %v576
            %v904 = vpop.f32.mrb[0].mxu0
            %v905 = vadd.f32 0.0, %v904
            %v906 = vpop.f32.mrb[0].mxu0
            %v907 = vpop.f32.mrb[0].mxu0
            %v908 = vadd.f32 0.0, %v907
            %v909 = vpop.f32.mrb[0].mxu0
            %910 = vmatprep.mubr.bf16.mxu0 0
            %911 = vmatmul.mubr.bf16.gmra.mrb[0].mxu0 %v577
            %v912 = vpop.f32.mrb[0].mxu0
            %v913 = vadd.f32 0.0, %v912
            %v914 = vpop.f32.mrb[0].mxu0
            %v915 = vpop.f32.mrb[0].mxu0
            %v916 = vadd.f32 0.0, %v915
            %v917 = vpop.f32.mrb[0].mxu0
            %918 = vmatprep.mubr.bf16.mxu0 0
            %919 = vmatmul.mubr.bf16.gmra.mrb[0].mxu0 %v578
            %v920 = vpop.f32.mrb[0].mxu0
            %v921 = vadd.f32 0.0, %v920
            %v922 = vpop.f32.mrb[0].mxu0
            %v923 = vpop.f32.mrb[0].mxu0
            %v924 = vadd.f32 0.0, %v923
            %v925 = vpop.f32.mrb[0].mxu0
            %926 = vmatprep.mubr.bf16.mxu0 0
            %927 = vmatmul.mubr.bf16.gmra.mrb[0].mxu0 %v579
            %v928 = vpop.f32.mrb[0].mxu0
            %v929 = vadd.f32 0.0, %v928
            %v930 = vpop.f32.mrb[0].mxu0
            %v931 = vpop.f32.mrb[0].mxu0
            %v932 = vadd.f32 0.0, %v931
            %v933 = vpop.f32.mrb[0].mxu0
            %934 = vmatprep.mubr.bf16.mxu0 0
            %935 = vmatmul.mubr.bf16.gmra.mrb[0].mxu0 %v580
            %v936 = vpop.f32.mrb[0].mxu0
            %v937 = vadd.f32 0.0, %v936
            %v938 = vpop.f32.mrb[0].mxu0
            %v939 = vpop.f32.mrb[0].mxu0
            %v940 = vadd.f32 0.0, %v939
            %v941 = vpop.f32.mrb[0].mxu0
            %942 = vmatprep.mubr.bf16.mxu0 0
            %943 = vmatmul.mubr.bf16.gmra.mrb[0].mxu0 %v581
            %v944 = vpop.f32.mrb[0].mxu0
            %v945 = vadd.f32 0.0, %v944
            %v946 = vpop.f32.mrb[0].mxu0
            %v947 = vpop.f32.mrb[0].mxu0
            %v948 = vadd.f32 0.0, %v947
            %v949 = vpop.f32.mrb[0].mxu0
            %950 = vdwg.mxu0
            %v951 = vpack.c.bf16 %v700, %v697
            %v952 = vpack.c.bf16 %v708, %v705
            %v953 = vpack.c.bf16 %v716, %v713
            %v954 = vpack.c.bf16 %v724, %v721
            %v955 = vpack.c.bf16 %v732, %v729
            %v956 = vpack.c.bf16 %v740, %v737
            %v957 = vpack.c.bf16 %v748, %v745
            %v958 = vpack.c.bf16 %v756, %v753
            %v959 = vpack.c.bf16 %v764, %v761
            %v960 = vpack.c.bf16 %v772, %v769
            %v961 = vpack.c.bf16 %v780, %v777
            %v962 = vpack.c.bf16 %v788, %v785
            %v963 = vpack.c.bf16 %v796, %v793
            %v964 = vpack.c.bf16 %v804, %v801
            %v965 = vpack.c.bf16 %v812, %v809
            %v966 = vpack.c.bf16 %v820, %v817
            %v967 = vpack.c.bf16 %v828, %v825
            %v968 = vpack.c.bf16 %v836, %v833
            %v969 = vpack.c.bf16 %v844, %v841
            %v970 = vpack.c.bf16 %v852, %v849
            %v971 = vpack.c.bf16 %v860, %v857
            %v972 = vpack.c.bf16 %v868, %v865
            %v973 = vpack.c.bf16 %v876, %v873
            %v974 = vpack.c.bf16 %v884, %v881
            %v975 = vpack.c.bf16 %v892, %v889
            %v976 = vpack.c.bf16 %v900, %v897
            %v977 = vpack.c.bf16 %v908, %v905
            %v978 = vpack.c.bf16 %v916, %v913
            %v979 = vpack.c.bf16 %v924, %v921
            %v980 = vpack.c.bf16 %v932, %v929
            %v981 = vpack.c.bf16 %v940, %v937
            %v982 = vpack.c.bf16 %v948, %v945
            %s983 = sshra.s32 %s328, 4
            %s984 = sand.u32 %s328, 15
            %s985 = smul.addr %s983, 8
            %s986 = scalar_lea.vmem [#allocation2], %s985
            %987 = vst [vmem:[%s986] sm:$0xff] %v951
            %988 = vst [vmem:[%s986 + $0x8] sm:$0xff] %v952
            %989 = vst [vmem:[%s986 + $0x10] sm:$0xff] %v953
            %990 = vst [vmem:[%s986 + $0x18] sm:$0xff] %v954
            %991 = vst [vmem:[%s986 + $0x20] sm:$0xff] %v955
            %992 = vst [vmem:[%s986 + $0x28] sm:$0xff] %v956
            %993 = vst [vmem:[%s986 + $0x30] sm:$0xff] %v957
            %994 = vst [vmem:[%s986 + $0x38] sm:$0xff] %v958
            %995 = vst [vmem:[%s986 + $0x40] sm:$0xff] %v959
            %996 = vst [vmem:[%s986 + $0x48] sm:$0xff] %v960
            %997 = vst [vmem:[%s986 + $0x50] sm:$0xff] %v961
            %998 = vst [vmem:[%s986 + $0x58] sm:$0xff] %v962
            %999 = vst [vmem:[%s986 + $0x60] sm:$0xff] %v963
            %1000 = vst [vmem:[%s986 + $0x68] sm:$0xff] %v964
            %1001 = vst [vmem:[%s986 + $0x70] sm:$0xff] %v965
            %1002 = vst [vmem:[%s986 + $0x78] sm:$0xff] %v966
            %1003 = vst [vmem:[%s986 + $0x80] sm:$0xff] %v967
            %1004 = vst [vmem:[%s986 + $0x88] sm:$0xff] %v968
            %1005 = vst [vmem:[%s986 + $0x90] sm:$0xff] %v969
            %1006 = vst [vmem:[%s986 + $0x98] sm:$0xff] %v970
            %1007 = vst [vmem:[%s986 + $0xa0] sm:$0xff] %v971
            %1008 = vst [vmem:[%s986 + $0xa8] sm:$0xff] %v972
            %1009 = vst [vmem:[%s986 + $0xb0] sm:$0xff] %v973
            %1010 = vst [vmem:[%s986 + $0xb8] sm:$0xff] %v974
            %1011 = vst [vmem:[%s986 + $0xc0] sm:$0xff] %v975
            %1012 = vst [vmem:[%s986 + $0xc8] sm:$0xff] %v976
            %1013 = vst [vmem:[%s986 + $0xd0] sm:$0xff] %v977
            %1014 = vst [vmem:[%s986 + $0xd8] sm:$0xff] %v978
            %1015 = vst [vmem:[%s986 + $0xe0] sm:$0xff] %v979
            %1016 = vst [vmem:[%s986 + $0xe8] sm:$0xff] %v980
            %1017 = vst [vmem:[%s986 + $0xf0] sm:$0xff] %v981
            %1018 = vst [vmem:[%s986 + $0xf8] sm:$0xff] %v982
          $region68: #{tpu_custom_call.1} parent=63 // pred_fallthru
            _
          %p1019 = scmp.eq.s32.totalorder %s30, 0
          // Predicated region
          $region69: #{tpu_custom_call.1} parent=63 // pred_check
            %p1020 = pneg %p1019
          $region70: #{tpu_custom_call.1} parent=63 // pred_check_branch
            %1022 = sbr.rel (%p1020) target = $region72
          $region71: #{tpu_custom_call.1} parent=63 // pred_region
            %1023 = vst [vmem:[#allocation4] sm:$0xff] 0.0
            %1024 = vst [vmem:[#allocation4 + $0x8] sm:$0xff] 0.0
            %1025 = vst [vmem:[#allocation4 + $0x10] sm:$0xff] 0.0
            %1026 = vst [vmem:[#allocation4 + $0x18] sm:$0xff] 0.0
            %1027 = vst [vmem:[#allocation4 + $0x20] sm:$0xff] 0.0
            %1028 = vst [vmem:[#allocation4 + $0x28] sm:$0xff] 0.0
            %1029 = vst [vmem:[#allocation4 + $0x30] sm:$0xff] 0.0
            %1030 = vst [vmem:[#allocation4 + $0x38] sm:$0xff] 0.0
            %1031 = vst [vmem:[#allocation4 + $0x40] sm:$0xff] 0.0
            %1032 = vst [vmem:[#allocation4 + $0x48] sm:$0xff] 0.0
            %1033 = vst [vmem:[#allocation4 + $0x50] sm:$0xff] 0.0
            %1034 = vst [vmem:[#allocation4 + $0x58] sm:$0xff] 0.0
            %1035 = vst [vmem:[#allocation4 + $0x60] sm:$0xff] 0.0
            %1036 = vst [vmem:[#allocation4 + $0x68] sm:$0xff] 0.0
            %1037 = vst [vmem:[#allocation4 + $0x70] sm:$0xff] 0.0
            %1038 = vst [vmem:[#allocation4 + $0x78] sm:$0xff] 0.0
            %1039 = vst [vmem:[#allocation4 + $0x80] sm:$0xff] 0.0
            %1040 = vst [vmem:[#allocation4 + $0x88] sm:$0xff] 0.0
            %1041 = vst [vmem:[#allocation4 + $0x90] sm:$0xff] 0.0
            %1042 = vst [vmem:[#allocation4 + $0x98] sm:$0xff] 0.0
            %1043 = vst [vmem:[#allocation4 + $0xa0] sm:$0xff] 0.0
            %1044 = vst [vmem:[#allocation4 + $0xa8] sm:$0xff] 0.0
            %1045 = vst [vmem:[#allocation4 + $0xb0] sm:$0xff] 0.0
            %1046 = vst [vmem:[#allocation4 + $0xb8] sm:$0xff] 0.0
            %1047 = vst [vmem:[#allocation4 + $0xc0] sm:$0xff] 0.0
            %1048 = vst [vmem:[#allocation4 + $0xc8] sm:$0xff] 0.0
            %1049 = vst [vmem:[#allocation4 + $0xd0] sm:$0xff] 0.0
            %1050 = vst [vmem:[#allocation4 + $0xd8] sm:$0xff] 0.0
            %1051 = vst [vmem:[#allocation4 + $0xe0] sm:$0xff] 0.0
            %1052 = vst [vmem:[#allocation4 + $0xe8] sm:$0xff] 0.0
            %1053 = vst [vmem:[#allocation4 + $0xf0] sm:$0xff] 0.0
            %1054 = vst [vmem:[#allocation4 + $0xf8] sm:$0xff] 0.0
            %1055 = vst [vmem:[#allocation4 + $0x100] sm:$0xff] 0.0
            %1056 = vst [vmem:[#allocation4 + $0x108] sm:$0xff] 0.0
            %1057 = vst [vmem:[#allocation4 + $0x110] sm:$0xff] 0.0
            %1058 = vst [vmem:[#allocation4 + $0x118] sm:$0xff] 0.0
            %1059 = vst [vmem:[#allocation4 + $0x120] sm:$0xff] 0.0
            %1060 = vst [vmem:[#allocation4 + $0x128] sm:$0xff] 0.0
            %1061 = vst [vmem:[#allocation4 + $0x130] sm:$0xff] 0.0
            %1062 = vst [vmem:[#allocation4 + $0x138] sm:$0xff] 0.0
            %1063 = vst [vmem:[#allocation4 + $0x140] sm:$0xff] 0.0
            %1064 = vst [vmem:[#allocation4 + $0x148] sm:$0xff] 0.0
            %1065 = vst [vmem:[#allocation4 + $0x150] sm:$0xff] 0.0
            %1066 = vst [vmem:[#allocation4 + $0x158] sm:$0xff] 0.0
            %1067 = vst [vmem:[#allocation4 + $0x160] sm:$0xff] 0.0
            %1068 = vst [vmem:[#allocation4 + $0x168] sm:$0xff] 0.0
            %1069 = vst [vmem:[#allocation4 + $0x170] sm:$0xff] 0.0
            %1070 = vst [vmem:[#allocation4 + $0x178] sm:$0xff] 0.0
            %1071 = vst [vmem:[#allocation4 + $0x180] sm:$0xff] 0.0
            %1072 = vst [vmem:[#allocation4 + $0x188] sm:$0xff] 0.0
            %1073 = vst [vmem:[#allocation4 + $0x190] sm:$0xff] 0.0
            %1074 = vst [vmem:[#allocation4 + $0x198] sm:$0xff] 0.0
            %1075 = vst [vmem:[#allocation4 + $0x1a0] sm:$0xff] 0.0
            %1076 = vst [vmem:[#allocation4 + $0x1a8] sm:$0xff] 0.0
            %1077 = vst [vmem:[#allocation4 + $0x1b0] sm:$0xff] 0.0
            %1078 = vst [vmem:[#allocation4 + $0x1b8] sm:$0xff] 0.0
            %1079 = vst [vmem:[#allocation4 + $0x1c0] sm:$0xff] 0.0
            %1080 = vst [vmem:[#allocation4 + $0x1c8] sm:$0xff] 0.0
            %1081 = vst [vmem:[#allocation4 + $0x1d0] sm:$0xff] 0.0
            %1082 = vst [vmem:[#allocation4 + $0x1d8] sm:$0xff] 0.0
            %1083 = vst [vmem:[#allocation4 + $0x1e0] sm:$0xff] 0.0
            %1084 = vst [vmem:[#allocation4 + $0x1e8] sm:$0xff] 0.0
            %1085 = vst [vmem:[#allocation4 + $0x1f0] sm:$0xff] 0.0
            %1086 = vst [vmem:[#allocation4 + $0x1f8] sm:$0xff] 0.0
          $region72: #{tpu_custom_call.1} parent=63 // pred_fallthru
            _
          %v1087 = vld [vmem:[#allocation4] sm:$0xff]
          %v1088 = vld [vmem:[#allocation4 + $0x8] sm:$0xff]
          %v1089 = vld [vmem:[#allocation4 + $0x10] sm:$0xff]
          %v1090 = vld [vmem:[#allocation4 + $0x18] sm:$0xff]
          %v1091 = vld [vmem:[#allocation4 + $0x20] sm:$0xff]
          %v1092 = vld [vmem:[#allocation4 + $0x28] sm:$0xff]
          %v1093 = vld [vmem:[#allocation4 + $0x30] sm:$0xff]
          %v1094 = vld [vmem:[#allocation4 + $0x38] sm:$0xff]
          %v1095 = vld [vmem:[#allocation4 + $0x40] sm:$0xff]
          %v1096 = vld [vmem:[#allocation4 + $0x48] sm:$0xff]
          %v1097 = vld [vmem:[#allocation4 + $0x50] sm:$0xff]
          %v1098 = vld [vmem:[#allocation4 + $0x58] sm:$0xff]
          %v1099 = vld [vmem:[#allocation4 + $0x60] sm:$0xff]
          %v1100 = vld [vmem:[#allocation4 + $0x68] sm:$0xff]
          %v1101 = vld [vmem:[#allocation4 + $0x70] sm:$0xff]
          %v1102 = vld [vmem:[#allocation4 + $0x78] sm:$0xff]
          %v1103 = vld [vmem:[#allocation4 + $0x80] sm:$0xff]
          %v1104 = vld [vmem:[#allocation4 + $0x88] sm:$0xff]
          %v1105 = vld [vmem:[#allocation4 + $0x90] sm:$0xff]
          %v1106 = vld [vmem:[#allocation4 + $0x98] sm:$0xff]
          %v1107 = vld [vmem:[#allocation4 + $0xa0] sm:$0xff]
          %v1108 = vld [vmem:[#allocation4 + $0xa8] sm:$0xff]
          %v1109 = vld [vmem:[#allocation4 + $0xb0] sm:$0xff]
          %v1110 = vld [vmem:[#allocation4 + $0xb8] sm:$0xff]
          %v1111 = vld [vmem:[#allocation4 + $0xc0] sm:$0xff]
          %v1112 = vld [vmem:[#allocation4 + $0xc8] sm:$0xff]
          %v1113 = vld [vmem:[#allocation4 + $0xd0] sm:$0xff]
          %v1114 = vld [vmem:[#allocation4 + $0xd8] sm:$0xff]
          %v1115 = vld [vmem:[#allocation4 + $0xe0] sm:$0xff]
          %v1116 = vld [vmem:[#allocation4 + $0xe8] sm:$0xff]
          %v1117 = vld [vmem:[#allocation4 + $0xf0] sm:$0xff]
          %v1118 = vld [vmem:[#allocation4 + $0xf8] sm:$0xff]
          %v1119 = vld [vmem:[#allocation4 + $0x100] sm:$0xff]
          %v1120 = vld [vmem:[#allocation4 + $0x108] sm:$0xff]
          %v1121 = vld [vmem:[#allocation4 + $0x110] sm:$0xff]
          %v1122 = vld [vmem:[#allocation4 + $0x118] sm:$0xff]
          %v1123 = vld [vmem:[#allocation4 + $0x120] sm:$0xff]
          %v1124 = vld [vmem:[#allocation4 + $0x128] sm:$0xff]
          %v1125 = vld [vmem:[#allocation4 + $0x130] sm:$0xff]
          %v1126 = vld [vmem:[#allocation4 + $0x138] sm:$0xff]
          %v1127 = vld [vmem:[#allocation4 + $0x140] sm:$0xff]
          %v1128 = vld [vmem:[#allocation4 + $0x148] sm:$0xff]
          %v1129 = vld [vmem:[#allocation4 + $0x150] sm:$0xff]
          %v1130 = vld [vmem:[#allocation4 + $0x158] sm:$0xff]
          %v1131 = vld [vmem:[#allocation4 + $0x160] sm:$0xff]
          %v1132 = vld [vmem:[#allocation4 + $0x168] sm:$0xff]
          %v1133 = vld [vmem:[#allocation4 + $0x170] sm:$0xff]
          %v1134 = vld [vmem:[#allocation4 + $0x178] sm:$0xff]
          %v1135 = vld [vmem:[#allocation4 + $0x180] sm:$0xff]
          %v1136 = vld [vmem:[#allocation4 + $0x188] sm:$0xff]
          %v1137 = vld [vmem:[#allocation4 + $0x190] sm:$0xff]
          %v1138 = vld [vmem:[#allocation4 + $0x198] sm:$0xff]
          %v1139 = vld [vmem:[#allocation4 + $0x1a0] sm:$0xff]
          %v1140 = vld [vmem:[#allocation4 + $0x1a8] sm:$0xff]
          %v1141 = vld [vmem:[#allocation4 + $0x1b0] sm:$0xff]
          %v1142 = vld [vmem:[#allocation4 + $0x1b8] sm:$0xff]
          %v1143 = vld [vmem:[#allocation4 + $0x1c0] sm:$0xff]
          %v1144 = vld [vmem:[#allocation4 + $0x1c8] sm:$0xff]
          %v1145 = vld [vmem:[#allocation4 + $0x1d0] sm:$0xff]
          %v1146 = vld [vmem:[#allocation4 + $0x1d8] sm:$0xff]
          %v1147 = vld [vmem:[#allocation4 + $0x1e0] sm:$0xff]
          %v1148 = vld [vmem:[#allocation4 + $0x1e8] sm:$0xff]
          %v1149 = vld [vmem:[#allocation4 + $0x1f0] sm:$0xff]
          %v1150 = vld [vmem:[#allocation4 + $0x1f8] sm:$0xff]
          %v1151 = vld [vmem:[#allocation6] sm:$0xff]
          %v1152 = vld [vmem:[#allocation6 + $0x8] sm:$0xff]
          %v1153 = vld [vmem:[#allocation6 + $0x10] sm:$0xff]
          %v1154 = vld [vmem:[#allocation6 + $0x18] sm:$0xff]
          %v1155 = vld [vmem:[#allocation6 + $0x20] sm:$0xff]
          %v1156 = vld [vmem:[#allocation6 + $0x28] sm:$0xff]
          %v1157 = vld [vmem:[#allocation6 + $0x30] sm:$0xff]
          %v1158 = vld [vmem:[#allocation6 + $0x38] sm:$0xff]
          %v1159 = vld [vmem:[#allocation6 + $0x40] sm:$0xff]
          %v1160 = vld [vmem:[#allocation6 + $0x48] sm:$0xff]
          %v1161 = vld [vmem:[#allocation6 + $0x50] sm:$0xff]
          %v1162 = vld [vmem:[#allocation6 + $0x58] sm:$0xff]
          %v1163 = vld [vmem:[#allocation6 + $0x60] sm:$0xff]
          %v1164 = vld [vmem:[#allocation6 + $0x68] sm:$0xff]
          %v1165 = vld [vmem:[#allocation6 + $0x70] sm:$0xff]
          %v1166 = vld [vmem:[#allocation6 + $0x78] sm:$0xff]
          %v1167 = vld [vmem:[#allocation6 + $0x80] sm:$0xff]
          %v1168 = vld [vmem:[#allocation6 + $0x88] sm:$0xff]
          %v1169 = vld [vmem:[#allocation6 + $0x90] sm:$0xff]
          %v1170 = vld [vmem:[#allocation6 + $0x98] sm:$0xff]
          %v1171 = vld [vmem:[#allocation6 + $0xa0] sm:$0xff]
          %v1172 = vld [vmem:[#allocation6 + $0xa8] sm:$0xff]
          %v1173 = vld [vmem:[#allocation6 + $0xb0] sm:$0xff]
          %v1174 = vld [vmem:[#allocation6 + $0xb8] sm:$0xff]
          %v1175 = vld [vmem:[#allocation6 + $0xc0] sm:$0xff]
          %v1176 = vld [vmem:[#allocation6 + $0xc8] sm:$0xff]
          %v1177 = vld [vmem:[#allocation6 + $0xd0] sm:$0xff]
          %v1178 = vld [vmem:[#allocation6 + $0xd8] sm:$0xff]
          %v1179 = vld [vmem:[#allocation6 + $0xe0] sm:$0xff]
          %v1180 = vld [vmem:[#allocation6 + $0xe8] sm:$0xff]
          %v1181 = vld [vmem:[#allocation6 + $0xf0] sm:$0xff]
          %v1182 = vld [vmem:[#allocation6 + $0xf8] sm:$0xff]
          %v1183 = vld [vmem:[#allocation6 + $0x100] sm:$0xff]
          %v1184 = vld [vmem:[#allocation6 + $0x108] sm:$0xff]
          %v1185 = vld [vmem:[#allocation6 + $0x110] sm:$0xff]
          %v1186 = vld [vmem:[#allocation6 + $0x118] sm:$0xff]
          %v1187 = vld [vmem:[#allocation6 + $0x120] sm:$0xff]
          %v1188 = vld [vmem:[#allocation6 + $0x128] sm:$0xff]
          %v1189 = vld [vmem:[#allocation6 + $0x130] sm:$0xff]
          %v1190 = vld [vmem:[#allocation6 + $0x138] sm:$0xff]
          %v1191 = vld [vmem:[#allocation6 + $0x140] sm:$0xff]
          %v1192 = vld [vmem:[#allocation6 + $0x148] sm:$0xff]
          %v1193 = vld [vmem:[#allocation6 + $0x150] sm:$0xff]
          %v1194 = vld [vmem:[#allocation6 + $0x158] sm:$0xff]
          %v1195 = vld [vmem:[#allocation6 + $0x160] sm:$0xff]
          %v1196 = vld [vmem:[#allocation6 + $0x168] sm:$0xff]
          %v1197 = vld [vmem:[#allocation6 + $0x170] sm:$0xff]
          %v1198 = vld [vmem:[#allocation6 + $0x178] sm:$0xff]
          %v1199 = vld [vmem:[#allocation6 + $0x180] sm:$0xff]
          %v1200 = vld [vmem:[#allocation6 + $0x188] sm:$0xff]
          %v1201 = vld [vmem:[#allocation6 + $0x190] sm:$0xff]
          %v1202 = vld [vmem:[#allocation6 + $0x198] sm:$0xff]
          %v1203 = vld [vmem:[#allocation6 + $0x1a0] sm:$0xff]
          %v1204 = vld [vmem:[#allocation6 + $0x1a8] sm:$0xff]
          %v1205 = vld [vmem:[#allocation6 + $0x1b0] sm:$0xff]
          %v1206 = vld [vmem:[#allocation6 + $0x1b8] sm:$0xff]
          %v1207 = vld [vmem:[#allocation6 + $0x1c0] sm:$0xff]
          %v1208 = vld [vmem:[#allocation6 + $0x1c8] sm:$0xff]
          %v1209 = vld [vmem:[#allocation6 + $0x1d0] sm:$0xff]
          %v1210 = vld [vmem:[#allocation6 + $0x1d8] sm:$0xff]
          %v1211 = vld [vmem:[#allocation6 + $0x1e0] sm:$0xff]
          %v1212 = vld [vmem:[#allocation6 + $0x1e8] sm:$0xff]
          %v1213 = vld [vmem:[#allocation6 + $0x1f0] sm:$0xff]
          %v1214 = vld [vmem:[#allocation6 + $0x1f8] sm:$0xff]
          %v1215 = vld [vmem:[#allocation6 + $0x200] sm:$0xff]
          %v1216 = vld [vmem:[#allocation6 + $0x208] sm:$0xff]
          %v1217 = vld [vmem:[#allocation6 + $0x210] sm:$0xff]
          %v1218 = vld [vmem:[#allocation6 + $0x218] sm:$0xff]
          %v1219 = vld [vmem:[#allocation6 + $0x220] sm:$0xff]
          %v1220 = vld [vmem:[#allocation6 + $0x228] sm:$0xff]
          %v1221 = vld [vmem:[#allocation6 + $0x230] sm:$0xff]
          %v1222 = vld [vmem:[#allocation6 + $0x238] sm:$0xff]
          %v1223 = vld [vmem:[#allocation6 + $0x240] sm:$0xff]
          %v1224 = vld [vmem:[#allocation6 + $0x248] sm:$0xff]
          %v1225 = vld [vmem:[#allocation6 + $0x250] sm:$0xff]
          %v1226 = vld [vmem:[#allocation6 + $0x258] sm:$0xff]
          %v1227 = vld [vmem:[#allocation6 + $0x260] sm:$0xff]
          %v1228 = vld [vmem:[#allocation6 + $0x268] sm:$0xff]
          %v1229 = vld [vmem:[#allocation6 + $0x270] sm:$0xff]
          %v1230 = vld [vmem:[#allocation6 + $0x278] sm:$0xff]
          %v1231 = vld [vmem:[#allocation6 + $0x280] sm:$0xff]
          %v1232 = vld [vmem:[#allocation6 + $0x288] sm:$0xff]
          %v1233 = vld [vmem:[#allocation6 + $0x290] sm:$0xff]
          %v1234 = vld [vmem:[#allocation6 + $0x298] sm:$0xff]
          %v1235 = vld [vmem:[#allocation6 + $0x2a0] sm:$0xff]
          %v1236 = vld [vmem:[#allocation6 + $0x2a8] sm:$0xff]
          %v1237 = vld [vmem:[#allocation6 + $0x2b0] sm:$0xff]
          %v1238 = vld [vmem:[#allocation6 + $0x2b8] sm:$0xff]
          %v1239 = vld [vmem:[#allocation6 + $0x2c0] sm:$0xff]
          %v1240 = vld [vmem:[#allocation6 + $0x2c8] sm:$0xff]
          %v1241 = vld [vmem:[#allocation6 + $0x2d0] sm:$0xff]
          %v1242 = vld [vmem:[#allocation6 + $0x2d8] sm:$0xff]
          %v1243 = vld [vmem:[#allocation6 + $0x2e0] sm:$0xff]
          %v1244 = vld [vmem:[#allocation6 + $0x2e8] sm:$0xff]
          %v1245 = vld [vmem:[#allocation6 + $0x2f0] sm:$0xff]
          %v1246 = vld [vmem:[#allocation6 + $0x2f8] sm:$0xff]
          %v1247 = vld [vmem:[#allocation6 + $0x300] sm:$0xff]
          %v1248 = vld [vmem:[#allocation6 + $0x308] sm:$0xff]
          %v1249 = vld [vmem:[#allocation6 + $0x310] sm:$0xff]
          %v1250 = vld [vmem:[#allocation6 + $0x318] sm:$0xff]
          %v1251 = vld [vmem:[#allocation6 + $0x320] sm:$0xff]
          %v1252 = vld [vmem:[#allocation6 + $0x328] sm:$0xff]
          %v1253 = vld [vmem:[#allocation6 + $0x330] sm:$0xff]
          %v1254 = vld [vmem:[#allocation6 + $0x338] sm:$0xff]
          %v1255 = vld [vmem:[#allocation6 + $0x340] sm:$0xff]
          %v1256 = vld [vmem:[#allocation6 + $0x348] sm:$0xff]
          %v1257 = vld [vmem:[#allocation6 + $0x350] sm:$0xff]
          %v1258 = vld [vmem:[#allocation6 + $0x358] sm:$0xff]
          %v1259 = vld [vmem:[#allocation6 + $0x360] sm:$0xff]
          %v1260 = vld [vmem:[#allocation6 + $0x368] sm:$0xff]
          %v1261 = vld [vmem:[#allocation6 + $0x370] sm:$0xff]
          %v1262 = vld [vmem:[#allocation6 + $0x378] sm:$0xff]
          %v1263 = vld [vmem:[#allocation6 + $0x380] sm:$0xff]
          %v1264 = vld [vmem:[#allocation6 + $0x388] sm:$0xff]
          %v1265 = vld [vmem:[#allocation6 + $0x390] sm:$0xff]
          %v1266 = vld [vmem:[#allocation6 + $0x398] sm:$0xff]
          %v1267 = vld [vmem:[#allocation6 + $0x3a0] sm:$0xff]
          %v1268 = vld [vmem:[#allocation6 + $0x3a8] sm:$0xff]
          %v1269 = vld [vmem:[#allocation6 + $0x3b0] sm:$0xff]
          %v1270 = vld [vmem:[#allocation6 + $0x3b8] sm:$0xff]
          %v1271 = vld [vmem:[#allocation6 + $0x3c0] sm:$0xff]
          %v1272 = vld [vmem:[#allocation6 + $0x3c8] sm:$0xff]
          %v1273 = vld [vmem:[#allocation6 + $0x3d0] sm:$0xff]
          %v1274 = vld [vmem:[#allocation6 + $0x3d8] sm:$0xff]
          %v1275 = vld [vmem:[#allocation6 + $0x3e0] sm:$0xff]
          %v1276 = vld [vmem:[#allocation6 + $0x3e8] sm:$0xff]
          %v1277 = vld [vmem:[#allocation6 + $0x3f0] sm:$0xff]
          %v1278 = vld [vmem:[#allocation6 + $0x3f8] sm:$0xff]
          %s1279 = sshra.s32 %s328, 4
          %s1280 = sand.u32 %s328, 15
          %s1281 = smul.addr %s1279, 8
          %s1282 = scalar_lea.vmem [#allocation2], %s1281
          %v1283 = vld [vmem:[%s1282] sm:$0xff]
          %v1284 = vld [vmem:[%s1282 + $0x8] sm:$0xff]
          %v1285 = vld [vmem:[%s1282 + $0x10] sm:$0xff]
          %v1286 = vld [vmem:[%s1282 + $0x18] sm:$0xff]
          %v1287 = vld [vmem:[%s1282 + $0x20] sm:$0xff]
          %v1288 = vld [vmem:[%s1282 + $0x28] sm:$0xff]
          %v1289 = vld [vmem:[%s1282 + $0x30] sm:$0xff]
          %v1290 = vld [vmem:[%s1282 + $0x38] sm:$0xff]
          %v1291 = vld [vmem:[%s1282 + $0x40] sm:$0xff]
          %v1292 = vld [vmem:[%s1282 + $0x48] sm:$0xff]
          %v1293 = vld [vmem:[%s1282 + $0x50] sm:$0xff]
          %v1294 = vld [vmem:[%s1282 + $0x58] sm:$0xff]
          %v1295 = vld [vmem:[%s1282 + $0x60] sm:$0xff]
          %v1296 = vld [vmem:[%s1282 + $0x68] sm:$0xff]
          %v1297 = vld [vmem:[%s1282 + $0x70] sm:$0xff]
          %v1298 = vld [vmem:[%s1282 + $0x78] sm:$0xff]
          %v1299 = vld [vmem:[%s1282 + $0x80] sm:$0xff]
          %v1300 = vld [vmem:[%s1282 + $0x88] sm:$0xff]
          %v1301 = vld [vmem:[%s1282 + $0x90] sm:$0xff]
          %v1302 = vld [vmem:[%s1282 + $0x98] sm:$0xff]
          %v1303 = vld [vmem:[%s1282 + $0xa0] sm:$0xff]
          %v1304 = vld [vmem:[%s1282 + $0xa8] sm:$0xff]
          %v1305 = vld [vmem:[%s1282 + $0xb0] sm:$0xff]
          %v1306 = vld [vmem:[%s1282 + $0xb8] sm:$0xff]
          %v1307 = vld [vmem:[%s1282 + $0xc0] sm:$0xff]
          %v1308 = vld [vmem:[%s1282 + $0xc8] sm:$0xff]
          %v1309 = vld [vmem:[%s1282 + $0xd0] sm:$0xff]
          %v1310 = vld [vmem:[%s1282 + $0xd8] sm:$0xff]
          %v1311 = vld [vmem:[%s1282 + $0xe0] sm:$0xff]
          %v1312 = vld [vmem:[%s1282 + $0xe8] sm:$0xff]
          %v1313 = vld [vmem:[%s1282 + $0xf0] sm:$0xff]
          %v1314 = vld [vmem:[%s1282 + $0xf8] sm:$0xff]
          %v1443 = vunpack.c.l.b16 %v1151
          %v1444 = vunpack.c.h.b16 %v1151
          %v1445 = vunpack.c.l.b16 %v1152
          %v1446 = vunpack.c.h.b16 %v1152
          %v1447 = vunpack.c.l.b16 %v1153
          %v1448 = vunpack.c.h.b16 %v1153
          %v1449 = vunpack.c.l.b16 %v1154
          %v1450 = vunpack.c.h.b16 %v1154
          %v1451 = vunpack.c.l.b16 %v1155
          %v1452 = vunpack.c.h.b16 %v1155
          %v1453 = vunpack.c.l.b16 %v1156
          %v1454 = vunpack.c.h.b16 %v1156
          %v1455 = vunpack.c.l.b16 %v1157
          %v1456 = vunpack.c.h.b16 %v1157
          %v1457 = vunpack.c.l.b16 %v1158
          %v1458 = vunpack.c.h.b16 %v1158
          %v1459 = vunpack.c.l.b16 %v1159
          %v1460 = vunpack.c.h.b16 %v1159
          %v1461 = vunpack.c.l.b16 %v1160
          %v1462 = vunpack.c.h.b16 %v1160
          %v1463 = vunpack.c.l.b16 %v1161
          %v1464 = vunpack.c.h.b16 %v1161
          %v1465 = vunpack.c.l.b16 %v1162
          %v1466 = vunpack.c.h.b16 %v1162
          %v1467 = vunpack.c.l.b16 %v1163
          %v1468 = vunpack.c.h.b16 %v1163
          %v1469 = vunpack.c.l.b16 %v1164
          %v1470 = vunpack.c.h.b16 %v1164
          %v1471 = vunpack.c.l.b16 %v1165
          %v1472 = vunpack.c.h.b16 %v1165
          %v1473 = vunpack.c.l.b16 %v1166
          %v1474 = vunpack.c.h.b16 %v1166
          %v1475 = vunpack.c.l.b16 %v1167
          %v1476 = vunpack.c.h.b16 %v1167
          %v1477 = vunpack.c.l.b16 %v1168
          %v1478 = vunpack.c.h.b16 %v1168
          %v1479 = vunpack.c.l.b16 %v1169
          %v1480 = vunpack.c.h.b16 %v1169
          %v1481 = vunpack.c.l.b16 %v1170
          %v1482 = vunpack.c.h.b16 %v1170
          %v1483 = vunpack.c.l.b16 %v1171
          %v1484 = vunpack.c.h.b16 %v1171
          %v1485 = vunpack.c.l.b16 %v1172
          %v1486 = vunpack.c.h.b16 %v1172
          %v1487 = vunpack.c.l.b16 %v1173
          %v1488 = vunpack.c.h.b16 %v1173
          %v1489 = vunpack.c.l.b16 %v1174
          %v1490 = vunpack.c.h.b16 %v1174
          %v1491 = vunpack.c.l.b16 %v1175
          %v1492 = vunpack.c.h.b16 %v1175
          %v1493 = vunpack.c.l.b16 %v1176
          %v1494 = vunpack.c.h.b16 %v1176
          %v1495 = vunpack.c.l.b16 %v1177
          %v1496 = vunpack.c.h.b16 %v1177
          %v1497 = vunpack.c.l.b16 %v1178
          %v1498 = vunpack.c.h.b16 %v1178
          %v1499 = vunpack.c.l.b16 %v1179
          %v1500 = vunpack.c.h.b16 %v1179
          %v1501 = vunpack.c.l.b16 %v1180
          %v1502 = vunpack.c.h.b16 %v1180
          %v1503 = vunpack.c.l.b16 %v1181
          %v1504 = vunpack.c.h.b16 %v1181
          %v1505 = vunpack.c.l.b16 %v1182
          %v1506 = vunpack.c.h.b16 %v1182
          %v1507 = vunpack.c.l.b16 %v1183
          %v1508 = vunpack.c.h.b16 %v1183
          %v1509 = vunpack.c.l.b16 %v1184
          %v1510 = vunpack.c.h.b16 %v1184
          %v1511 = vunpack.c.l.b16 %v1185
          %v1512 = vunpack.c.h.b16 %v1185
          %v1513 = vunpack.c.l.b16 %v1186
          %v1514 = vunpack.c.h.b16 %v1186
          %v1515 = vunpack.c.l.b16 %v1187
          %v1516 = vunpack.c.h.b16 %v1187
          %v1517 = vunpack.c.l.b16 %v1188
          %v1518 = vunpack.c.h.b16 %v1188
          %v1519 = vunpack.c.l.b16 %v1189
          %v1520 = vunpack.c.h.b16 %v1189
          %v1521 = vunpack.c.l.b16 %v1190
          %v1522 = vunpack.c.h.b16 %v1190
          %v1523 = vunpack.c.l.b16 %v1191
          %v1524 = vunpack.c.h.b16 %v1191
          %v1525 = vunpack.c.l.b16 %v1192
          %v1526 = vunpack.c.h.b16 %v1192
          %v1527 = vunpack.c.l.b16 %v1193
          %v1528 = vunpack.c.h.b16 %v1193
          %v1529 = vunpack.c.l.b16 %v1194
          %v1530 = vunpack.c.h.b16 %v1194
          %v1531 = vunpack.c.l.b16 %v1195
          %v1532 = vunpack.c.h.b16 %v1195
          %v1533 = vunpack.c.l.b16 %v1196
          %v1534 = vunpack.c.h.b16 %v1196
          %v1535 = vunpack.c.l.b16 %v1197
          %v1536 = vunpack.c.h.b16 %v1197
          %v1537 = vunpack.c.l.b16 %v1198
          %v1538 = vunpack.c.h.b16 %v1198
          %v1539 = vunpack.c.l.b16 %v1199
          %v1540 = vunpack.c.h.b16 %v1199
          %v1541 = vunpack.c.l.b16 %v1200
          %v1542 = vunpack.c.h.b16 %v1200
          %v1543 = vunpack.c.l.b16 %v1201
          %v1544 = vunpack.c.h.b16 %v1201
          %v1545 = vunpack.c.l.b16 %v1202
          %v1546 = vunpack.c.h.b16 %v1202
          %v1547 = vunpack.c.l.b16 %v1203
          %v1548 = vunpack.c.h.b16 %v1203
          %v1549 = vunpack.c.l.b16 %v1204
          %v1550 = vunpack.c.h.b16 %v1204
          %v1551 = vunpack.c.l.b16 %v1205
          %v1552 = vunpack.c.h.b16 %v1205
          %v1553 = vunpack.c.l.b16 %v1206
          %v1554 = vunpack.c.h.b16 %v1206
          %v1555 = vunpack.c.l.b16 %v1207
          %v1556 = vunpack.c.h.b16 %v1207
          %v1557 = vunpack.c.l.b16 %v1208
          %v1558 = vunpack.c.h.b16 %v1208
          %v1559 = vunpack.c.l.b16 %v1209
          %v1560 = vunpack.c.h.b16 %v1209
          %v1561 = vunpack.c.l.b16 %v1210
          %v1562 = vunpack.c.h.b16 %v1210
          %v1563 = vunpack.c.l.b16 %v1211
          %v1564 = vunpack.c.h.b16 %v1211
          %v1565 = vunpack.c.l.b16 %v1212
          %v1566 = vunpack.c.h.b16 %v1212
          %v1567 = vunpack.c.l.b16 %v1213
          %v1568 = vunpack.c.h.b16 %v1213
          %v1569 = vunpack.c.l.b16 %v1214
          %v1570 = vunpack.c.h.b16 %v1214
          %v1571 = vunpack.c.l.b16 %v1215
          %v1572 = vunpack.c.h.b16 %v1215
          %v1573 = vunpack.c.l.b16 %v1216
          %v1574 = vunpack.c.h.b16 %v1216
          %v1575 = vunpack.c.l.b16 %v1217
          %v1576 = vunpack.c.h.b16 %v1217
          %v1577 = vunpack.c.l.b16 %v1218
          %v1578 = vunpack.c.h.b16 %v1218
          %v1579 = vunpack.c.l.b16 %v1219
          %v1580 = vunpack.c.h.b16 %v1219
          %v1581 = vunpack.c.l.b16 %v1220
          %v1582 = vunpack.c.h.b16 %v1220
          %v1583 = vunpack.c.l.b16 %v1221
          %v1584 = vunpack.c.h.b16 %v1221
          %v1585 = vunpack.c.l.b16 %v1222
          %v1586 = vunpack.c.h.b16 %v1222
          %v1587 = vunpack.c.l.b16 %v1223
          %v1588 = vunpack.c.h.b16 %v1223
          %v1589 = vunpack.c.l.b16 %v1224
          %v1590 = vunpack.c.h.b16 %v1224
          %v1591 = vunpack.c.l.b16 %v1225
          %v1592 = vunpack.c.h.b16 %v1225
          %v1593 = vunpack.c.l.b16 %v1226
          %v1594 = vunpack.c.h.b16 %v1226
          %v1595 = vunpack.c.l.b16 %v1227
          %v1596 = vunpack.c.h.b16 %v1227
          %v1597 = vunpack.c.l.b16 %v1228
          %v1598 = vunpack.c.h.b16 %v1228
          %v1599 = vunpack.c.l.b16 %v1229
          %v1600 = vunpack.c.h.b16 %v1229
          %v1601 = vunpack.c.l.b16 %v1230
          %v1602 = vunpack.c.h.b16 %v1230
          %v1603 = vunpack.c.l.b16 %v1231
          %v1604 = vunpack.c.h.b16 %v1231
          %v1605 = vunpack.c.l.b16 %v1232
          %v1606 = vunpack.c.h.b16 %v1232
          %v1607 = vunpack.c.l.b16 %v1233
          %v1608 = vunpack.c.h.b16 %v1233
          %v1609 = vunpack.c.l.b16 %v1234
          %v1610 = vunpack.c.h.b16 %v1234
          %v1611 = vunpack.c.l.b16 %v1235
          %v1612 = vunpack.c.h.b16 %v1235
          %v1613 = vunpack.c.l.b16 %v1236
          %v1614 = vunpack.c.h.b16 %v1236
          %v1615 = vunpack.c.l.b16 %v1237
          %v1616 = vunpack.c.h.b16 %v1237
          %v1617 = vunpack.c.l.b16 %v1238
          %v1618 = vunpack.c.h.b16 %v1238
          %v1619 = vunpack.c.l.b16 %v1239
          %v1620 = vunpack.c.h.b16 %v1239
          %v1621 = vunpack.c.l.b16 %v1240
          %v1622 = vunpack.c.h.b16 %v1240
          %v1623 = vunpack.c.l.b16 %v1241
          %v1624 = vunpack.c.h.b16 %v1241
          %v1625 = vunpack.c.l.b16 %v1242
          %v1626 = vunpack.c.h.b16 %v1242
          %v1627 = vunpack.c.l.b16 %v1243
          %v1628 = vunpack.c.h.b16 %v1243
          %v1629 = vunpack.c.l.b16 %v1244
          %v1630 = vunpack.c.h.b16 %v1244
          %v1631 = vunpack.c.l.b16 %v1245
          %v1632 = vunpack.c.h.b16 %v1245
          %v1633 = vunpack.c.l.b16 %v1246
          %v1634 = vunpack.c.h.b16 %v1246
          %v1635 = vunpack.c.l.b16 %v1247
          %v1636 = vunpack.c.h.b16 %v1247
          %v1637 = vunpack.c.l.b16 %v1248
          %v1638 = vunpack.c.h.b16 %v1248
          %v1639 = vunpack.c.l.b16 %v1249
          %v1640 = vunpack.c.h.b16 %v1249
          %v1641 = vunpack.c.l.b16 %v1250
          %v1642 = vunpack.c.h.b16 %v1250
          %v1643 = vunpack.c.l.b16 %v1251
          %v1644 = vunpack.c.h.b16 %v1251
          %v1645 = vunpack.c.l.b16 %v1252
          %v1646 = vunpack.c.h.b16 %v1252
          %v1647 = vunpack.c.l.b16 %v1253
          %v1648 = vunpack.c.h.b16 %v1253
          %v1649 = vunpack.c.l.b16 %v1254
          %v1650 = vunpack.c.h.b16 %v1254
          %v1651 = vunpack.c.l.b16 %v1255
          %v1652 = vunpack.c.h.b16 %v1255
          %v1653 = vunpack.c.l.b16 %v1256
          %v1654 = vunpack.c.h.b16 %v1256
          %v1655 = vunpack.c.l.b16 %v1257
          %v1656 = vunpack.c.h.b16 %v1257
          %v1657 = vunpack.c.l.b16 %v1258
          %v1658 = vunpack.c.h.b16 %v1258
          %v1659 = vunpack.c.l.b16 %v1259
          %v1660 = vunpack.c.h.b16 %v1259
          %v1661 = vunpack.c.l.b16 %v1260
          %v1662 = vunpack.c.h.b16 %v1260
          %v1663 = vunpack.c.l.b16 %v1261
          %v1664 = vunpack.c.h.b16 %v1261
          %v1665 = vunpack.c.l.b16 %v1262
          %v1666 = vunpack.c.h.b16 %v1262
          %v1667 = vunpack.c.l.b16 %v1263
          %v1668 = vunpack.c.h.b16 %v1263
          %v1669 = vunpack.c.l.b16 %v1264
          %v1670 = vunpack.c.h.b16 %v1264
          %v1671 = vunpack.c.l.b16 %v1265
          %v1672 = vunpack.c.h.b16 %v1265
          %v1673 = vunpack.c.l.b16 %v1266
          %v1674 = vunpack.c.h.b16 %v1266
          %v1675 = vunpack.c.l.b16 %v1267
          %v1676 = vunpack.c.h.b16 %v1267
          %v1677 = vunpack.c.l.b16 %v1268
          %v1678 = vunpack.c.h.b16 %v1268
          %v1679 = vunpack.c.l.b16 %v1269
          %v1680 = vunpack.c.h.b16 %v1269
          %v1681 = vunpack.c.l.b16 %v1270
          %v1682 = vunpack.c.h.b16 %v1270
          %v1683 = vunpack.c.l.b16 %v1271
          %v1684 = vunpack.c.h.b16 %v1271
          %v1685 = vunpack.c.l.b16 %v1272
          %v1686 = vunpack.c.h.b16 %v1272
          %v1687 = vunpack.c.l.b16 %v1273
          %v1688 = vunpack.c.h.b16 %v1273
          %v1689 = vunpack.c.l.b16 %v1274
          %v1690 = vunpack.c.h.b16 %v1274
          %v1691 = vunpack.c.l.b16 %v1275
          %v1692 = vunpack.c.h.b16 %v1275
          %v1693 = vunpack.c.l.b16 %v1276
          %v1694 = vunpack.c.h.b16 %v1276
          %v1695 = vunpack.c.l.b16 %v1277
          %v1696 = vunpack.c.h.b16 %v1277
          %v1697 = vunpack.c.l.b16 %v1278
          %v1698 = vunpack.c.h.b16 %v1278
          %v1699 = vpack.c.b16 %v1447, %v1443
          %v1700 = vpack.c.b16 %v1448, %v1444
          %v1701 = vpack.c.b16 %v1449, %v1445
          %v1702 = vpack.c.b16 %v1450, %v1446
          %v1703 = vpack.c.b16 %v1455, %v1451
          %v1704 = vpack.c.b16 %v1456, %v1452
          %v1705 = vpack.c.b16 %v1457, %v1453
          %v1706 = vpack.c.b16 %v1458, %v1454
          %v1707 = vpack.c.b16 %v1463, %v1459
          %v1708 = vpack.c.b16 %v1464, %v1460
          %v1709 = vpack.c.b16 %v1465, %v1461
          %v1710 = vpack.c.b16 %v1466, %v1462
          %v1711 = vpack.c.b16 %v1471, %v1467
          %v1712 = vpack.c.b16 %v1472, %v1468
          %v1713 = vpack.c.b16 %v1473, %v1469
          %v1714 = vpack.c.b16 %v1474, %v1470
          %v1715 = vpack.c.b16 %v1479, %v1475
          %v1716 = vpack.c.b16 %v1480, %v1476
          %v1717 = vpack.c.b16 %v1481, %v1477
          %v1718 = vpack.c.b16 %v1482, %v1478
          %v1719 = vpack.c.b16 %v1487, %v1483
          %v1720 = vpack.c.b16 %v1488, %v1484
          %v1721 = vpack.c.b16 %v1489, %v1485
          %v1722 = vpack.c.b16 %v1490, %v1486
          %v1723 = vpack.c.b16 %v1495, %v1491
          %v1724 = vpack.c.b16 %v1496, %v1492
          %v1725 = vpack.c.b16 %v1497, %v1493
          %v1726 = vpack.c.b16 %v1498, %v1494
          %v1727 = vpack.c.b16 %v1503, %v1499
          %v1728 = vpack.c.b16 %v1504, %v1500
          %v1729 = vpack.c.b16 %v1505, %v1501
          %v1730 = vpack.c.b16 %v1506, %v1502
          %v1731 = vpack.c.b16 %v1511, %v1507
          %v1732 = vpack.c.b16 %v1512, %v1508
          %v1733 = vpack.c.b16 %v1513, %v1509
          %v1734 = vpack.c.b16 %v1514, %v1510
          %v1735 = vpack.c.b16 %v1519, %v1515
          %v1736 = vpack.c.b16 %v1520, %v1516
          %v1737 = vpack.c.b16 %v1521, %v1517
          %v1738 = vpack.c.b16 %v1522, %v1518
          %v1739 = vpack.c.b16 %v1527, %v1523
          %v1740 = vpack.c.b16 %v1528, %v1524
          %v1741 = vpack.c.b16 %v1529, %v1525
          %v1742 = vpack.c.b16 %v1530, %v1526
          %v1743 = vpack.c.b16 %v1535, %v1531
          %v1744 = vpack.c.b16 %v1536, %v1532
          %v1745 = vpack.c.b16 %v1537, %v1533
          %v1746 = vpack.c.b16 %v1538, %v1534
          %v1747 = vpack.c.b16 %v1543, %v1539
          %v1748 = vpack.c.b16 %v1544, %v1540
          %v1749 = vpack.c.b16 %v1545, %v1541
          %v1750 = vpack.c.b16 %v1546, %v1542
          %v1751 = vpack.c.b16 %v1551, %v1547
          %v1752 = vpack.c.b16 %v1552, %v1548
          %v1753 = vpack.c.b16 %v1553, %v1549
          %v1754 = vpack.c.b16 %v1554, %v1550
          %v1755 = vpack.c.b16 %v1559, %v1555
          %v1756 = vpack.c.b16 %v1560, %v1556
          %v1757 = vpack.c.b16 %v1561, %v1557
          %v1758 = vpack.c.b16 %v1562, %v1558
          %v1759 = vpack.c.b16 %v1567, %v1563
          %v1760 = vpack.c.b16 %v1568, %v1564
          %v1761 = vpack.c.b16 %v1569, %v1565
          %v1762 = vpack.c.b16 %v1570, %v1566
          %v1763 = vpack.c.b16 %v1575, %v1571
          %v1764 = vpack.c.b16 %v1576, %v1572
          %v1765 = vpack.c.b16 %v1577, %v1573
          %v1766 = vpack.c.b16 %v1578, %v1574
          %v1767 = vpack.c.b16 %v1583, %v1579
          %v1768 = vpack.c.b16 %v1584, %v1580
          %v1769 = vpack.c.b16 %v1585, %v1581
          %v1770 = vpack.c.b16 %v1586, %v1582
          %v1771 = vpack.c.b16 %v1591, %v1587
          %v1772 = vpack.c.b16 %v1592, %v1588
          %v1773 = vpack.c.b16 %v1593, %v1589
          %v1774 = vpack.c.b16 %v1594, %v1590
          %v1775 = vpack.c.b16 %v1599, %v1595
          %v1776 = vpack.c.b16 %v1600, %v1596
          %v1777 = vpack.c.b16 %v1601, %v1597
          %v1778 = vpack.c.b16 %v1602, %v1598
          %v1779 = vpack.c.b16 %v1607, %v1603
          %v1780 = vpack.c.b16 %v1608, %v1604
          %v1781 = vpack.c.b16 %v1609, %v1605
          %v1782 = vpack.c.b16 %v1610, %v1606
          %v1783 = vpack.c.b16 %v1615, %v1611
          %v1784 = vpack.c.b16 %v1616, %v1612
          %v1785 = vpack.c.b16 %v1617, %v1613
          %v1786 = vpack.c.b16 %v1618, %v1614
          %v1787 = vpack.c.b16 %v1623, %v1619
          %v1788 = vpack.c.b16 %v1624, %v1620
          %v1789 = vpack.c.b16 %v1625, %v1621
          %v1790 = vpack.c.b16 %v1626, %v1622
          %v1791 = vpack.c.b16 %v1631, %v1627
          %v1792 = vpack.c.b16 %v1632, %v1628
          %v1793 = vpack.c.b16 %v1633, %v1629
          %v1794 = vpack.c.b16 %v1634, %v1630
          %v1795 = vpack.c.b16 %v1639, %v1635
          %v1796 = vpack.c.b16 %v1640, %v1636
          %v1797 = vpack.c.b16 %v1641, %v1637
          %v1798 = vpack.c.b16 %v1642, %v1638
          %v1799 = vpack.c.b16 %v1647, %v1643
          %v1800 = vpack.c.b16 %v1648, %v1644
          %v1801 = vpack.c.b16 %v1649, %v1645
          %v1802 = vpack.c.b16 %v1650, %v1646
          %v1803 = vpack.c.b16 %v1655, %v1651
          %v1804 = vpack.c.b16 %v1656, %v1652
          %v1805 = vpack.c.b16 %v1657, %v1653
          %v1806 = vpack.c.b16 %v1658, %v1654
          %v1807 = vpack.c.b16 %v1663, %v1659
          %v1808 = vpack.c.b16 %v1664, %v1660
          %v1809 = vpack.c.b16 %v1665, %v1661
          %v1810 = vpack.c.b16 %v1666, %v1662
          %v1811 = vpack.c.b16 %v1671, %v1667
          %v1812 = vpack.c.b16 %v1672, %v1668
          %v1813 = vpack.c.b16 %v1673, %v1669
          %v1814 = vpack.c.b16 %v1674, %v1670
          %v1815 = vpack.c.b16 %v1679, %v1675
          %v1816 = vpack.c.b16 %v1680, %v1676
          %v1817 = vpack.c.b16 %v1681, %v1677
          %v1818 = vpack.c.b16 %v1682, %v1678
          %v1819 = vpack.c.b16 %v1687, %v1683
          %v1820 = vpack.c.b16 %v1688, %v1684
          %v1821 = vpack.c.b16 %v1689, %v1685
          %v1822 = vpack.c.b16 %v1690, %v1686
          %v1823 = vpack.c.b16 %v1695, %v1691
          %v1824 = vpack.c.b16 %v1696, %v1692
          %v1825 = vpack.c.b16 %v1697, %v1693
          %v1826 = vpack.c.b16 %v1698, %v1694
          %1955 = vmatprep.subr.bf16.mxu0 0
          %1956 = vmatpush1.bf16.msra.mxu0 %v1283
          %1957 = vmatprep.subr.bf16.mxu0 0
          %1958 = vmatpush1.bf16.msra.mxu0 %v1284
          %1959 = vmatprep.subr.bf16.mxu0 0
          %1960 = vmatpush1.bf16.msra.mxu0 %v1285
          %1961 = vmatprep.subr.bf16.mxu0 0
          %1962 = vmatpush1.bf16.msra.mxu0 %v1286
          %1963 = vmatprep.subr.bf16.mxu0 0
          %1964 = vmatpush1.bf16.msra.mxu0 %v1287
          %1965 = vmatprep.subr.bf16.mxu0 0
          %1966 = vmatpush1.bf16.msra.mxu0 %v1288
          %1967 = vmatprep.subr.bf16.mxu0 0
          %1968 = vmatpush1.bf16.msra.mxu0 %v1289
          %1969 = vmatprep.subr.bf16.mxu0 0
          %1970 = vmatpush1.bf16.msra.mxu0 %v1290
          %1971 = vmatprep.subr.bf16.mxu0 0
          %1972 = vmatpush1.bf16.msra.mxu0 %v1291
          %1973 = vmatprep.subr.bf16.mxu0 0
          %1974 = vmatpush1.bf16.msra.mxu0 %v1292
          %1975 = vmatprep.subr.bf16.mxu0 0
          %1976 = vmatpush1.bf16.msra.mxu0 %v1293
          %1977 = vmatprep.subr.bf16.mxu0 0
          %1978 = vmatpush1.bf16.msra.mxu0 %v1294
          %1979 = vmatprep.subr.bf16.mxu0 0
          %1980 = vmatpush1.bf16.msra.mxu0 %v1295
          %1981 = vmatprep.subr.bf16.mxu0 0
          %1982 = vmatpush1.bf16.msra.mxu0 %v1296
          %1983 = vmatprep.subr.bf16.mxu0 0
          %1984 = vmatpush1.bf16.msra.mxu0 %v1297
          %1985 = vmatprep.subr.bf16.mxu0 0
          %1986 = vmatpush1.bf16.msra.mxu0 %v1298
          %1987 = vmatprep.mubr.bf16.mxu0 %v1700
          %1988 = vmatmul.mubr.bf16.gmra.mrb[0].mxu0 %v1699
          %v1989 = vpop.f32.mrb[0].mxu0
          %v1990 = vadd.f32 0.0, %v1989
          %v1991 = vpop.f32.mrb[0].mxu0
          %v1992 = vpop.f32.mrb[0].mxu0
          %v1993 = vadd.f32 0.0, %v1992
          %v1994 = vpop.f32.mrb[0].mxu0
          %1995 = vmatprep.mubr.bf16.mxu0 %v1704
          %1996 = vmatmul.mubr.bf16.gmra.mrb[0].mxu0 %v1703
          %v1997 = vpop.f32.mrb[0].mxu0
          %v1998 = vadd.f32 0.0, %v1997
          %v1999 = vpop.f32.mrb[0].mxu0
          %v2000 = vpop.f32.mrb[0].mxu0
          %v2001 = vadd.f32 0.0, %v2000
          %v2002 = vpop.f32.mrb[0].mxu0
          %2003 = vmatprep.mubr.bf16.mxu0 %v1708
          %2004 = vmatmul.mubr.bf16.gmra.mrb[0].mxu0 %v1707
          %v2005 = vpop.f32.mrb[0].mxu0
          %v2006 = vadd.f32 0.0, %v2005
          %v2007 = vpop.f32.mrb[0].mxu0
          %v2008 = vpop.f32.mrb[0].mxu0
          %v2009 = vadd.f32 0.0, %v2008
          %v2010 = vpop.f32.mrb[0].mxu0
          %2011 = vmatprep.mubr.bf16.mxu0 %v1712
          %2012 = vmatmul.mubr.bf16.gmra.mrb[0].mxu0 %v1711
          %v2013 = vpop.f32.mrb[0].mxu0
          %v2014 = vadd.f32 0.0, %v2013
          %v2015 = vpop.f32.mrb[0].mxu0
          %v2016 = vpop.f32.mrb[0].mxu0
          %v2017 = vadd.f32 0.0, %v2016
          %v2018 = vpop.f32.mrb[0].mxu0
          %2019 = vmatprep.mubr.bf16.mxu0 %v1716
          %2020 = vmatmul.mubr.bf16.gmra.mrb[0].mxu0 %v1715
          %v2021 = vpop.f32.mrb[0].mxu0
          %v2022 = vadd.f32 0.0, %v2021
          %v2023 = vpop.f32.mrb[0].mxu0
          %v2024 = vpop.f32.mrb[0].mxu0
          %v2025 = vadd.f32 0.0, %v2024
          %v2026 = vpop.f32.mrb[0].mxu0
          %2027 = vmatprep.mubr.bf16.mxu0 %v1720
          %2028 = vmatmul.mubr.bf16.gmra.mrb[0].mxu0 %v1719
          %v2029 = vpop.f32.mrb[0].mxu0
          %v2030 = vadd.f32 0.0, %v2029
          %v2031 = vpop.f32.mrb[0].mxu0
          %v2032 = vpop.f32.mrb[0].mxu0
          %v2033 = vadd.f32 0.0, %v2032
          %v2034 = vpop.f32.mrb[0].mxu0
          %2035 = vmatprep.mubr.bf16.mxu0 %v1724
          %2036 = vmatmul.mubr.bf16.gmra.mrb[0].mxu0 %v1723
          %v2037 = vpop.f32.mrb[0].mxu0
          %v2038 = vadd.f32 0.0, %v2037
          %v2039 = vpop.f32.mrb[0].mxu0
          %v2040 = vpop.f32.mrb[0].mxu0
          %v2041 = vadd.f32 0.0, %v2040
          %v2042 = vpop.f32.mrb[0].mxu0
          %2043 = vmatprep.mubr.bf16.mxu0 %v1728
          %2044 = vmatmul.mubr.bf16.gmra.mrb[0].mxu0 %v1727
          %v2045 = vpop.f32.mrb[0].mxu0
          %v2046 = vadd.f32 0.0, %v2045
          %v2047 = vpop.f32.mrb[0].mxu0
          %v2048 = vpop.f32.mrb[0].mxu0
          %v2049 = vadd.f32 0.0, %v2048
          %v2050 = vpop.f32.mrb[0].mxu0
          %2051 = vmatprep.mubr.bf16.mxu0 %v1732
          %2052 = vmatmul.mubr.bf16.gmra.mrb[0].mxu0 %v1731
          %v2053 = vpop.f32.mrb[0].mxu0
          %v2054 = vadd.f32 0.0, %v2053
          %v2055 = vpop.f32.mrb[0].mxu0
          %v2056 = vpop.f32.mrb[0].mxu0
          %v2057 = vadd.f32 0.0, %v2056
          %v2058 = vpop.f32.mrb[0].mxu0
          %2059 = vmatprep.mubr.bf16.mxu0 %v1736
          %2060 = vmatmul.mubr.bf16.gmra.mrb[0].mxu0 %v1735
          %v2061 = vpop.f32.mrb[0].mxu0
          %v2062 = vadd.f32 0.0, %v2061
          %v2063 = vpop.f32.mrb[0].mxu0
          %v2064 = vpop.f32.mrb[0].mxu0
          %v2065 = vadd.f32 0.0, %v2064
          %v2066 = vpop.f32.mrb[0].mxu0
          %2067 = vmatprep.mubr.bf16.mxu0 %v1740
          %2068 = vmatmul.mubr.bf16.gmra.mrb[0].mxu0 %v1739
          %v2069 = vpop.f32.mrb[0].mxu0
          %v2070 = vadd.f32 0.0, %v2069
          %v2071 = vpop.f32.mrb[0].mxu0
          %v2072 = vpop.f32.mrb[0].mxu0
          %v2073 = vadd.f32 0.0, %v2072
          %v2074 = vpop.f32.mrb[0].mxu0
          %2075 = vmatprep.mubr.bf16.mxu0 %v1744
          %2076 = vmatmul.mubr.bf16.gmra.mrb[0].mxu0 %v1743
          %v2077 = vpop.f32.mrb[0].mxu0
          %v2078 = vadd.f32 0.0, %v2077
          %v2079 = vpop.f32.mrb[0].mxu0
          %v2080 = vpop.f32.mrb[0].mxu0
          %v2081 = vadd.f32 0.0, %v2080
          %v2082 = vpop.f32.mrb[0].mxu0
          %2083 = vmatprep.mubr.bf16.mxu0 %v1748
          %2084 = vmatmul.mubr.bf16.gmra.mrb[0].mxu0 %v1747
          %v2085 = vpop.f32.mrb[0].mxu0
          %v2086 = vadd.f32 0.0, %v2085
          %v2087 = vpop.f32.mrb[0].mxu0
          %v2088 = vpop.f32.mrb[0].mxu0
          %v2089 = vadd.f32 0.0, %v2088
          %v2090 = vpop.f32.mrb[0].mxu0
          %2091 = vmatprep.mubr.bf16.mxu0 %v1752
          %2092 = vmatmul.mubr.bf16.gmra.mrb[0].mxu0 %v1751
          %v2093 = vpop.f32.mrb[0].mxu0
          %v2094 = vadd.f32 0.0, %v2093
          %v2095 = vpop.f32.mrb[0].mxu0
          %v2096 = vpop.f32.mrb[0].mxu0
          %v2097 = vadd.f32 0.0, %v2096
          %v2098 = vpop.f32.mrb[0].mxu0
          %2099 = vmatprep.mubr.bf16.mxu0 %v1756
          %2100 = vmatmul.mubr.bf16.gmra.mrb[0].mxu0 %v1755
          %v2101 = vpop.f32.mrb[0].mxu0
          %v2102 = vadd.f32 0.0, %v2101
          %v2103 = vpop.f32.mrb[0].mxu0
          %v2104 = vpop.f32.mrb[0].mxu0
          %v2105 = vadd.f32 0.0, %v2104
          %v2106 = vpop.f32.mrb[0].mxu0
          %2107 = vmatprep.mubr.bf16.mxu0 %v1760
          %2108 = vmatmul.mubr.bf16.gmra.mrb[0].mxu0 %v1759
          %v2109 = vpop.f32.mrb[0].mxu0
          %v2110 = vadd.f32 0.0, %v2109
          %v2111 = vpop.f32.mrb[0].mxu0
          %v2112 = vpop.f32.mrb[0].mxu0
          %v2113 = vadd.f32 0.0, %v2112
          %v2114 = vpop.f32.mrb[0].mxu0
          %2115 = vmatprep.mubr.bf16.mxu0 %v1764
          %2116 = vmatmul.mubr.bf16.gmra.mrb[0].mxu0 %v1763
          %v2117 = vpop.f32.mrb[0].mxu0
          %v2118 = vadd.f32 0.0, %v2117
          %v2119 = vpop.f32.mrb[0].mxu0
          %v2120 = vpop.f32.mrb[0].mxu0
          %v2121 = vadd.f32 0.0, %v2120
          %v2122 = vpop.f32.mrb[0].mxu0
          %2123 = vmatprep.mubr.bf16.mxu0 %v1768
          %2124 = vmatmul.mubr.bf16.gmra.mrb[0].mxu0 %v1767
          %v2125 = vpop.f32.mrb[0].mxu0
          %v2126 = vadd.f32 0.0, %v2125
          %v2127 = vpop.f32.mrb[0].mxu0
          %v2128 = vpop.f32.mrb[0].mxu0
          %v2129 = vadd.f32 0.0, %v2128
          %v2130 = vpop.f32.mrb[0].mxu0
          %2131 = vmatprep.mubr.bf16.mxu0 %v1772
          %2132 = vmatmul.mubr.bf16.gmra.mrb[0].mxu0 %v1771
          %v2133 = vpop.f32.mrb[0].mxu0
          %v2134 = vadd.f32 0.0, %v2133
          %v2135 = vpop.f32.mrb[0].mxu0
          %v2136 = vpop.f32.mrb[0].mxu0
          %v2137 = vadd.f32 0.0, %v2136
          %v2138 = vpop.f32.mrb[0].mxu0
          %2139 = vmatprep.mubr.bf16.mxu0 %v1776
          %2140 = vmatmul.mubr.bf16.gmra.mrb[0].mxu0 %v1775
          %v2141 = vpop.f32.mrb[0].mxu0
          %v2142 = vadd.f32 0.0, %v2141
          %v2143 = vpop.f32.mrb[0].mxu0
          %v2144 = vpop.f32.mrb[0].mxu0
          %v2145 = vadd.f32 0.0, %v2144
          %v2146 = vpop.f32.mrb[0].mxu0
          %2147 = vmatprep.mubr.bf16.mxu0 %v1780
          %2148 = vmatmul.mubr.bf16.gmra.mrb[0].mxu0 %v1779
          %v2149 = vpop.f32.mrb[0].mxu0
          %v2150 = vadd.f32 0.0, %v2149
          %v2151 = vpop.f32.mrb[0].mxu0
          %v2152 = vpop.f32.mrb[0].mxu0
          %v2153 = vadd.f32 0.0, %v2152
          %v2154 = vpop.f32.mrb[0].mxu0
          %2155 = vmatprep.mubr.bf16.mxu0 %v1784
          %2156 = vmatmul.mubr.bf16.gmra.mrb[0].mxu0 %v1783
          %v2157 = vpop.f32.mrb[0].mxu0
          %v2158 = vadd.f32 0.0, %v2157
          %v2159 = vpop.f32.mrb[0].mxu0
          %v2160 = vpop.f32.mrb[0].mxu0
          %v2161 = vadd.f32 0.0, %v2160
          %v2162 = vpop.f32.mrb[0].mxu0
          %2163 = vmatprep.mubr.bf16.mxu0 %v1788
          %2164 = vmatmul.mubr.bf16.gmra.mrb[0].mxu0 %v1787
          %v2165 = vpop.f32.mrb[0].mxu0
          %v2166 = vadd.f32 0.0, %v2165
          %v2167 = vpop.f32.mrb[0].mxu0
          %v2168 = vpop.f32.mrb[0].mxu0
          %v2169 = vadd.f32 0.0, %v2168
          %v2170 = vpop.f32.mrb[0].mxu0
          %2171 = vmatprep.mubr.bf16.mxu0 %v1792
          %2172 = vmatmul.mubr.bf16.gmra.mrb[0].mxu0 %v1791
          %v2173 = vpop.f32.mrb[0].mxu0
          %v2174 = vadd.f32 0.0, %v2173
          %v2175 = vpop.f32.mrb[0].mxu0
          %v2176 = vpop.f32.mrb[0].mxu0
          %v2177 = vadd.f32 0.0, %v2176
          %v2178 = vpop.f32.mrb[0].mxu0
          %2179 = vmatprep.mubr.bf16.mxu0 %v1796
          %2180 = vmatmul.mubr.bf16.gmra.mrb[0].mxu0 %v1795
          %v2181 = vpop.f32.mrb[0].mxu0
          %v2182 = vadd.f32 0.0, %v2181
          %v2183 = vpop.f32.mrb[0].mxu0
          %v2184 = vpop.f32.mrb[0].mxu0
          %v2185 = vadd.f32 0.0, %v2184
          %v2186 = vpop.f32.mrb[0].mxu0
          %2187 = vmatprep.mubr.bf16.mxu0 %v1800
          %2188 = vmatmul.mubr.bf16.gmra.mrb[0].mxu0 %v1799
          %v2189 = vpop.f32.mrb[0].mxu0
          %v2190 = vadd.f32 0.0, %v2189
          %v2191 = vpop.f32.mrb[0].mxu0
          %v2192 = vpop.f32.mrb[0].mxu0
          %v2193 = vadd.f32 0.0, %v2192
          %v2194 = vpop.f32.mrb[0].mxu0
          %2195 = vmatprep.mubr.bf16.mxu0 %v1804
          %2196 = vmatmul.mubr.bf16.gmra.mrb[0].mxu0 %v1803
          %v2197 = vpop.f32.mrb[0].mxu0
          %v2198 = vadd.f32 0.0, %v2197
          %v2199 = vpop.f32.mrb[0].mxu0
          %v2200 = vpop.f32.mrb[0].mxu0
          %v2201 = vadd.f32 0.0, %v2200
          %v2202 = vpop.f32.mrb[0].mxu0
          %2203 = vmatprep.mubr.bf16.mxu0 %v1808
          %2204 = vmatmul.mubr.bf16.gmra.mrb[0].mxu0 %v1807
          %v2205 = vpop.f32.mrb[0].mxu0
          %v2206 = vadd.f32 0.0, %v2205
          %v2207 = vpop.f32.mrb[0].mxu0
          %v2208 = vpop.f32.mrb[0].mxu0
          %v2209 = vadd.f32 0.0, %v2208
          %v2210 = vpop.f32.mrb[0].mxu0
          %2211 = vmatprep.mubr.bf16.mxu0 %v1812
          %2212 = vmatmul.mubr.bf16.gmra.mrb[0].mxu0 %v1811
          %v2213 = vpop.f32.mrb[0].mxu0
          %v2214 = vadd.f32 0.0, %v2213
          %v2215 = vpop.f32.mrb[0].mxu0
          %v2216 = vpop.f32.mrb[0].mxu0
          %v2217 = vadd.f32 0.0, %v2216
          %v2218 = vpop.f32.mrb[0].mxu0
          %2219 = vmatprep.mubr.bf16.mxu0 %v1816
          %2220 = vmatmul.mubr.bf16.gmra.mrb[0].mxu0 %v1815
          %v2221 = vpop.f32.mrb[0].mxu0
          %v2222 = vadd.f32 0.0, %v2221
          %v2223 = vpop.f32.mrb[0].mxu0
          %v2224 = vpop.f32.mrb[0].mxu0
          %v2225 = vadd.f32 0.0, %v2224
          %v2226 = vpop.f32.mrb[0].mxu0
          %2227 = vmatprep.mubr.bf16.mxu0 %v1820
          %2228 = vmatmul.mubr.bf16.gmra.mrb[0].mxu0 %v1819
          %v2229 = vpop.f32.mrb[0].mxu0
          %v2230 = vadd.f32 0.0, %v2229
          %v2231 = vpop.f32.mrb[0].mxu0
          %v2232 = vpop.f32.mrb[0].mxu0
          %v2233 = vadd.f32 0.0, %v2232
          %v2234 = vpop.f32.mrb[0].mxu0
          %2235 = vmatprep.mubr.bf16.mxu0 %v1824
          %2236 = vmatmul.mubr.bf16.gmra.mrb[0].mxu0 %v1823
          %v2237 = vpop.f32.mrb[0].mxu0
          %v2238 = vadd.f32 0.0, %v2237
          %v2239 = vpop.f32.mrb[0].mxu0
          %v2240 = vpop.f32.mrb[0].mxu0
          %v2241 = vadd.f32 0.0, %v2240
          %v2242 = vpop.f32.mrb[0].mxu0
          %2243 = vdwg.mxu0
          %2244 = vmatprep.subr.bf16.mxu0 0
          %2245 = vmatpush1.bf16.msra.mxu0 %v1299
          %2246 = vmatprep.subr.bf16.mxu0 0
          %2247 = vmatpush1.bf16.msra.mxu0 %v1300
          %2248 = vmatprep.subr.bf16.mxu0 0
          %2249 = vmatpush1.bf16.msra.mxu0 %v1301
          %2250 = vmatprep.subr.bf16.mxu0 0
          %2251 = vmatpush1.bf16.msra.mxu0 %v1302
          %2252 = vmatprep.subr.bf16.mxu0 0
          %2253 = vmatpush1.bf16.msra.mxu0 %v1303
          %2254 = vmatprep.subr.bf16.mxu0 0
          %2255 = vmatpush1.bf16.msra.mxu0 %v1304
          %2256 = vmatprep.subr.bf16.mxu0 0
          %2257 = vmatpush1.bf16.msra.mxu0 %v1305
          %2258 = vmatprep.subr.bf16.mxu0 0
          %2259 = vmatpush1.bf16.msra.mxu0 %v1306
          %2260 = vmatprep.subr.bf16.mxu0 0
          %2261 = vmatpush1.bf16.msra.mxu0 %v1307
          %2262 = vmatprep.subr.bf16.mxu0 0
          %2263 = vmatpush1.bf16.msra.mxu0 %v1308
          %2264 = vmatprep.subr.bf16.mxu0 0
          %2265 = vmatpush1.bf16.msra.mxu0 %v1309
          %2266 = vmatprep.subr.bf16.mxu0 0
          %2267 = vmatpush1.bf16.msra.mxu0 %v1310
          %2268 = vmatprep.subr.bf16.mxu0 0
          %2269 = vmatpush1.bf16.msra.mxu0 %v1311
          %2270 = vmatprep.subr.bf16.mxu0 0
          %2271 = vmatpush1.bf16.msra.mxu0 %v1312
          %2272 = vmatprep.subr.bf16.mxu0 0
          %2273 = vmatpush1.bf16.msra.mxu0 %v1313
          %2274 = vmatprep.subr.bf16.mxu0 0
          %2275 = vmatpush1.bf16.msra.mxu0 %v1314
          %2276 = vmatprep.mubr.bf16.mxu0 %v1702
          %2277 = vmatmul.mubr.bf16.gmra.mrb[0].mxu0 %v1701
          %v2278 = vpop.f32.mrb[0].mxu0
          %v2279 = vadd.f32 %v1990, %v2278
          %v2280 = vpop.f32.mrb[0].mxu0
          %v2281 = vpop.f32.mrb[0].mxu0
          %v2282 = vadd.f32 %v1993, %v2281
          %v2283 = vpop.f32.mrb[0].mxu0
          %2284 = vmatprep.mubr.bf16.mxu0 %v1706
          %2285 = vmatmul.mubr.bf16.gmra.mrb[0].mxu0 %v1705
          %v2286 = vpop.f32.mrb[0].mxu0
          %v2287 = vadd.f32 %v1998, %v2286
          %v2288 = vpop.f32.mrb[0].mxu0
          %v2289 = vpop.f32.mrb[0].mxu0
          %v2290 = vadd.f32 %v2001, %v2289
          %v2291 = vpop.f32.mrb[0].mxu0
          %2292 = vmatprep.mubr.bf16.mxu0 %v1710
          %2293 = vmatmul.mubr.bf16.gmra.mrb[0].mxu0 %v1709
          %v2294 = vpop.f32.mrb[0].mxu0
          %v2295 = vadd.f32 %v2006, %v2294
          %v2296 = vpop.f32.mrb[0].mxu0
          %v2297 = vpop.f32.mrb[0].mxu0
          %v2298 = vadd.f32 %v2009, %v2297
          %v2299 = vpop.f32.mrb[0].mxu0
          %2300 = vmatprep.mubr.bf16.mxu0 %v1714
          %2301 = vmatmul.mubr.bf16.gmra.mrb[0].mxu0 %v1713
          %v2302 = vpop.f32.mrb[0].mxu0
          %v2303 = vadd.f32 %v2014, %v2302
          %v2304 = vpop.f32.mrb[0].mxu0
          %v2305 = vpop.f32.mrb[0].mxu0
          %v2306 = vadd.f32 %v2017, %v2305
          %v2307 = vpop.f32.mrb[0].mxu0
          %2308 = vmatprep.mubr.bf16.mxu0 %v1718
          %2309 = vmatmul.mubr.bf16.gmra.mrb[0].mxu0 %v1717
          %v2310 = vpop.f32.mrb[0].mxu0
          %v2311 = vadd.f32 %v2022, %v2310
          %v2312 = vpop.f32.mrb[0].mxu0
          %v2313 = vpop.f32.mrb[0].mxu0
          %v2314 = vadd.f32 %v2025, %v2313
          %v2315 = vpop.f32.mrb[0].mxu0
          %2316 = vmatprep.mubr.bf16.mxu0 %v1722
          %2317 = vmatmul.mubr.bf16.gmra.mrb[0].mxu0 %v1721
          %v2318 = vpop.f32.mrb[0].mxu0
          %v2319 = vadd.f32 %v2030, %v2318
          %v2320 = vpop.f32.mrb[0].mxu0
          %v2321 = vpop.f32.mrb[0].mxu0
          %v2322 = vadd.f32 %v2033, %v2321
          %v2323 = vpop.f32.mrb[0].mxu0
          %2324 = vmatprep.mubr.bf16.mxu0 %v1726
          %2325 = vmatmul.mubr.bf16.gmra.mrb[0].mxu0 %v1725
          %v2326 = vpop.f32.mrb[0].mxu0
          %v2327 = vadd.f32 %v2038, %v2326
          %v2328 = vpop.f32.mrb[0].mxu0
          %v2329 = vpop.f32.mrb[0].mxu0
          %v2330 = vadd.f32 %v2041, %v2329
          %v2331 = vpop.f32.mrb[0].mxu0
          %2332 = vmatprep.mubr.bf16.mxu0 %v1730
          %2333 = vmatmul.mubr.bf16.gmra.mrb[0].mxu0 %v1729
          %v2334 = vpop.f32.mrb[0].mxu0
          %v2335 = vadd.f32 %v2046, %v2334
          %v2336 = vpop.f32.mrb[0].mxu0
          %v2337 = vpop.f32.mrb[0].mxu0
          %v2338 = vadd.f32 %v2049, %v2337
          %v2339 = vpop.f32.mrb[0].mxu0
          %2340 = vmatprep.mubr.bf16.mxu0 %v1734
          %2341 = vmatmul.mubr.bf16.gmra.mrb[0].mxu0 %v1733
          %v2342 = vpop.f32.mrb[0].mxu0
          %v2343 = vadd.f32 %v2054, %v2342
          %v2344 = vpop.f32.mrb[0].mxu0
          %v2345 = vpop.f32.mrb[0].mxu0
          %v2346 = vadd.f32 %v2057, %v2345
          %v2347 = vpop.f32.mrb[0].mxu0
          %2348 = vmatprep.mubr.bf16.mxu0 %v1738
          %2349 = vmatmul.mubr.bf16.gmra.mrb[0].mxu0 %v1737
          %v2350 = vpop.f32.mrb[0].mxu0
          %v2351 = vadd.f32 %v2062, %v2350
          %v2352 = vpop.f32.mrb[0].mxu0
          %v2353 = vpop.f32.mrb[0].mxu0
          %v2354 = vadd.f32 %v2065, %v2353
          %v2355 = vpop.f32.mrb[0].mxu0
          %2356 = vmatprep.mubr.bf16.mxu0 %v1742
          %2357 = vmatmul.mubr.bf16.gmra.mrb[0].mxu0 %v1741
          %v2358 = vpop.f32.mrb[0].mxu0
          %v2359 = vadd.f32 %v2070, %v2358
          %v2360 = vpop.f32.mrb[0].mxu0
          %v2361 = vpop.f32.mrb[0].mxu0
          %v2362 = vadd.f32 %v2073, %v2361
          %v2363 = vpop.f32.mrb[0].mxu0
          %2364 = vmatprep.mubr.bf16.mxu0 %v1746
          %2365 = vmatmul.mubr.bf16.gmra.mrb[0].mxu0 %v1745
          %v2366 = vpop.f32.mrb[0].mxu0
          %v2367 = vadd.f32 %v2078, %v2366
          %v2368 = vpop.f32.mrb[0].mxu0
          %v2369 = vpop.f32.mrb[0].mxu0
          %v2370 = vadd.f32 %v2081, %v2369
          %v2371 = vpop.f32.mrb[0].mxu0
          %2372 = vmatprep.mubr.bf16.mxu0 %v1750
          %2373 = vmatmul.mubr.bf16.gmra.mrb[0].mxu0 %v1749
          %v2374 = vpop.f32.mrb[0].mxu0
          %v2375 = vadd.f32 %v2086, %v2374
          %v2376 = vpop.f32.mrb[0].mxu0
          %v2377 = vpop.f32.mrb[0].mxu0
          %v2378 = vadd.f32 %v2089, %v2377
          %v2379 = vpop.f32.mrb[0].mxu0
          %2380 = vmatprep.mubr.bf16.mxu0 %v1754
          %2381 = vmatmul.mubr.bf16.gmra.mrb[0].mxu0 %v1753
          %v2382 = vpop.f32.mrb[0].mxu0
          %v2383 = vadd.f32 %v2094, %v2382
          %v2384 = vpop.f32.mrb[0].mxu0
          %v2385 = vpop.f32.mrb[0].mxu0
          %v2386 = vadd.f32 %v2097, %v2385
          %v2387 = vpop.f32.mrb[0].mxu0
          %2388 = vmatprep.mubr.bf16.mxu0 %v1758
          %2389 = vmatmul.mubr.bf16.gmra.mrb[0].mxu0 %v1757
          %v2390 = vpop.f32.mrb[0].mxu0
          %v2391 = vadd.f32 %v2102, %v2390
          %v2392 = vpop.f32.mrb[0].mxu0
          %v2393 = vpop.f32.mrb[0].mxu0
          %v2394 = vadd.f32 %v2105, %v2393
          %v2395 = vpop.f32.mrb[0].mxu0
          %2396 = vmatprep.mubr.bf16.mxu0 %v1762
          %2397 = vmatmul.mubr.bf16.gmra.mrb[0].mxu0 %v1761
          %v2398 = vpop.f32.mrb[0].mxu0
          %v2399 = vadd.f32 %v2110, %v2398
          %v2400 = vpop.f32.mrb[0].mxu0
          %v2401 = vpop.f32.mrb[0].mxu0
          %v2402 = vadd.f32 %v2113, %v2401
          %v2403 = vpop.f32.mrb[0].mxu0
          %2404 = vmatprep.mubr.bf16.mxu0 %v1766
          %2405 = vmatmul.mubr.bf16.gmra.mrb[0].mxu0 %v1765
          %v2406 = vpop.f32.mrb[0].mxu0
          %v2407 = vadd.f32 %v2118, %v2406
          %v2408 = vpop.f32.mrb[0].mxu0
          %v2409 = vpop.f32.mrb[0].mxu0
          %v2410 = vadd.f32 %v2121, %v2409
          %v2411 = vpop.f32.mrb[0].mxu0
          %2412 = vmatprep.mubr.bf16.mxu0 %v1770
          %2413 = vmatmul.mubr.bf16.gmra.mrb[0].mxu0 %v1769
          %v2414 = vpop.f32.mrb[0].mxu0
          %v2415 = vadd.f32 %v2126, %v2414
          %v2416 = vpop.f32.mrb[0].mxu0
          %v2417 = vpop.f32.mrb[0].mxu0
          %v2418 = vadd.f32 %v2129, %v2417
          %v2419 = vpop.f32.mrb[0].mxu0
          %2420 = vmatprep.mubr.bf16.mxu0 %v1774
          %2421 = vmatmul.mubr.bf16.gmra.mrb[0].mxu0 %v1773
          %v2422 = vpop.f32.mrb[0].mxu0
          %v2423 = vadd.f32 %v2134, %v2422
          %v2424 = vpop.f32.mrb[0].mxu0
          %v2425 = vpop.f32.mrb[0].mxu0
          %v2426 = vadd.f32 %v2137, %v2425
          %v2427 = vpop.f32.mrb[0].mxu0
          %2428 = vmatprep.mubr.bf16.mxu0 %v1778
          %2429 = vmatmul.mubr.bf16.gmra.mrb[0].mxu0 %v1777
          %v2430 = vpop.f32.mrb[0].mxu0
          %v2431 = vadd.f32 %v2142, %v2430
          %v2432 = vpop.f32.mrb[0].mxu0
          %v2433 = vpop.f32.mrb[0].mxu0
          %v2434 = vadd.f32 %v2145, %v2433
          %v2435 = vpop.f32.mrb[0].mxu0
          %2436 = vmatprep.mubr.bf16.mxu0 %v1782
          %2437 = vmatmul.mubr.bf16.gmra.mrb[0].mxu0 %v1781
          %v2438 = vpop.f32.mrb[0].mxu0
          %v2439 = vadd.f32 %v2150, %v2438
          %v2440 = vpop.f32.mrb[0].mxu0
          %v2441 = vpop.f32.mrb[0].mxu0
          %v2442 = vadd.f32 %v2153, %v2441
          %v2443 = vpop.f32.mrb[0].mxu0
          %2444 = vmatprep.mubr.bf16.mxu0 %v1786
          %2445 = vmatmul.mubr.bf16.gmra.mrb[0].mxu0 %v1785
          %v2446 = vpop.f32.mrb[0].mxu0
          %v2447 = vadd.f32 %v2158, %v2446
          %v2448 = vpop.f32.mrb[0].mxu0
          %v2449 = vpop.f32.mrb[0].mxu0
          %v2450 = vadd.f32 %v2161, %v2449
          %v2451 = vpop.f32.mrb[0].mxu0
          %2452 = vmatprep.mubr.bf16.mxu0 %v1790
          %2453 = vmatmul.mubr.bf16.gmra.mrb[0].mxu0 %v1789
          %v2454 = vpop.f32.mrb[0].mxu0
          %v2455 = vadd.f32 %v2166, %v2454
          %v2456 = vpop.f32.mrb[0].mxu0
          %v2457 = vpop.f32.mrb[0].mxu0
          %v2458 = vadd.f32 %v2169, %v2457
          %v2459 = vpop.f32.mrb[0].mxu0
          %2460 = vmatprep.mubr.bf16.mxu0 %v1794
          %2461 = vmatmul.mubr.bf16.gmra.mrb[0].mxu0 %v1793
          %v2462 = vpop.f32.mrb[0].mxu0
          %v2463 = vadd.f32 %v2174, %v2462
          %v2464 = vpop.f32.mrb[0].mxu0
          %v2465 = vpop.f32.mrb[0].mxu0
          %v2466 = vadd.f32 %v2177, %v2465
          %v2467 = vpop.f32.mrb[0].mxu0
          %2468 = vmatprep.mubr.bf16.mxu0 %v1798
          %2469 = vmatmul.mubr.bf16.gmra.mrb[0].mxu0 %v1797
          %v2470 = vpop.f32.mrb[0].mxu0
          %v2471 = vadd.f32 %v2182, %v2470
          %v2472 = vpop.f32.mrb[0].mxu0
          %v2473 = vpop.f32.mrb[0].mxu0
          %v2474 = vadd.f32 %v2185, %v2473
          %v2475 = vpop.f32.mrb[0].mxu0
          %2476 = vmatprep.mubr.bf16.mxu0 %v1802
          %2477 = vmatmul.mubr.bf16.gmra.mrb[0].mxu0 %v1801
          %v2478 = vpop.f32.mrb[0].mxu0
          %v2479 = vadd.f32 %v2190, %v2478
          %v2480 = vpop.f32.mrb[0].mxu0
          %v2481 = vpop.f32.mrb[0].mxu0
          %v2482 = vadd.f32 %v2193, %v2481
          %v2483 = vpop.f32.mrb[0].mxu0
          %2484 = vmatprep.mubr.bf16.mxu0 %v1806
          %2485 = vmatmul.mubr.bf16.gmra.mrb[0].mxu0 %v1805
          %v2486 = vpop.f32.mrb[0].mxu0
          %v2487 = vadd.f32 %v2198, %v2486
          %v2488 = vpop.f32.mrb[0].mxu0
          %v2489 = vpop.f32.mrb[0].mxu0
          %v2490 = vadd.f32 %v2201, %v2489
          %v2491 = vpop.f32.mrb[0].mxu0
          %2492 = vmatprep.mubr.bf16.mxu0 %v1810
          %2493 = vmatmul.mubr.bf16.gmra.mrb[0].mxu0 %v1809
          %v2494 = vpop.f32.mrb[0].mxu0
          %v2495 = vadd.f32 %v2206, %v2494
          %v2496 = vpop.f32.mrb[0].mxu0
          %v2497 = vpop.f32.mrb[0].mxu0
          %v2498 = vadd.f32 %v2209, %v2497
          %v2499 = vpop.f32.mrb[0].mxu0
          %2500 = vmatprep.mubr.bf16.mxu0 %v1814
          %2501 = vmatmul.mubr.bf16.gmra.mrb[0].mxu0 %v1813
          %v2502 = vpop.f32.mrb[0].mxu0
          %v2503 = vadd.f32 %v2214, %v2502
          %v2504 = vpop.f32.mrb[0].mxu0
          %v2505 = vpop.f32.mrb[0].mxu0
          %v2506 = vadd.f32 %v2217, %v2505
          %v2507 = vpop.f32.mrb[0].mxu0
          %2508 = vmatprep.mubr.bf16.mxu0 %v1818
          %2509 = vmatmul.mubr.bf16.gmra.mrb[0].mxu0 %v1817
          %v2510 = vpop.f32.mrb[0].mxu0
          %v2511 = vadd.f32 %v2222, %v2510
          %v2512 = vpop.f32.mrb[0].mxu0
          %v2513 = vpop.f32.mrb[0].mxu0
          %v2514 = vadd.f32 %v2225, %v2513
          %v2515 = vpop.f32.mrb[0].mxu0
          %2516 = vmatprep.mubr.bf16.mxu0 %v1822
          %2517 = vmatmul.mubr.bf16.gmra.mrb[0].mxu0 %v1821
          %v2518 = vpop.f32.mrb[0].mxu0
          %v2519 = vadd.f32 %v2230, %v2518
          %v2520 = vpop.f32.mrb[0].mxu0
          %v2521 = vpop.f32.mrb[0].mxu0
          %v2522 = vadd.f32 %v2233, %v2521
          %v2523 = vpop.f32.mrb[0].mxu0
          %2524 = vmatprep.mubr.bf16.mxu0 %v1826
          %2525 = vmatmul.mubr.bf16.gmra.mrb[0].mxu0 %v1825
          %v2526 = vpop.f32.mrb[0].mxu0
          %v2527 = vadd.f32 %v2238, %v2526
          %v2528 = vpop.f32.mrb[0].mxu0
          %v2529 = vpop.f32.mrb[0].mxu0
          %v2530 = vadd.f32 %v2241, %v2529
          %v2531 = vpop.f32.mrb[0].mxu0
          %2532 = vdwg.mxu0
          %v2533 = vadd.f32 %v1087, %v2279
          %v2534 = vadd.f32 %v1088, %v2282
          %v2535 = vadd.f32 %v1089, %v2287
          %v2536 = vadd.f32 %v1090, %v2290
          %v2537 = vadd.f32 %v1091, %v2295
          %v2538 = vadd.f32 %v1092, %v2298
          %v2539 = vadd.f32 %v1093, %v2303
          %v2540 = vadd.f32 %v1094, %v2306
          %v2541 = vadd.f32 %v1095, %v2311
          %v2542 = vadd.f32 %v1096, %v2314
          %v2543 = vadd.f32 %v1097, %v2319
          %v2544 = vadd.f32 %v1098, %v2322
          %v2545 = vadd.f32 %v1099, %v2327
          %v2546 = vadd.f32 %v1100, %v2330
          %v2547 = vadd.f32 %v1101, %v2335
          %v2548 = vadd.f32 %v1102, %v2338
          %v2549 = vadd.f32 %v1103, %v2343
          %v2550 = vadd.f32 %v1104, %v2346
          %v2551 = vadd.f32 %v1105, %v2351
          %v2552 = vadd.f32 %v1106, %v2354
          %v2553 = vadd.f32 %v1107, %v2359
          %v2554 = vadd.f32 %v1108, %v2362
          %v2555 = vadd.f32 %v1109, %v2367
          %v2556 = vadd.f32 %v1110, %v2370
          %v2557 = vadd.f32 %v1111, %v2375
          %v2558 = vadd.f32 %v1112, %v2378
          %v2559 = vadd.f32 %v1113, %v2383
          %v2560 = vadd.f32 %v1114, %v2386
          %v2561 = vadd.f32 %v1115, %v2391
          %v2562 = vadd.f32 %v1116, %v2394
          %v2563 = vadd.f32 %v1117, %v2399
          %v2564 = vadd.f32 %v1118, %v2402
          %v2565 = vadd.f32 %v1119, %v2407
          %v2566 = vadd.f32 %v1120, %v2410
          %v2567 = vadd.f32 %v1121, %v2415
          %v2568 = vadd.f32 %v1122, %v2418
          %v2569 = vadd.f32 %v1123, %v2423
          %v2570 = vadd.f32 %v1124, %v2426
          %v2571 = vadd.f32 %v1125, %v2431
          %v2572 = vadd.f32 %v1126, %v2434
          %v2573 = vadd.f32 %v1127, %v2439
          %v2574 = vadd.f32 %v1128, %v2442
          %v2575 = vadd.f32 %v1129, %v2447
          %v2576 = vadd.f32 %v1130, %v2450
          %v2577 = vadd.f32 %v1131, %v2455
          %v2578 = vadd.f32 %v1132, %v2458
          %v2579 = vadd.f32 %v1133, %v2463
          %v2580 = vadd.f32 %v1134, %v2466
          %v2581 = vadd.f32 %v1135, %v2471
          %v2582 = vadd.f32 %v1136, %v2474
          %v2583 = vadd.f32 %v1137, %v2479
          %v2584 = vadd.f32 %v1138, %v2482
          %v2585 = vadd.f32 %v1139, %v2487
          %v2586 = vadd.f32 %v1140, %v2490
          %v2587 = vadd.f32 %v1141, %v2495
          %v2588 = vadd.f32 %v1142, %v2498
          %v2589 = vadd.f32 %v1143, %v2503
          %v2590 = vadd.f32 %v1144, %v2506
          %v2591 = vadd.f32 %v1145, %v2511
          %v2592 = vadd.f32 %v1146, %v2514
          %v2593 = vadd.f32 %v1147, %v2519
          %v2594 = vadd.f32 %v1148, %v2522
          %v2595 = vadd.f32 %v1149, %v2527
          %v2596 = vadd.f32 %v1150, %v2530
          %2597 = vst [vmem:[#allocation4] sm:$0xff] %v2533
          %2598 = vst [vmem:[#allocation4 + $0x8] sm:$0xff] %v2534
          %2599 = vst [vmem:[#allocation4 + $0x10] sm:$0xff] %v2535
          %2600 = vst [vmem:[#allocation4 + $0x18] sm:$0xff] %v2536
          %2601 = vst [vmem:[#allocation4 + $0x20] sm:$0xff] %v2537
          %2602 = vst [vmem:[#allocation4 + $0x28] sm:$0xff] %v2538
          %2603 = vst [vmem:[#allocation4 + $0x30] sm:$0xff] %v2539
          %2604 = vst [vmem:[#allocation4 + $0x38] sm:$0xff] %v2540
          %2605 = vst [vmem:[#allocation4 + $0x40] sm:$0xff] %v2541
          %2606 = vst [vmem:[#allocation4 + $0x48] sm:$0xff] %v2542
          %2607 = vst [vmem:[#allocation4 + $0x50] sm:$0xff] %v2543
          %2608 = vst [vmem:[#allocation4 + $0x58] sm:$0xff] %v2544
          %2609 = vst [vmem:[#allocation4 + $0x60] sm:$0xff] %v2545
          %2610 = vst [vmem:[#allocation4 + $0x68] sm:$0xff] %v2546
          %2611 = vst [vmem:[#allocation4 + $0x70] sm:$0xff] %v2547
          %2612 = vst [vmem:[#allocation4 + $0x78] sm:$0xff] %v2548
          %2613 = vst [vmem:[#allocation4 + $0x80] sm:$0xff] %v2549
          %2614 = vst [vmem:[#allocation4 + $0x88] sm:$0xff] %v2550
          %2615 = vst [vmem:[#allocation4 + $0x90] sm:$0xff] %v2551
          %2616 = vst [vmem:[#allocation4 + $0x98] sm:$0xff] %v2552
          %2617 = vst [vmem:[#allocation4 + $0xa0] sm:$0xff] %v2553
          %2618 = vst [vmem:[#allocation4 + $0xa8] sm:$0xff] %v2554
          %2619 = vst [vmem:[#allocation4 + $0xb0] sm:$0xff] %v2555
          %2620 = vst [vmem:[#allocation4 + $0xb8] sm:$0xff] %v2556
          %2621 = vst [vmem:[#allocation4 + $0xc0] sm:$0xff] %v2557
          %2622 = vst [vmem:[#allocation4 + $0xc8] sm:$0xff] %v2558
          %2623 = vst [vmem:[#allocation4 + $0xd0] sm:$0xff] %v2559
          %2624 = vst [vmem:[#allocation4 + $0xd8] sm:$0xff] %v2560
          %2625 = vst [vmem:[#allocation4 + $0xe0] sm:$0xff] %v2561
          %2626 = vst [vmem:[#allocation4 + $0xe8] sm:$0xff] %v2562
          %2627 = vst [vmem:[#allocation4 + $0xf0] sm:$0xff] %v2563
          %2628 = vst [vmem:[#allocation4 + $0xf8] sm:$0xff] %v2564
          %2629 = vst [vmem:[#allocation4 + $0x100] sm:$0xff] %v2565
          %2630 = vst [vmem:[#allocation4 + $0x108] sm:$0xff] %v2566
          %2631 = vst [vmem:[#allocation4 + $0x110] sm:$0xff] %v2567
          %2632 = vst [vmem:[#allocation4 + $0x118] sm:$0xff] %v2568
          %2633 = vst [vmem:[#allocation4 + $0x120] sm:$0xff] %v2569
          %2634 = vst [vmem:[#allocation4 + $0x128] sm:$0xff] %v2570
          %2635 = vst [vmem:[#allocation4 + $0x130] sm:$0xff] %v2571
          %2636 = vst [vmem:[#allocation4 + $0x138] sm:$0xff] %v2572
          %2637 = vst [vmem:[#allocation4 + $0x140] sm:$0xff] %v2573
          %2638 = vst [vmem:[#allocation4 + $0x148] sm:$0xff] %v2574
          %2639 = vst [vmem:[#allocation4 + $0x150] sm:$0xff] %v2575
          %2640 = vst [vmem:[#allocation4 + $0x158] sm:$0xff] %v2576
          %2641 = vst [vmem:[#allocation4 + $0x160] sm:$0xff] %v2577
          %2642 = vst [vmem:[#allocation4 + $0x168] sm:$0xff] %v2578
          %2643 = vst [vmem:[#allocation4 + $0x170] sm:$0xff] %v2579
          %2644 = vst [vmem:[#allocation4 + $0x178] sm:$0xff] %v2580
          %2645 = vst [vmem:[#allocation4 + $0x180] sm:$0xff] %v2581
          %2646 = vst [vmem:[#allocation4 + $0x188] sm:$0xff] %v2582
          %2647 = vst [vmem:[#allocation4 + $0x190] sm:$0xff] %v2583
          %2648 = vst [vmem:[#allocation4 + $0x198] sm:$0xff] %v2584
          %2649 = vst [vmem:[#allocation4 + $0x1a0] sm:$0xff] %v2585
          %2650 = vst [vmem:[#allocation4 + $0x1a8] sm:$0xff] %v2586
          %2651 = vst [vmem:[#allocation4 + $0x1b0] sm:$0xff] %v2587
          %2652 = vst [vmem:[#allocation4 + $0x1b8] sm:$0xff] %v2588
          %2653 = vst [vmem:[#allocation4 + $0x1c0] sm:$0xff] %v2589
          %2654 = vst [vmem:[#allocation4 + $0x1c8] sm:$0xff] %v2590
          %2655 = vst [vmem:[#allocation4 + $0x1d0] sm:$0xff] %v2591
          %2656 = vst [vmem:[#allocation4 + $0x1d8] sm:$0xff] %v2592
          %2657 = vst [vmem:[#allocation4 + $0x1e0] sm:$0xff] %v2593
          %2658 = vst [vmem:[#allocation4 + $0x1e8] sm:$0xff] %v2594
          %2659 = vst [vmem:[#allocation4 + $0x1f0] sm:$0xff] %v2595
          %2660 = vst [vmem:[#allocation4 + $0x1f8] sm:$0xff] %v2596
          // Predicated region
          $region73: #{tpu_custom_call.1} parent=63 // pred_check
            %p2661 = pneg %p1019
          $region74: #{tpu_custom_call.1} parent=63 // pred_check_branch
            %2663 = sbr.rel (%p2661) target = $region76
          $region75: #{tpu_custom_call.1} parent=63 // pred_region
            %v2664 = vld [vmem:[#allocation4] sm:$0xff]
            %v2665 = vld [vmem:[#allocation4 + $0x8] sm:$0xff]
            %v2666 = vld [vmem:[#allocation4 + $0x10] sm:$0xff]
            %v2667 = vld [vmem:[#allocation4 + $0x18] sm:$0xff]
            %v2668 = vld [vmem:[#allocation4 + $0x20] sm:$0xff]
            %v2669 = vld [vmem:[#allocation4 + $0x28] sm:$0xff]
            %v2670 = vld [vmem:[#allocation4 + $0x30] sm:$0xff]
            %v2671 = vld [vmem:[#allocation4 + $0x38] sm:$0xff]
            %v2672 = vld [vmem:[#allocation4 + $0x40] sm:$0xff]
            %v2673 = vld [vmem:[#allocation4 + $0x48] sm:$0xff]
            %v2674 = vld [vmem:[#allocation4 + $0x50] sm:$0xff]
            %v2675 = vld [vmem:[#allocation4 + $0x58] sm:$0xff]
            %v2676 = vld [vmem:[#allocation4 + $0x60] sm:$0xff]
            %v2677 = vld [vmem:[#allocation4 + $0x68] sm:$0xff]
            %v2678 = vld [vmem:[#allocation4 + $0x70] sm:$0xff]
            %v2679 = vld [vmem:[#allocation4 + $0x78] sm:$0xff]
            %v2680 = vld [vmem:[#allocation4 + $0x80] sm:$0xff]
            %v2681 = vld [vmem:[#allocation4 + $0x88] sm:$0xff]
            %v2682 = vld [vmem:[#allocation4 + $0x90] sm:$0xff]
            %v2683 = vld [vmem:[#allocation4 + $0x98] sm:$0xff]
            %v2684 = vld [vmem:[#allocation4 + $0xa0] sm:$0xff]
            %v2685 = vld [vmem:[#allocation4 + $0xa8] sm:$0xff]
            %v2686 = vld [vmem:[#allocation4 + $0xb0] sm:$0xff]
            %v2687 = vld [vmem:[#allocation4 + $0xb8] sm:$0xff]
            %v2688 = vld [vmem:[#allocation4 + $0xc0] sm:$0xff]
            %v2689 = vld [vmem:[#allocation4 + $0xc8] sm:$0xff]
            %v2690 = vld [vmem:[#allocation4 + $0xd0] sm:$0xff]
            %v2691 = vld [vmem:[#allocation4 + $0xd8] sm:$0xff]
            %v2692 = vld [vmem:[#allocation4 + $0xe0] sm:$0xff]
            %v2693 = vld [vmem:[#allocation4 + $0xe8] sm:$0xff]
            %v2694 = vld [vmem:[#allocation4 + $0xf0] sm:$0xff]
            %v2695 = vld [vmem:[#allocation4 + $0xf8] sm:$0xff]
            %v2696 = vld [vmem:[#allocation4 + $0x100] sm:$0xff]
            %v2697 = vld [vmem:[#allocation4 + $0x108] sm:$0xff]
            %v2698 = vld [vmem:[#allocation4 + $0x110] sm:$0xff]
            %v2699 = vld [vmem:[#allocation4 + $0x118] sm:$0xff]
            %v2700 = vld [vmem:[#allocation4 + $0x120] sm:$0xff]
            %v2701 = vld [vmem:[#allocation4 + $0x128] sm:$0xff]
            %v2702 = vld [vmem:[#allocation4 + $0x130] sm:$0xff]
            %v2703 = vld [vmem:[#allocation4 + $0x138] sm:$0xff]
            %v2704 = vld [vmem:[#allocation4 + $0x140] sm:$0xff]
            %v2705 = vld [vmem:[#allocation4 + $0x148] sm:$0xff]
            %v2706 = vld [vmem:[#allocation4 + $0x150] sm:$0xff]
            %v2707 = vld [vmem:[#allocation4 + $0x158] sm:$0xff]
            %v2708 = vld [vmem:[#allocation4 + $0x160] sm:$0xff]
            %v2709 = vld [vmem:[#allocation4 + $0x168] sm:$0xff]
            %v2710 = vld [vmem:[#allocation4 + $0x170] sm:$0xff]
            %v2711 = vld [vmem:[#allocation4 + $0x178] sm:$0xff]
            %v2712 = vld [vmem:[#allocation4 + $0x180] sm:$0xff]
            %v2713 = vld [vmem:[#allocation4 + $0x188] sm:$0xff]
            %v2714 = vld [vmem:[#allocation4 + $0x190] sm:$0xff]
            %v2715 = vld [vmem:[#allocation4 + $0x198] sm:$0xff]
            %v2716 = vld [vmem:[#allocation4 + $0x1a0] sm:$0xff]
            %v2717 = vld [vmem:[#allocation4 + $0x1a8] sm:$0xff]
            %v2718 = vld [vmem:[#allocation4 + $0x1b0] sm:$0xff]
            %v2719 = vld [vmem:[#allocation4 + $0x1b8] sm:$0xff]
            %v2720 = vld [vmem:[#allocation4 + $0x1c0] sm:$0xff]
            %v2721 = vld [vmem:[#allocation4 + $0x1c8] sm:$0xff]
            %v2722 = vld [vmem:[#allocation4 + $0x1d0] sm:$0xff]
            %v2723 = vld [vmem:[#allocation4 + $0x1d8] sm:$0xff]
            %v2724 = vld [vmem:[#allocation4 + $0x1e0] sm:$0xff]
            %v2725 = vld [vmem:[#allocation4 + $0x1e8] sm:$0xff]
            %v2726 = vld [vmem:[#allocation4 + $0x1f0] sm:$0xff]
            %v2727 = vld [vmem:[#allocation4 + $0x1f8] sm:$0xff]
            %v2728 = vld [vmem:[%s3] sm:$0x1]
            %v2730 = vlaneseq
            %v2731 = vshrl.u32 %v2730, 7
            %v2732 = vsub.s32 0, %v2731
            %v2733 = vrot.slane %v2728, %v2732
            %v2735 = vadd.f32 %v2664, %v2733
            %v2736 = vadd.f32 %v2665, %v2733
            %v2737 = vadd.f32 %v2666, %v2733
            %v2738 = vadd.f32 %v2667, %v2733
            %v2739 = vadd.f32 %v2668, %v2733
            %v2740 = vadd.f32 %v2669, %v2733
            %v2741 = vadd.f32 %v2670, %v2733
            %v2742 = vadd.f32 %v2671, %v2733
            %v2743 = vadd.f32 %v2672, %v2733
            %v2744 = vadd.f32 %v2673, %v2733
            %v2745 = vadd.f32 %v2674, %v2733
            %v2746 = vadd.f32 %v2675, %v2733
            %v2747 = vadd.f32 %v2676, %v2733
            %v2748 = vadd.f32 %v2677, %v2733
            %v2749 = vadd.f32 %v2678, %v2733
            %v2750 = vadd.f32 %v2679, %v2733
            %v2751 = vadd.f32 %v2680, %v2733
            %v2752 = vadd.f32 %v2681, %v2733
            %v2753 = vadd.f32 %v2682, %v2733
            %v2754 = vadd.f32 %v2683, %v2733
            %v2755 = vadd.f32 %v2684, %v2733
            %v2756 = vadd.f32 %v2685, %v2733
            %v2757 = vadd.f32 %v2686, %v2733
            %v2758 = vadd.f32 %v2687, %v2733
            %v2759 = vadd.f32 %v2688, %v2733
            %v2760 = vadd.f32 %v2689, %v2733
            %v2761 = vadd.f32 %v2690, %v2733
            %v2762 = vadd.f32 %v2691, %v2733
            %v2763 = vadd.f32 %v2692, %v2733
            %v2764 = vadd.f32 %v2693, %v2733
            %v2765 = vadd.f32 %v2694, %v2733
            %v2766 = vadd.f32 %v2695, %v2733
            %v2767 = vadd.f32 %v2696, %v2733
            %v2768 = vadd.f32 %v2697, %v2733
            %v2769 = vadd.f32 %v2698, %v2733
            %v2770 = vadd.f32 %v2699, %v2733
            %v2771 = vadd.f32 %v2700, %v2733
            %v2772 = vadd.f32 %v2701, %v2733
            %v2773 = vadd.f32 %v2702, %v2733
            %v2774 = vadd.f32 %v2703, %v2733
            %v2775 = vadd.f32 %v2704, %v2733
            %v2776 = vadd.f32 %v2705, %v2733
            %v2777 = vadd.f32 %v2706, %v2733
            %v2778 = vadd.f32 %v2707, %v2733
            %v2779 = vadd.f32 %v2708, %v2733
            %v2780 = vadd.f32 %v2709, %v2733
            %v2781 = vadd.f32 %v2710, %v2733
            %v2782 = vadd.f32 %v2711, %v2733
            %v2783 = vadd.f32 %v2712, %v2733
            %v2784 = vadd.f32 %v2713, %v2733
            %v2785 = vadd.f32 %v2714, %v2733
            %v2786 = vadd.f32 %v2715, %v2733
            %v2787 = vadd.f32 %v2716, %v2733
            %v2788 = vadd.f32 %v2717, %v2733
            %v2789 = vadd.f32 %v2718, %v2733
            %v2790 = vadd.f32 %v2719, %v2733
            %v2791 = vadd.f32 %v2720, %v2733
            %v2792 = vadd.f32 %v2721, %v2733
            %v2793 = vadd.f32 %v2722, %v2733
            %v2794 = vadd.f32 %v2723, %v2733
            %v2795 = vadd.f32 %v2724, %v2733
            %v2796 = vadd.f32 %v2725, %v2733
            %v2797 = vadd.f32 %v2726, %v2733
            %v2798 = vadd.f32 %v2727, %v2733
            %v2799 = vmax.f32 %v2735, 0.0
            %v2800 = vmax.f32 %v2736, 0.0
            %v2801 = vmax.f32 %v2737, 0.0
            %v2802 = vmax.f32 %v2738, 0.0
            %v2803 = vmax.f32 %v2739, 0.0
            %v2804 = vmax.f32 %v2740, 0.0
            %v2805 = vmax.f32 %v2741, 0.0
            %v2806 = vmax.f32 %v2742, 0.0
            %v2807 = vmax.f32 %v2743, 0.0
            %v2808 = vmax.f32 %v2744, 0.0
            %v2809 = vmax.f32 %v2745, 0.0
            %v2810 = vmax.f32 %v2746, 0.0
            %v2811 = vmax.f32 %v2747, 0.0
            %v2812 = vmax.f32 %v2748, 0.0
            %v2813 = vmax.f32 %v2749, 0.0
            %v2814 = vmax.f32 %v2750, 0.0
            %v2815 = vmax.f32 %v2751, 0.0
            %v2816 = vmax.f32 %v2752, 0.0
            %v2817 = vmax.f32 %v2753, 0.0
            %v2818 = vmax.f32 %v2754, 0.0
            %v2819 = vmax.f32 %v2755, 0.0
            %v2820 = vmax.f32 %v2756, 0.0
            %v2821 = vmax.f32 %v2757, 0.0
            %v2822 = vmax.f32 %v2758, 0.0
            %v2823 = vmax.f32 %v2759, 0.0
            %v2824 = vmax.f32 %v2760, 0.0
            %v2825 = vmax.f32 %v2761, 0.0
            %v2826 = vmax.f32 %v2762, 0.0
            %v2827 = vmax.f32 %v2763, 0.0
            %v2828 = vmax.f32 %v2764, 0.0
            %v2829 = vmax.f32 %v2765, 0.0
            %v2830 = vmax.f32 %v2766, 0.0
            %v2831 = vmax.f32 %v2767, 0.0
            %v2832 = vmax.f32 %v2768, 0.0
            %v2833 = vmax.f32 %v2769, 0.0
            %v2834 = vmax.f32 %v2770, 0.0
            %v2835 = vmax.f32 %v2771, 0.0
            %v2836 = vmax.f32 %v2772, 0.0
            %v2837 = vmax.f32 %v2773, 0.0
            %v2838 = vmax.f32 %v2774, 0.0
            %v2839 = vmax.f32 %v2775, 0.0
            %v2840 = vmax.f32 %v2776, 0.0
            %v2841 = vmax.f32 %v2777, 0.0
            %v2842 = vmax.f32 %v2778, 0.0
            %v2843 = vmax.f32 %v2779, 0.0
            %v2844 = vmax.f32 %v2780, 0.0
            %v2845 = vmax.f32 %v2781, 0.0
            %v2846 = vmax.f32 %v2782, 0.0
            %v2847 = vmax.f32 %v2783, 0.0
            %v2848 = vmax.f32 %v2784, 0.0
            %v2849 = vmax.f32 %v2785, 0.0
            %v2850 = vmax.f32 %v2786, 0.0
            %v2851 = vmax.f32 %v2787, 0.0
            %v2852 = vmax.f32 %v2788, 0.0
            %v2853 = vmax.f32 %v2789, 0.0
            %v2854 = vmax.f32 %v2790, 0.0
            %v2855 = vmax.f32 %v2791, 0.0
            %v2856 = vmax.f32 %v2792, 0.0
            %v2857 = vmax.f32 %v2793, 0.0
            %v2858 = vmax.f32 %v2794, 0.0
            %v2859 = vmax.f32 %v2795, 0.0
            %v2860 = vmax.f32 %v2796, 0.0
            %v2861 = vmax.f32 %v2797, 0.0
            %v2862 = vmax.f32 %v2798, 0.0
            %v2863 = vpack.c.bf16 %v2800, %v2799
            %v2864 = vpack.c.bf16 %v2802, %v2801
            %v2865 = vpack.c.bf16 %v2804, %v2803
            %v2866 = vpack.c.bf16 %v2806, %v2805
            %v2867 = vpack.c.bf16 %v2808, %v2807
            %v2868 = vpack.c.bf16 %v2810, %v2809
            %v2869 = vpack.c.bf16 %v2812, %v2811
            %v2870 = vpack.c.bf16 %v2814, %v2813
            %v2871 = vpack.c.bf16 %v2816, %v2815
            %v2872 = vpack.c.bf16 %v2818, %v2817
            %v2873 = vpack.c.bf16 %v2820, %v2819
            %v2874 = vpack.c.bf16 %v2822, %v2821
            %v2875 = vpack.c.bf16 %v2824, %v2823
            %v2876 = vpack.c.bf16 %v2826, %v2825
            %v2877 = vpack.c.bf16 %v2828, %v2827
            %v2878 = vpack.c.bf16 %v2830, %v2829
            %v2879 = vpack.c.bf16 %v2832, %v2831
            %v2880 = vpack.c.bf16 %v2834, %v2833
            %v2881 = vpack.c.bf16 %v2836, %v2835
            %v2882 = vpack.c.bf16 %v2838, %v2837
            %v2883 = vpack.c.bf16 %v2840, %v2839
            %v2884 = vpack.c.bf16 %v2842, %v2841
            %v2885 = vpack.c.bf16 %v2844, %v2843
            %v2886 = vpack.c.bf16 %v2846, %v2845
            %v2887 = vpack.c.bf16 %v2848, %v2847
            %v2888 = vpack.c.bf16 %v2850, %v2849
            %v2889 = vpack.c.bf16 %v2852, %v2851
            %v2890 = vpack.c.bf16 %v2854, %v2853
            %v2891 = vpack.c.bf16 %v2856, %v2855
            %v2892 = vpack.c.bf16 %v2858, %v2857
            %v2893 = vpack.c.bf16 %v2860, %v2859
            %v2894 = vpack.c.bf16 %v2862, %v2861
            %v2895 = vld [vmem:[#allocation12] sm:$0xf]
            %v2896 = vld [vmem:[#allocation12 + $0x4] sm:$0xf]
            %v2897 = vld [vmem:[#allocation12 + $0x8] sm:$0xf]
            %v2898 = vld [vmem:[#allocation12 + $0xc] sm:$0xf]
            %v2899 = vld [vmem:[#allocation12 + $0x10] sm:$0xf]
            %v2900 = vld [vmem:[#allocation12 + $0x14] sm:$0xf]
            %v2901 = vld [vmem:[#allocation12 + $0x18] sm:$0xf]
            %v2902 = vld [vmem:[#allocation12 + $0x1c] sm:$0xf]
            %v2903 = vld [vmem:[#allocation12 + $0x20] sm:$0xf]
            %v2904 = vld [vmem:[#allocation12 + $0x24] sm:$0xf]
            %v2905 = vld [vmem:[#allocation12 + $0x28] sm:$0xf]
            %v2906 = vld [vmem:[#allocation12 + $0x2c] sm:$0xf]
            %v2907 = vld [vmem:[#allocation12 + $0x30] sm:$0xf]
            %v2908 = vld [vmem:[#allocation12 + $0x34] sm:$0xf]
            %v2909 = vld [vmem:[#allocation12 + $0x38] sm:$0xf]
            %v2910 = vld [vmem:[#allocation12 + $0x3c] sm:$0xf]
            %v2927 = vunpack.c.l.b16 %v2895
            %v2928 = vunpack.c.l.b16 %v2896
            %v2929 = vunpack.c.l.b16 %v2897
            %v2930 = vunpack.c.l.b16 %v2898
            %v2931 = vunpack.c.l.b16 %v2899
            %v2932 = vunpack.c.l.b16 %v2900
            %v2933 = vunpack.c.l.b16 %v2901
            %v2934 = vunpack.c.l.b16 %v2902
            %v2935 = vunpack.c.l.b16 %v2903
            %v2936 = vunpack.c.l.b16 %v2904
            %v2937 = vunpack.c.l.b16 %v2905
            %v2938 = vunpack.c.l.b16 %v2906
            %v2939 = vunpack.c.l.b16 %v2907
            %v2940 = vunpack.c.l.b16 %v2908
            %v2941 = vunpack.c.l.b16 %v2909
            %v2942 = vunpack.c.l.b16 %v2910
            %v2943 = vpack.c.b16 %v2928, %v2927
            %v2944 = vpack.c.b16 %v2930, %v2929
            %v2945 = vpack.c.b16 %v2932, %v2931
            %v2946 = vpack.c.b16 %v2934, %v2933
            %v2947 = vpack.c.b16 %v2936, %v2935
            %v2948 = vpack.c.b16 %v2938, %v2937
            %v2949 = vpack.c.b16 %v2940, %v2939
            %v2950 = vpack.c.b16 %v2942, %v2941
            %2959 = vmatprep.subr.bf16.mxu0 0
            %2960 = vmatpush1.bf16.msra.mxu0 %v2943
            %2961 = vmatprep.subr.bf16.mxu0 0
            %2962 = vmatpush1.bf16.msra.mxu0 %v2944
            %2963 = vmatprep.subr.bf16.mxu0 0
            %2964 = vmatpush1.bf16.msra.mxu0 %v2945
            %2965 = vmatprep.subr.bf16.mxu0 0
            %2966 = vmatpush1.bf16.msra.mxu0 %v2946
            %2967 = vmatprep.subr.bf16.mxu0 0
            %2968 = vmatpush1.bf16.msra.mxu0 %v2947
            %2969 = vmatprep.subr.bf16.mxu0 0
            %2970 = vmatpush1.bf16.msra.mxu0 %v2948
            %2971 = vmatprep.subr.bf16.mxu0 0
            %2972 = vmatpush1.bf16.msra.mxu0 %v2949
            %2973 = vmatprep.subr.bf16.mxu0 0
            %2974 = vmatpush1.bf16.msra.mxu0 %v2950
            %2975 = vmatprep.subr.bf16.mxu0 0
            %2976 = vmatpush1.bf16.msra.mxu0 0
            %2977 = vmatprep.subr.bf16.mxu0 0
            %2978 = vmatpush1.bf16.msra.mxu0 0
            %2979 = vmatprep.subr.bf16.mxu0 0
            %2980 = vmatpush1.bf16.msra.mxu0 0
            %2981 = vmatprep.subr.bf16.mxu0 0
            %2982 = vmatpush1.bf16.msra.mxu0 0
            %2983 = vmatprep.subr.bf16.mxu0 0
            %2984 = vmatpush1.bf16.msra.mxu0 0
            %2985 = vmatprep.subr.bf16.mxu0 0
            %2986 = vmatpush1.bf16.msra.mxu0 0
            %2987 = vmatprep.subr.bf16.mxu0 0
            %2988 = vmatpush1.bf16.msra.mxu0 0
            %2989 = vmatprep.subr.bf16.mxu0 0
            %2990 = vmatpush1.bf16.msra.mxu0 0
            %2991 = vmatprep.mubr.bf16.mxu0 0
            %2992 = vmatmul.mubr.bf16.gmra.mrb[0].mxu0 %v2863
            %v2993 = vpop.f32.mrb[0].mxu0
            %v2994 = vadd.f32 0.0, %v2993
            %v2995 = vpop.f32.mrb[0].mxu0
            %v2996 = vpop.f32.mrb[0].mxu0
            %v2997 = vadd.f32 0.0, %v2996
            %v2998 = vpop.f32.mrb[0].mxu0
            %2999 = vmatprep.mubr.bf16.mxu0 0
            %3000 = vmatmul.mubr.bf16.gmra.mrb[0].mxu0 %v2864
            %v3001 = vpop.f32.mrb[0].mxu0
            %v3002 = vadd.f32 0.0, %v3001
            %v3003 = vpop.f32.mrb[0].mxu0
            %v3004 = vpop.f32.mrb[0].mxu0
            %v3005 = vadd.f32 0.0, %v3004
            %v3006 = vpop.f32.mrb[0].mxu0
            %3007 = vmatprep.mubr.bf16.mxu0 0
            %3008 = vmatmul.mubr.bf16.gmra.mrb[0].mxu0 %v2865
            %v3009 = vpop.f32.mrb[0].mxu0
            %v3010 = vadd.f32 0.0, %v3009
            %v3011 = vpop.f32.mrb[0].mxu0
            %v3012 = vpop.f32.mrb[0].mxu0
            %v3013 = vadd.f32 0.0, %v3012
            %v3014 = vpop.f32.mrb[0].mxu0
            %3015 = vmatprep.mubr.bf16.mxu0 0
            %3016 = vmatmul.mubr.bf16.gmra.mrb[0].mxu0 %v2866
            %v3017 = vpop.f32.mrb[0].mxu0
            %v3018 = vadd.f32 0.0, %v3017
            %v3019 = vpop.f32.mrb[0].mxu0
            %v3020 = vpop.f32.mrb[0].mxu0
            %v3021 = vadd.f32 0.0, %v3020
            %v3022 = vpop.f32.mrb[0].mxu0
            %3023 = vmatprep.mubr.bf16.mxu0 0
            %3024 = vmatmul.mubr.bf16.gmra.mrb[0].mxu0 %v2867
            %v3025 = vpop.f32.mrb[0].mxu0
            %v3026 = vadd.f32 0.0, %v3025
            %v3027 = vpop.f32.mrb[0].mxu0
            %v3028 = vpop.f32.mrb[0].mxu0
            %v3029 = vadd.f32 0.0, %v3028
            %v3030 = vpop.f32.mrb[0].mxu0
            %3031 = vmatprep.mubr.bf16.mxu0 0
            %3032 = vmatmul.mubr.bf16.gmra.mrb[0].mxu0 %v2868
            %v3033 = vpop.f32.mrb[0].mxu0
            %v3034 = vadd.f32 0.0, %v3033
            %v3035 = vpop.f32.mrb[0].mxu0
            %v3036 = vpop.f32.mrb[0].mxu0
            %v3037 = vadd.f32 0.0, %v3036
            %v3038 = vpop.f32.mrb[0].mxu0
            %3039 = vmatprep.mubr.bf16.mxu0 0
            %3040 = vmatmul.mubr.bf16.gmra.mrb[0].mxu0 %v2869
            %v3041 = vpop.f32.mrb[0].mxu0
            %v3042 = vadd.f32 0.0, %v3041
            %v3043 = vpop.f32.mrb[0].mxu0
            %v3044 = vpop.f32.mrb[0].mxu0
            %v3045 = vadd.f32 0.0, %v3044
            %v3046 = vpop.f32.mrb[0].mxu0
            %3047 = vmatprep.mubr.bf16.mxu0 0
            %3048 = vmatmul.mubr.bf16.gmra.mrb[0].mxu0 %v2870
            %v3049 = vpop.f32.mrb[0].mxu0
            %v3050 = vadd.f32 0.0, %v3049
            %v3051 = vpop.f32.mrb[0].mxu0
            %v3052 = vpop.f32.mrb[0].mxu0
            %v3053 = vadd.f32 0.0, %v3052
            %v3054 = vpop.f32.mrb[0].mxu0
            %3055 = vmatprep.mubr.bf16.mxu0 0
            %3056 = vmatmul.mubr.bf16.gmra.mrb[0].mxu0 %v2871
            %v3057 = vpop.f32.mrb[0].mxu0
            %v3058 = vadd.f32 0.0, %v3057
            %v3059 = vpop.f32.mrb[0].mxu0
            %v3060 = vpop.f32.mrb[0].mxu0
            %v3061 = vadd.f32 0.0, %v3060
            %v3062 = vpop.f32.mrb[0].mxu0
            %3063 = vmatprep.mubr.bf16.mxu0 0
            %3064 = vmatmul.mubr.bf16.gmra.mrb[0].mxu0 %v2872
            %v3065 = vpop.f32.mrb[0].mxu0
            %v3066 = vadd.f32 0.0, %v3065
            %v3067 = vpop.f32.mrb[0].mxu0
            %v3068 = vpop.f32.mrb[0].mxu0
            %v3069 = vadd.f32 0.0, %v3068
            %v3070 = vpop.f32.mrb[0].mxu0
            %3071 = vmatprep.mubr.bf16.mxu0 0
            %3072 = vmatmul.mubr.bf16.gmra.mrb[0].mxu0 %v2873
            %v3073 = vpop.f32.mrb[0].mxu0
            %v3074 = vadd.f32 0.0, %v3073
            %v3075 = vpop.f32.mrb[0].mxu0
            %v3076 = vpop.f32.mrb[0].mxu0
            %v3077 = vadd.f32 0.0, %v3076
            %v3078 = vpop.f32.mrb[0].mxu0
            %3079 = vmatprep.mubr.bf16.mxu0 0
            %3080 = vmatmul.mubr.bf16.gmra.mrb[0].mxu0 %v2874
            %v3081 = vpop.f32.mrb[0].mxu0
            %v3082 = vadd.f32 0.0, %v3081
            %v3083 = vpop.f32.mrb[0].mxu0
            %v3084 = vpop.f32.mrb[0].mxu0
            %v3085 = vadd.f32 0.0, %v3084
            %v3086 = vpop.f32.mrb[0].mxu0
            %3087 = vmatprep.mubr.bf16.mxu0 0
            %3088 = vmatmul.mubr.bf16.gmra.mrb[0].mxu0 %v2875
            %v3089 = vpop.f32.mrb[0].mxu0
            %v3090 = vadd.f32 0.0, %v3089
            %v3091 = vpop.f32.mrb[0].mxu0
            %v3092 = vpop.f32.mrb[0].mxu0
            %v3093 = vadd.f32 0.0, %v3092
            %v3094 = vpop.f32.mrb[0].mxu0
            %3095 = vmatprep.mubr.bf16.mxu0 0
            %3096 = vmatmul.mubr.bf16.gmra.mrb[0].mxu0 %v2876
            %v3097 = vpop.f32.mrb[0].mxu0
            %v3098 = vadd.f32 0.0, %v3097
            %v3099 = vpop.f32.mrb[0].mxu0
            %v3100 = vpop.f32.mrb[0].mxu0
            %v3101 = vadd.f32 0.0, %v3100
            %v3102 = vpop.f32.mrb[0].mxu0
            %3103 = vmatprep.mubr.bf16.mxu0 0
            %3104 = vmatmul.mubr.bf16.gmra.mrb[0].mxu0 %v2877
            %v3105 = vpop.f32.mrb[0].mxu0
            %v3106 = vadd.f32 0.0, %v3105
            %v3107 = vpop.f32.mrb[0].mxu0
            %v3108 = vpop.f32.mrb[0].mxu0
            %v3109 = vadd.f32 0.0, %v3108
            %v3110 = vpop.f32.mrb[0].mxu0
            %3111 = vmatprep.mubr.bf16.mxu0 0
            %3112 = vmatmul.mubr.bf16.gmra.mrb[0].mxu0 %v2878
            %v3113 = vpop.f32.mrb[0].mxu0
            %v3114 = vadd.f32 0.0, %v3113
            %v3115 = vpop.f32.mrb[0].mxu0
            %v3116 = vpop.f32.mrb[0].mxu0
            %v3117 = vadd.f32 0.0, %v3116
            %v3118 = vpop.f32.mrb[0].mxu0
            %3119 = vmatprep.mubr.bf16.mxu0 0
            %3120 = vmatmul.mubr.bf16.gmra.mrb[0].mxu0 %v2879
            %v3121 = vpop.f32.mrb[0].mxu0
            %v3122 = vadd.f32 0.0, %v3121
            %v3123 = vpop.f32.mrb[0].mxu0
            %v3124 = vpop.f32.mrb[0].mxu0
            %v3125 = vadd.f32 0.0, %v3124
            %v3126 = vpop.f32.mrb[0].mxu0
            %3127 = vmatprep.mubr.bf16.mxu0 0
            %3128 = vmatmul.mubr.bf16.gmra.mrb[0].mxu0 %v2880
            %v3129 = vpop.f32.mrb[0].mxu0
            %v3130 = vadd.f32 0.0, %v3129
            %v3131 = vpop.f32.mrb[0].mxu0
            %v3132 = vpop.f32.mrb[0].mxu0
            %v3133 = vadd.f32 0.0, %v3132
            %v3134 = vpop.f32.mrb[0].mxu0
            %3135 = vmatprep.mubr.bf16.mxu0 0
            %3136 = vmatmul.mubr.bf16.gmra.mrb[0].mxu0 %v2881
            %v3137 = vpop.f32.mrb[0].mxu0
            %v3138 = vadd.f32 0.0, %v3137
            %v3139 = vpop.f32.mrb[0].mxu0
            %v3140 = vpop.f32.mrb[0].mxu0
            %v3141 = vadd.f32 0.0, %v3140
            %v3142 = vpop.f32.mrb[0].mxu0
            %3143 = vmatprep.mubr.bf16.mxu0 0
            %3144 = vmatmul.mubr.bf16.gmra.mrb[0].mxu0 %v2882
            %v3145 = vpop.f32.mrb[0].mxu0
            %v3146 = vadd.f32 0.0, %v3145
            %v3147 = vpop.f32.mrb[0].mxu0
            %v3148 = vpop.f32.mrb[0].mxu0
            %v3149 = vadd.f32 0.0, %v3148
            %v3150 = vpop.f32.mrb[0].mxu0
            %3151 = vmatprep.mubr.bf16.mxu0 0
            %3152 = vmatmul.mubr.bf16.gmra.mrb[0].mxu0 %v2883
            %v3153 = vpop.f32.mrb[0].mxu0
            %v3154 = vadd.f32 0.0, %v3153
            %v3155 = vpop.f32.mrb[0].mxu0
            %v3156 = vpop.f32.mrb[0].mxu0
            %v3157 = vadd.f32 0.0, %v3156
            %v3158 = vpop.f32.mrb[0].mxu0
            %3159 = vmatprep.mubr.bf16.mxu0 0
            %3160 = vmatmul.mubr.bf16.gmra.mrb[0].mxu0 %v2884
            %v3161 = vpop.f32.mrb[0].mxu0
            %v3162 = vadd.f32 0.0, %v3161
            %v3163 = vpop.f32.mrb[0].mxu0
            %v3164 = vpop.f32.mrb[0].mxu0
            %v3165 = vadd.f32 0.0, %v3164
            %v3166 = vpop.f32.mrb[0].mxu0
            %3167 = vmatprep.mubr.bf16.mxu0 0
            %3168 = vmatmul.mubr.bf16.gmra.mrb[0].mxu0 %v2885
            %v3169 = vpop.f32.mrb[0].mxu0
            %v3170 = vadd.f32 0.0, %v3169
            %v3171 = vpop.f32.mrb[0].mxu0
            %v3172 = vpop.f32.mrb[0].mxu0
            %v3173 = vadd.f32 0.0, %v3172
            %v3174 = vpop.f32.mrb[0].mxu0
            %3175 = vmatprep.mubr.bf16.mxu0 0
            %3176 = vmatmul.mubr.bf16.gmra.mrb[0].mxu0 %v2886
            %v3177 = vpop.f32.mrb[0].mxu0
            %v3178 = vadd.f32 0.0, %v3177
            %v3179 = vpop.f32.mrb[0].mxu0
            %v3180 = vpop.f32.mrb[0].mxu0
            %v3181 = vadd.f32 0.0, %v3180
            %v3182 = vpop.f32.mrb[0].mxu0
            %3183 = vmatprep.mubr.bf16.mxu0 0
            %3184 = vmatmul.mubr.bf16.gmra.mrb[0].mxu0 %v2887
            %v3185 = vpop.f32.mrb[0].mxu0
            %v3186 = vadd.f32 0.0, %v3185
            %v3187 = vpop.f32.mrb[0].mxu0
            %v3188 = vpop.f32.mrb[0].mxu0
            %v3189 = vadd.f32 0.0, %v3188
            %v3190 = vpop.f32.mrb[0].mxu0
            %3191 = vmatprep.mubr.bf16.mxu0 0
            %3192 = vmatmul.mubr.bf16.gmra.mrb[0].mxu0 %v2888
            %v3193 = vpop.f32.mrb[0].mxu0
            %v3194 = vadd.f32 0.0, %v3193
            %v3195 = vpop.f32.mrb[0].mxu0
            %v3196 = vpop.f32.mrb[0].mxu0
            %v3197 = vadd.f32 0.0, %v3196
            %v3198 = vpop.f32.mrb[0].mxu0
            %3199 = vmatprep.mubr.bf16.mxu0 0
            %3200 = vmatmul.mubr.bf16.gmra.mrb[0].mxu0 %v2889
            %v3201 = vpop.f32.mrb[0].mxu0
            %v3202 = vadd.f32 0.0, %v3201
            %v3203 = vpop.f32.mrb[0].mxu0
            %v3204 = vpop.f32.mrb[0].mxu0
            %v3205 = vadd.f32 0.0, %v3204
            %v3206 = vpop.f32.mrb[0].mxu0
            %3207 = vmatprep.mubr.bf16.mxu0 0
            %3208 = vmatmul.mubr.bf16.gmra.mrb[0].mxu0 %v2890
            %v3209 = vpop.f32.mrb[0].mxu0
            %v3210 = vadd.f32 0.0, %v3209
            %v3211 = vpop.f32.mrb[0].mxu0
            %v3212 = vpop.f32.mrb[0].mxu0
            %v3213 = vadd.f32 0.0, %v3212
            %v3214 = vpop.f32.mrb[0].mxu0
            %3215 = vmatprep.mubr.bf16.mxu0 0
            %3216 = vmatmul.mubr.bf16.gmra.mrb[0].mxu0 %v2891
            %v3217 = vpop.f32.mrb[0].mxu0
            %v3218 = vadd.f32 0.0, %v3217
            %v3219 = vpop.f32.mrb[0].mxu0
            %v3220 = vpop.f32.mrb[0].mxu0
            %v3221 = vadd.f32 0.0, %v3220
            %v3222 = vpop.f32.mrb[0].mxu0
            %3223 = vmatprep.mubr.bf16.mxu0 0
            %3224 = vmatmul.mubr.bf16.gmra.mrb[0].mxu0 %v2892
            %v3225 = vpop.f32.mrb[0].mxu0
            %v3226 = vadd.f32 0.0, %v3225
            %v3227 = vpop.f32.mrb[0].mxu0
            %v3228 = vpop.f32.mrb[0].mxu0
            %v3229 = vadd.f32 0.0, %v3228
            %v3230 = vpop.f32.mrb[0].mxu0
            %3231 = vmatprep.mubr.bf16.mxu0 0
            %3232 = vmatmul.mubr.bf16.gmra.mrb[0].mxu0 %v2893
            %v3233 = vpop.f32.mrb[0].mxu0
            %v3234 = vadd.f32 0.0, %v3233
            %v3235 = vpop.f32.mrb[0].mxu0
            %v3236 = vpop.f32.mrb[0].mxu0
            %v3237 = vadd.f32 0.0, %v3236
            %v3238 = vpop.f32.mrb[0].mxu0
            %3239 = vmatprep.mubr.bf16.mxu0 0
            %3240 = vmatmul.mubr.bf16.gmra.mrb[0].mxu0 %v2894
            %v3241 = vpop.f32.mrb[0].mxu0
            %v3242 = vadd.f32 0.0, %v3241
            %v3243 = vpop.f32.mrb[0].mxu0
            %v3244 = vpop.f32.mrb[0].mxu0
            %v3245 = vadd.f32 0.0, %v3244
            %v3246 = vpop.f32.mrb[0].mxu0
            %3247 = vdwg.mxu0
            %v3248 = vpack.c.bf16 %v2997, %v2994
            %v3249 = vpack.c.bf16 %v3005, %v3002
            %v3250 = vpack.c.bf16 %v3013, %v3010
            %v3251 = vpack.c.bf16 %v3021, %v3018
            %v3252 = vpack.c.bf16 %v3029, %v3026
            %v3253 = vpack.c.bf16 %v3037, %v3034
            %v3254 = vpack.c.bf16 %v3045, %v3042
            %v3255 = vpack.c.bf16 %v3053, %v3050
            %v3256 = vpack.c.bf16 %v3061, %v3058
            %v3257 = vpack.c.bf16 %v3069, %v3066
            %v3258 = vpack.c.bf16 %v3077, %v3074
            %v3259 = vpack.c.bf16 %v3085, %v3082
            %v3260 = vpack.c.bf16 %v3093, %v3090
            %v3261 = vpack.c.bf16 %v3101, %v3098
            %v3262 = vpack.c.bf16 %v3109, %v3106
            %v3263 = vpack.c.bf16 %v3117, %v3114
            %v3264 = vpack.c.bf16 %v3125, %v3122
            %v3265 = vpack.c.bf16 %v3133, %v3130
            %v3266 = vpack.c.bf16 %v3141, %v3138
            %v3267 = vpack.c.bf16 %v3149, %v3146
            %v3268 = vpack.c.bf16 %v3157, %v3154
            %v3269 = vpack.c.bf16 %v3165, %v3162
            %v3270 = vpack.c.bf16 %v3173, %v3170
            %v3271 = vpack.c.bf16 %v3181, %v3178
            %v3272 = vpack.c.bf16 %v3189, %v3186
            %v3273 = vpack.c.bf16 %v3197, %v3194
            %v3274 = vpack.c.bf16 %v3205, %v3202
            %v3275 = vpack.c.bf16 %v3213, %v3210
            %v3276 = vpack.c.bf16 %v3221, %v3218
            %v3277 = vpack.c.bf16 %v3229, %v3226
            %v3278 = vpack.c.bf16 %v3237, %v3234
            %v3279 = vpack.c.bf16 %v3245, %v3242
            %s3280 = sshra.s32 %s329, 4
            %s3281 = sand.u32 %s329, 15
            %s3282 = smul.addr %s3280, 8
            %s3283 = scalar_lea.vmem [#allocation3], %s3282
            %3284 = vst [vmem:[%s3283] sm:$0xff] %v3248
            %3285 = vst [vmem:[%s3283 + $0x8] sm:$0xff] %v3249
            %3286 = vst [vmem:[%s3283 + $0x10] sm:$0xff] %v3250
            %3287 = vst [vmem:[%s3283 + $0x18] sm:$0xff] %v3251
            %3288 = vst [vmem:[%s3283 + $0x20] sm:$0xff] %v3252
            %3289 = vst [vmem:[%s3283 + $0x28] sm:$0xff] %v3253
            %3290 = vst [vmem:[%s3283 + $0x30] sm:$0xff] %v3254
            %3291 = vst [vmem:[%s3283 + $0x38] sm:$0xff] %v3255
            %3292 = vst [vmem:[%s3283 + $0x40] sm:$0xff] %v3256
            %3293 = vst [vmem:[%s3283 + $0x48] sm:$0xff] %v3257
            %3294 = vst [vmem:[%s3283 + $0x50] sm:$0xff] %v3258
            %3295 = vst [vmem:[%s3283 + $0x58] sm:$0xff] %v3259
            %3296 = vst [vmem:[%s3283 + $0x60] sm:$0xff] %v3260
            %3297 = vst [vmem:[%s3283 + $0x68] sm:$0xff] %v3261
            %3298 = vst [vmem:[%s3283 + $0x70] sm:$0xff] %v3262
            %3299 = vst [vmem:[%s3283 + $0x78] sm:$0xff] %v3263
            %3300 = vst [vmem:[%s3283 + $0x80] sm:$0xff] %v3264
            %3301 = vst [vmem:[%s3283 + $0x88] sm:$0xff] %v3265
            %3302 = vst [vmem:[%s3283 + $0x90] sm:$0xff] %v3266
            %3303 = vst [vmem:[%s3283 + $0x98] sm:$0xff] %v3267
            %3304 = vst [vmem:[%s3283 + $0xa0] sm:$0xff] %v3268
            %3305 = vst [vmem:[%s3283 + $0xa8] sm:$0xff] %v3269
            %3306 = vst [vmem:[%s3283 + $0xb0] sm:$0xff] %v3270
            %3307 = vst [vmem:[%s3283 + $0xb8] sm:$0xff] %v3271
            %3308 = vst [vmem:[%s3283 + $0xc0] sm:$0xff] %v3272
            %3309 = vst [vmem:[%s3283 + $0xc8] sm:$0xff] %v3273
            %3310 = vst [vmem:[%s3283 + $0xd0] sm:$0xff] %v3274
            %3311 = vst [vmem:[%s3283 + $0xd8] sm:$0xff] %v3275
            %3312 = vst [vmem:[%s3283 + $0xe0] sm:$0xff] %v3276
            %3313 = vst [vmem:[%s3283 + $0xe8] sm:$0xff] %v3277
            %3314 = vst [vmem:[%s3283 + $0xf0] sm:$0xff] %v3278
            %3315 = vst [vmem:[%s3283 + $0xf8] sm:$0xff] %v3279
          $region76: #{tpu_custom_call.1} parent=63 // pred_fallthru
            _
        $region64: #{tpu_custom_call.1} parent=43 // pred_fallthru
          _
        %p3316 = scmp.eq.s32.totalorder %s28, 1
        // Predicated region
        $region77: #{tpu_custom_call.1} parent=43 // pred_check
          %p3317 = pneg %p3316
        $region78: #{tpu_custom_call.1} parent=43 // pred_check_branch
          %3319 = sbr.rel (%p3317) target = $region80
        $region79: #{tpu_custom_call.1} parent=43 // pred_region
          %p3320 = scmp.eq.s32.totalorder %s30, 0
          // Predicated region
          $region81: #{tpu_custom_call.1} parent=79 // pred_check
            %p3321 = pneg %p3320
          $region82: #{tpu_custom_call.1} parent=79 // pred_check_branch
            %3323 = sbr.rel (%p3321) target = $region84
          $region83: #{tpu_custom_call.1} parent=79 // pred_region
            %3324 = vst [vmem:[#allocation5] sm:$0xff] 0.0
            %3325 = vst [vmem:[#allocation5 + $0x8] sm:$0xff] 0.0
            %3326 = vst [vmem:[#allocation5 + $0x10] sm:$0xff] 0.0
            %3327 = vst [vmem:[#allocation5 + $0x18] sm:$0xff] 0.0
            %3328 = vst [vmem:[#allocation5 + $0x20] sm:$0xff] 0.0
            %3329 = vst [vmem:[#allocation5 + $0x28] sm:$0xff] 0.0
            %3330 = vst [vmem:[#allocation5 + $0x30] sm:$0xff] 0.0
            %3331 = vst [vmem:[#allocation5 + $0x38] sm:$0xff] 0.0
            %3332 = vst [vmem:[#allocation5 + $0x40] sm:$0xff] 0.0
            %3333 = vst [vmem:[#allocation5 + $0x48] sm:$0xff] 0.0
            %3334 = vst [vmem:[#allocation5 + $0x50] sm:$0xff] 0.0
            %3335 = vst [vmem:[#allocation5 + $0x58] sm:$0xff] 0.0
            %3336 = vst [vmem:[#allocation5 + $0x60] sm:$0xff] 0.0
            %3337 = vst [vmem:[#allocation5 + $0x68] sm:$0xff] 0.0
            %3338 = vst [vmem:[#allocation5 + $0x70] sm:$0xff] 0.0
            %3339 = vst [vmem:[#allocation5 + $0x78] sm:$0xff] 0.0
            %3340 = vst [vmem:[#allocation5 + $0x80] sm:$0xff] 0.0
            %3341 = vst [vmem:[#allocation5 + $0x88] sm:$0xff] 0.0
            %3342 = vst [vmem:[#allocation5 + $0x90] sm:$0xff] 0.0
            %3343 = vst [vmem:[#allocation5 + $0x98] sm:$0xff] 0.0
            %3344 = vst [vmem:[#allocation5 + $0xa0] sm:$0xff] 0.0
            %3345 = vst [vmem:[#allocation5 + $0xa8] sm:$0xff] 0.0
            %3346 = vst [vmem:[#allocation5 + $0xb0] sm:$0xff] 0.0
            %3347 = vst [vmem:[#allocation5 + $0xb8] sm:$0xff] 0.0
            %3348 = vst [vmem:[#allocation5 + $0xc0] sm:$0xff] 0.0
            %3349 = vst [vmem:[#allocation5 + $0xc8] sm:$0xff] 0.0
            %3350 = vst [vmem:[#allocation5 + $0xd0] sm:$0xff] 0.0
            %3351 = vst [vmem:[#allocation5 + $0xd8] sm:$0xff] 0.0
            %3352 = vst [vmem:[#allocation5 + $0xe0] sm:$0xff] 0.0
            %3353 = vst [vmem:[#allocation5 + $0xe8] sm:$0xff] 0.0
            %3354 = vst [vmem:[#allocation5 + $0xf0] sm:$0xff] 0.0
            %3355 = vst [vmem:[#allocation5 + $0xf8] sm:$0xff] 0.0
            %3356 = vst [vmem:[#allocation5 + $0x100] sm:$0xff] 0.0
            %3357 = vst [vmem:[#allocation5 + $0x108] sm:$0xff] 0.0
            %3358 = vst [vmem:[#allocation5 + $0x110] sm:$0xff] 0.0
            %3359 = vst [vmem:[#allocation5 + $0x118] sm:$0xff] 0.0
            %3360 = vst [vmem:[#allocation5 + $0x120] sm:$0xff] 0.0
            %3361 = vst [vmem:[#allocation5 + $0x128] sm:$0xff] 0.0
            %3362 = vst [vmem:[#allocation5 + $0x130] sm:$0xff] 0.0
            %3363 = vst [vmem:[#allocation5 + $0x138] sm:$0xff] 0.0
            %3364 = vst [vmem:[#allocation5 + $0x140] sm:$0xff] 0.0
            %3365 = vst [vmem:[#allocation5 + $0x148] sm:$0xff] 0.0
            %3366 = vst [vmem:[#allocation5 + $0x150] sm:$0xff] 0.0
            %3367 = vst [vmem:[#allocation5 + $0x158] sm:$0xff] 0.0
            %3368 = vst [vmem:[#allocation5 + $0x160] sm:$0xff] 0.0
            %3369 = vst [vmem:[#allocation5 + $0x168] sm:$0xff] 0.0
            %3370 = vst [vmem:[#allocation5 + $0x170] sm:$0xff] 0.0
            %3371 = vst [vmem:[#allocation5 + $0x178] sm:$0xff] 0.0
            %3372 = vst [vmem:[#allocation5 + $0x180] sm:$0xff] 0.0
            %3373 = vst [vmem:[#allocation5 + $0x188] sm:$0xff] 0.0
            %3374 = vst [vmem:[#allocation5 + $0x190] sm:$0xff] 0.0
            %3375 = vst [vmem:[#allocation5 + $0x198] sm:$0xff] 0.0
            %3376 = vst [vmem:[#allocation5 + $0x1a0] sm:$0xff] 0.0
            %3377 = vst [vmem:[#allocation5 + $0x1a8] sm:$0xff] 0.0
            %3378 = vst [vmem:[#allocation5 + $0x1b0] sm:$0xff] 0.0
            %3379 = vst [vmem:[#allocation5 + $0x1b8] sm:$0xff] 0.0
            %3380 = vst [vmem:[#allocation5 + $0x1c0] sm:$0xff] 0.0
            %3381 = vst [vmem:[#allocation5 + $0x1c8] sm:$0xff] 0.0
            %3382 = vst [vmem:[#allocation5 + $0x1d0] sm:$0xff] 0.0
            %3383 = vst [vmem:[#allocation5 + $0x1d8] sm:$0xff] 0.0
            %3384 = vst [vmem:[#allocation5 + $0x1e0] sm:$0xff] 0.0
            %3385 = vst [vmem:[#allocation5 + $0x1e8] sm:$0xff] 0.0
            %3386 = vst [vmem:[#allocation5 + $0x1f0] sm:$0xff] 0.0
            %3387 = vst [vmem:[#allocation5 + $0x1f8] sm:$0xff] 0.0
          $region84: #{tpu_custom_call.1} parent=79 // pred_fallthru
            _
          %v3388 = vld [vmem:[#allocation5] sm:$0xff]
          %v3389 = vld [vmem:[#allocation5 + $0x8] sm:$0xff]
          %v3390 = vld [vmem:[#allocation5 + $0x10] sm:$0xff]
          %v3391 = vld [vmem:[#allocation5 + $0x18] sm:$0xff]
          %v3392 = vld [vmem:[#allocation5 + $0x20] sm:$0xff]
          %v3393 = vld [vmem:[#allocation5 + $0x28] sm:$0xff]
          %v3394 = vld [vmem:[#allocation5 + $0x30] sm:$0xff]
          %v3395 = vld [vmem:[#allocation5 + $0x38] sm:$0xff]
          %v3396 = vld [vmem:[#allocation5 + $0x40] sm:$0xff]
          %v3397 = vld [vmem:[#allocation5 + $0x48] sm:$0xff]
          %v3398 = vld [vmem:[#allocation5 + $0x50] sm:$0xff]
          %v3399 = vld [vmem:[#allocation5 + $0x58] sm:$0xff]
          %v3400 = vld [vmem:[#allocation5 + $0x60] sm:$0xff]
          %v3401 = vld [vmem:[#allocation5 + $0x68] sm:$0xff]
          %v3402 = vld [vmem:[#allocation5 + $0x70] sm:$0xff]
          %v3403 = vld [vmem:[#allocation5 + $0x78] sm:$0xff]
          %v3404 = vld [vmem:[#allocation5 + $0x80] sm:$0xff]
          %v3405 = vld [vmem:[#allocation5 + $0x88] sm:$0xff]
          %v3406 = vld [vmem:[#allocation5 + $0x90] sm:$0xff]
          %v3407 = vld [vmem:[#allocation5 + $0x98] sm:$0xff]
          %v3408 = vld [vmem:[#allocation5 + $0xa0] sm:$0xff]
          %v3409 = vld [vmem:[#allocation5 + $0xa8] sm:$0xff]
          %v3410 = vld [vmem:[#allocation5 + $0xb0] sm:$0xff]
          %v3411 = vld [vmem:[#allocation5 + $0xb8] sm:$0xff]
          %v3412 = vld [vmem:[#allocation5 + $0xc0] sm:$0xff]
          %v3413 = vld [vmem:[#allocation5 + $0xc8] sm:$0xff]
          %v3414 = vld [vmem:[#allocation5 + $0xd0] sm:$0xff]
          %v3415 = vld [vmem:[#allocation5 + $0xd8] sm:$0xff]
          %v3416 = vld [vmem:[#allocation5 + $0xe0] sm:$0xff]
          %v3417 = vld [vmem:[#allocation5 + $0xe8] sm:$0xff]
          %v3418 = vld [vmem:[#allocation5 + $0xf0] sm:$0xff]
          %v3419 = vld [vmem:[#allocation5 + $0xf8] sm:$0xff]
          %v3420 = vld [vmem:[#allocation5 + $0x100] sm:$0xff]
          %v3421 = vld [vmem:[#allocation5 + $0x108] sm:$0xff]
          %v3422 = vld [vmem:[#allocation5 + $0x110] sm:$0xff]
          %v3423 = vld [vmem:[#allocation5 + $0x118] sm:$0xff]
          %v3424 = vld [vmem:[#allocation5 + $0x120] sm:$0xff]
          %v3425 = vld [vmem:[#allocation5 + $0x128] sm:$0xff]
          %v3426 = vld [vmem:[#allocation5 + $0x130] sm:$0xff]
          %v3427 = vld [vmem:[#allocation5 + $0x138] sm:$0xff]
          %v3428 = vld [vmem:[#allocation5 + $0x140] sm:$0xff]
          %v3429 = vld [vmem:[#allocation5 + $0x148] sm:$0xff]
          %v3430 = vld [vmem:[#allocation5 + $0x150] sm:$0xff]
          %v3431 = vld [vmem:[#allocation5 + $0x158] sm:$0xff]
          %v3432 = vld [vmem:[#allocation5 + $0x160] sm:$0xff]
          %v3433 = vld [vmem:[#allocation5 + $0x168] sm:$0xff]
          %v3434 = vld [vmem:[#allocation5 + $0x170] sm:$0xff]
          %v3435 = vld [vmem:[#allocation5 + $0x178] sm:$0xff]
          %v3436 = vld [vmem:[#allocation5 + $0x180] sm:$0xff]
          %v3437 = vld [vmem:[#allocation5 + $0x188] sm:$0xff]
          %v3438 = vld [vmem:[#allocation5 + $0x190] sm:$0xff]
          %v3439 = vld [vmem:[#allocation5 + $0x198] sm:$0xff]
          %v3440 = vld [vmem:[#allocation5 + $0x1a0] sm:$0xff]
          %v3441 = vld [vmem:[#allocation5 + $0x1a8] sm:$0xff]
          %v3442 = vld [vmem:[#allocation5 + $0x1b0] sm:$0xff]
          %v3443 = vld [vmem:[#allocation5 + $0x1b8] sm:$0xff]
          %v3444 = vld [vmem:[#allocation5 + $0x1c0] sm:$0xff]
          %v3445 = vld [vmem:[#allocation5 + $0x1c8] sm:$0xff]
          %v3446 = vld [vmem:[#allocation5 + $0x1d0] sm:$0xff]
          %v3447 = vld [vmem:[#allocation5 + $0x1d8] sm:$0xff]
          %v3448 = vld [vmem:[#allocation5 + $0x1e0] sm:$0xff]
          %v3449 = vld [vmem:[#allocation5 + $0x1e8] sm:$0xff]
          %v3450 = vld [vmem:[#allocation5 + $0x1f0] sm:$0xff]
          %v3451 = vld [vmem:[#allocation5 + $0x1f8] sm:$0xff]
          %v3452 = vld [vmem:[#allocation6] sm:$0xff]
          %v3453 = vld [vmem:[#allocation6 + $0x8] sm:$0xff]
          %v3454 = vld [vmem:[#allocation6 + $0x10] sm:$0xff]
          %v3455 = vld [vmem:[#allocation6 + $0x18] sm:$0xff]
          %v3456 = vld [vmem:[#allocation6 + $0x20] sm:$0xff]
          %v3457 = vld [vmem:[#allocation6 + $0x28] sm:$0xff]
          %v3458 = vld [vmem:[#allocation6 + $0x30] sm:$0xff]
          %v3459 = vld [vmem:[#allocation6 + $0x38] sm:$0xff]
          %v3460 = vld [vmem:[#allocation6 + $0x40] sm:$0xff]
          %v3461 = vld [vmem:[#allocation6 + $0x48] sm:$0xff]
          %v3462 = vld [vmem:[#allocation6 + $0x50] sm:$0xff]
          %v3463 = vld [vmem:[#allocation6 + $0x58] sm:$0xff]
          %v3464 = vld [vmem:[#allocation6 + $0x60] sm:$0xff]
          %v3465 = vld [vmem:[#allocation6 + $0x68] sm:$0xff]
          %v3466 = vld [vmem:[#allocation6 + $0x70] sm:$0xff]
          %v3467 = vld [vmem:[#allocation6 + $0x78] sm:$0xff]
          %v3468 = vld [vmem:[#allocation6 + $0x80] sm:$0xff]
          %v3469 = vld [vmem:[#allocation6 + $0x88] sm:$0xff]
          %v3470 = vld [vmem:[#allocation6 + $0x90] sm:$0xff]
          %v3471 = vld [vmem:[#allocation6 + $0x98] sm:$0xff]
          %v3472 = vld [vmem:[#allocation6 + $0xa0] sm:$0xff]
          %v3473 = vld [vmem:[#allocation6 + $0xa8] sm:$0xff]
          %v3474 = vld [vmem:[#allocation6 + $0xb0] sm:$0xff]
          %v3475 = vld [vmem:[#allocation6 + $0xb8] sm:$0xff]
          %v3476 = vld [vmem:[#allocation6 + $0xc0] sm:$0xff]
          %v3477 = vld [vmem:[#allocation6 + $0xc8] sm:$0xff]
          %v3478 = vld [vmem:[#allocation6 + $0xd0] sm:$0xff]
          %v3479 = vld [vmem:[#allocation6 + $0xd8] sm:$0xff]
          %v3480 = vld [vmem:[#allocation6 + $0xe0] sm:$0xff]
          %v3481 = vld [vmem:[#allocation6 + $0xe8] sm:$0xff]
          %v3482 = vld [vmem:[#allocation6 + $0xf0] sm:$0xff]
          %v3483 = vld [vmem:[#allocation6 + $0xf8] sm:$0xff]
          %v3484 = vld [vmem:[#allocation6 + $0x100] sm:$0xff]
          %v3485 = vld [vmem:[#allocation6 + $0x108] sm:$0xff]
          %v3486 = vld [vmem:[#allocation6 + $0x110] sm:$0xff]
          %v3487 = vld [vmem:[#allocation6 + $0x118] sm:$0xff]
          %v3488 = vld [vmem:[#allocation6 + $0x120] sm:$0xff]
          %v3489 = vld [vmem:[#allocation6 + $0x128] sm:$0xff]
          %v3490 = vld [vmem:[#allocation6 + $0x130] sm:$0xff]
          %v3491 = vld [vmem:[#allocation6 + $0x138] sm:$0xff]
          %v3492 = vld [vmem:[#allocation6 + $0x140] sm:$0xff]
          %v3493 = vld [vmem:[#allocation6 + $0x148] sm:$0xff]
          %v3494 = vld [vmem:[#allocation6 + $0x150] sm:$0xff]
          %v3495 = vld [vmem:[#allocation6 + $0x158] sm:$0xff]
          %v3496 = vld [vmem:[#allocation6 + $0x160] sm:$0xff]
          %v3497 = vld [vmem:[#allocation6 + $0x168] sm:$0xff]
          %v3498 = vld [vmem:[#allocation6 + $0x170] sm:$0xff]
          %v3499 = vld [vmem:[#allocation6 + $0x178] sm:$0xff]
          %v3500 = vld [vmem:[#allocation6 + $0x180] sm:$0xff]
          %v3501 = vld [vmem:[#allocation6 + $0x188] sm:$0xff]
          %v3502 = vld [vmem:[#allocation6 + $0x190] sm:$0xff]
          %v3503 = vld [vmem:[#allocation6 + $0x198] sm:$0xff]
          %v3504 = vld [vmem:[#allocation6 + $0x1a0] sm:$0xff]
          %v3505 = vld [vmem:[#allocation6 + $0x1a8] sm:$0xff]
          %v3506 = vld [vmem:[#allocation6 + $0x1b0] sm:$0xff]
          %v3507 = vld [vmem:[#allocation6 + $0x1b8] sm:$0xff]
          %v3508 = vld [vmem:[#allocation6 + $0x1c0] sm:$0xff]
          %v3509 = vld [vmem:[#allocation6 + $0x1c8] sm:$0xff]
          %v3510 = vld [vmem:[#allocation6 + $0x1d0] sm:$0xff]
          %v3511 = vld [vmem:[#allocation6 + $0x1d8] sm:$0xff]
          %v3512 = vld [vmem:[#allocation6 + $0x1e0] sm:$0xff]
          %v3513 = vld [vmem:[#allocation6 + $0x1e8] sm:$0xff]
          %v3514 = vld [vmem:[#allocation6 + $0x1f0] sm:$0xff]
          %v3515 = vld [vmem:[#allocation6 + $0x1f8] sm:$0xff]
          %v3516 = vld [vmem:[#allocation6 + $0x200] sm:$0xff]
          %v3517 = vld [vmem:[#allocation6 + $0x208] sm:$0xff]
          %v3518 = vld [vmem:[#allocation6 + $0x210] sm:$0xff]
          %v3519 = vld [vmem:[#allocation6 + $0x218] sm:$0xff]
          %v3520 = vld [vmem:[#allocation6 + $0x220] sm:$0xff]
          %v3521 = vld [vmem:[#allocation6 + $0x228] sm:$0xff]
          %v3522 = vld [vmem:[#allocation6 + $0x230] sm:$0xff]
          %v3523 = vld [vmem:[#allocation6 + $0x238] sm:$0xff]
          %v3524 = vld [vmem:[#allocation6 + $0x240] sm:$0xff]
          %v3525 = vld [vmem:[#allocation6 + $0x248] sm:$0xff]
          %v3526 = vld [vmem:[#allocation6 + $0x250] sm:$0xff]
          %v3527 = vld [vmem:[#allocation6 + $0x258] sm:$0xff]
          %v3528 = vld [vmem:[#allocation6 + $0x260] sm:$0xff]
          %v3529 = vld [vmem:[#allocation6 + $0x268] sm:$0xff]
          %v3530 = vld [vmem:[#allocation6 + $0x270] sm:$0xff]
          %v3531 = vld [vmem:[#allocation6 + $0x278] sm:$0xff]
          %v3532 = vld [vmem:[#allocation6 + $0x280] sm:$0xff]
          %v3533 = vld [vmem:[#allocation6 + $0x288] sm:$0xff]
          %v3534 = vld [vmem:[#allocation6 + $0x290] sm:$0xff]
          %v3535 = vld [vmem:[#allocation6 + $0x298] sm:$0xff]
          %v3536 = vld [vmem:[#allocation6 + $0x2a0] sm:$0xff]
          %v3537 = vld [vmem:[#allocation6 + $0x2a8] sm:$0xff]
          %v3538 = vld [vmem:[#allocation6 + $0x2b0] sm:$0xff]
          %v3539 = vld [vmem:[#allocation6 + $0x2b8] sm:$0xff]
          %v3540 = vld [vmem:[#allocation6 + $0x2c0] sm:$0xff]
          %v3541 = vld [vmem:[#allocation6 + $0x2c8] sm:$0xff]
          %v3542 = vld [vmem:[#allocation6 + $0x2d0] sm:$0xff]
          %v3543 = vld [vmem:[#allocation6 + $0x2d8] sm:$0xff]
          %v3544 = vld [vmem:[#allocation6 + $0x2e0] sm:$0xff]
          %v3545 = vld [vmem:[#allocation6 + $0x2e8] sm:$0xff]
          %v3546 = vld [vmem:[#allocation6 + $0x2f0] sm:$0xff]
          %v3547 = vld [vmem:[#allocation6 + $0x2f8] sm:$0xff]
          %v3548 = vld [vmem:[#allocation6 + $0x300] sm:$0xff]
          %v3549 = vld [vmem:[#allocation6 + $0x308] sm:$0xff]
          %v3550 = vld [vmem:[#allocation6 + $0x310] sm:$0xff]
          %v3551 = vld [vmem:[#allocation6 + $0x318] sm:$0xff]
          %v3552 = vld [vmem:[#allocation6 + $0x320] sm:$0xff]
          %v3553 = vld [vmem:[#allocation6 + $0x328] sm:$0xff]
          %v3554 = vld [vmem:[#allocation6 + $0x330] sm:$0xff]
          %v3555 = vld [vmem:[#allocation6 + $0x338] sm:$0xff]
          %v3556 = vld [vmem:[#allocation6 + $0x340] sm:$0xff]
          %v3557 = vld [vmem:[#allocation6 + $0x348] sm:$0xff]
          %v3558 = vld [vmem:[#allocation6 + $0x350] sm:$0xff]
          %v3559 = vld [vmem:[#allocation6 + $0x358] sm:$0xff]
          %v3560 = vld [vmem:[#allocation6 + $0x360] sm:$0xff]
          %v3561 = vld [vmem:[#allocation6 + $0x368] sm:$0xff]
          %v3562 = vld [vmem:[#allocation6 + $0x370] sm:$0xff]
          %v3563 = vld [vmem:[#allocation6 + $0x378] sm:$0xff]
          %v3564 = vld [vmem:[#allocation6 + $0x380] sm:$0xff]
          %v3565 = vld [vmem:[#allocation6 + $0x388] sm:$0xff]
          %v3566 = vld [vmem:[#allocation6 + $0x390] sm:$0xff]
          %v3567 = vld [vmem:[#allocation6 + $0x398] sm:$0xff]
          %v3568 = vld [vmem:[#allocation6 + $0x3a0] sm:$0xff]
          %v3569 = vld [vmem:[#allocation6 + $0x3a8] sm:$0xff]
          %v3570 = vld [vmem:[#allocation6 + $0x3b0] sm:$0xff]
          %v3571 = vld [vmem:[#allocation6 + $0x3b8] sm:$0xff]
          %v3572 = vld [vmem:[#allocation6 + $0x3c0] sm:$0xff]
          %v3573 = vld [vmem:[#allocation6 + $0x3c8] sm:$0xff]
          %v3574 = vld [vmem:[#allocation6 + $0x3d0] sm:$0xff]
          %v3575 = vld [vmem:[#allocation6 + $0x3d8] sm:$0xff]
          %v3576 = vld [vmem:[#allocation6 + $0x3e0] sm:$0xff]
          %v3577 = vld [vmem:[#allocation6 + $0x3e8] sm:$0xff]
          %v3578 = vld [vmem:[#allocation6 + $0x3f0] sm:$0xff]
          %v3579 = vld [vmem:[#allocation6 + $0x3f8] sm:$0xff]
          %s3580 = sshra.s32 %s328, 4
          %s3581 = sand.u32 %s328, 15
          %s3582 = smul.addr %s3580, 8
          %s3583 = scalar_lea.vmem [#allocation3], %s3582
          %v3584 = vld [vmem:[%s3583] sm:$0xff]
          %v3585 = vld [vmem:[%s3583 + $0x8] sm:$0xff]
          %v3586 = vld [vmem:[%s3583 + $0x10] sm:$0xff]
          %v3587 = vld [vmem:[%s3583 + $0x18] sm:$0xff]
          %v3588 = vld [vmem:[%s3583 + $0x20] sm:$0xff]
          %v3589 = vld [vmem:[%s3583 + $0x28] sm:$0xff]
          %v3590 = vld [vmem:[%s3583 + $0x30] sm:$0xff]
          %v3591 = vld [vmem:[%s3583 + $0x38] sm:$0xff]
          %v3592 = vld [vmem:[%s3583 + $0x40] sm:$0xff]
          %v3593 = vld [vmem:[%s3583 + $0x48] sm:$0xff]
          %v3594 = vld [vmem:[%s3583 + $0x50] sm:$0xff]
          %v3595 = vld [vmem:[%s3583 + $0x58] sm:$0xff]
          %v3596 = vld [vmem:[%s3583 + $0x60] sm:$0xff]
          %v3597 = vld [vmem:[%s3583 + $0x68] sm:$0xff]
          %v3598 = vld [vmem:[%s3583 + $0x70] sm:$0xff]
          %v3599 = vld [vmem:[%s3583 + $0x78] sm:$0xff]
          %v3600 = vld [vmem:[%s3583 + $0x80] sm:$0xff]
          %v3601 = vld [vmem:[%s3583 + $0x88] sm:$0xff]
          %v3602 = vld [vmem:[%s3583 + $0x90] sm:$0xff]
          %v3603 = vld [vmem:[%s3583 + $0x98] sm:$0xff]
          %v3604 = vld [vmem:[%s3583 + $0xa0] sm:$0xff]
          %v3605 = vld [vmem:[%s3583 + $0xa8] sm:$0xff]
          %v3606 = vld [vmem:[%s3583 + $0xb0] sm:$0xff]
          %v3607 = vld [vmem:[%s3583 + $0xb8] sm:$0xff]
          %v3608 = vld [vmem:[%s3583 + $0xc0] sm:$0xff]
          %v3609 = vld [vmem:[%s3583 + $0xc8] sm:$0xff]
          %v3610 = vld [vmem:[%s3583 + $0xd0] sm:$0xff]
          %v3611 = vld [vmem:[%s3583 + $0xd8] sm:$0xff]
          %v3612 = vld [vmem:[%s3583 + $0xe0] sm:$0xff]
          %v3613 = vld [vmem:[%s3583 + $0xe8] sm:$0xff]
          %v3614 = vld [vmem:[%s3583 + $0xf0] sm:$0xff]
          %v3615 = vld [vmem:[%s3583 + $0xf8] sm:$0xff]
          %v3744 = vunpack.c.l.b16 %v3452
          %v3745 = vunpack.c.h.b16 %v3452
          %v3746 = vunpack.c.l.b16 %v3453
          %v3747 = vunpack.c.h.b16 %v3453
          %v3748 = vunpack.c.l.b16 %v3454
          %v3749 = vunpack.c.h.b16 %v3454
          %v3750 = vunpack.c.l.b16 %v3455
          %v3751 = vunpack.c.h.b16 %v3455
          %v3752 = vunpack.c.l.b16 %v3456
          %v3753 = vunpack.c.h.b16 %v3456
          %v3754 = vunpack.c.l.b16 %v3457
          %v3755 = vunpack.c.h.b16 %v3457
          %v3756 = vunpack.c.l.b16 %v3458
          %v3757 = vunpack.c.h.b16 %v3458
          %v3758 = vunpack.c.l.b16 %v3459
          %v3759 = vunpack.c.h.b16 %v3459
          %v3760 = vunpack.c.l.b16 %v3460
          %v3761 = vunpack.c.h.b16 %v3460
          %v3762 = vunpack.c.l.b16 %v3461
          %v3763 = vunpack.c.h.b16 %v3461
          %v3764 = vunpack.c.l.b16 %v3462
          %v3765 = vunpack.c.h.b16 %v3462
          %v3766 = vunpack.c.l.b16 %v3463
          %v3767 = vunpack.c.h.b16 %v3463
          %v3768 = vunpack.c.l.b16 %v3464
          %v3769 = vunpack.c.h.b16 %v3464
          %v3770 = vunpack.c.l.b16 %v3465
          %v3771 = vunpack.c.h.b16 %v3465
          %v3772 = vunpack.c.l.b16 %v3466
          %v3773 = vunpack.c.h.b16 %v3466
          %v3774 = vunpack.c.l.b16 %v3467
          %v3775 = vunpack.c.h.b16 %v3467
          %v3776 = vunpack.c.l.b16 %v3468
          %v3777 = vunpack.c.h.b16 %v3468
          %v3778 = vunpack.c.l.b16 %v3469
          %v3779 = vunpack.c.h.b16 %v3469
          %v3780 = vunpack.c.l.b16 %v3470
          %v3781 = vunpack.c.h.b16 %v3470
          %v3782 = vunpack.c.l.b16 %v3471
          %v3783 = vunpack.c.h.b16 %v3471
          %v3784 = vunpack.c.l.b16 %v3472
          %v3785 = vunpack.c.h.b16 %v3472
          %v3786 = vunpack.c.l.b16 %v3473
          %v3787 = vunpack.c.h.b16 %v3473
          %v3788 = vunpack.c.l.b16 %v3474
          %v3789 = vunpack.c.h.b16 %v3474
          %v3790 = vunpack.c.l.b16 %v3475
          %v3791 = vunpack.c.h.b16 %v3475
          %v3792 = vunpack.c.l.b16 %v3476
          %v3793 = vunpack.c.h.b16 %v3476
          %v3794 = vunpack.c.l.b16 %v3477
          %v3795 = vunpack.c.h.b16 %v3477
          %v3796 = vunpack.c.l.b16 %v3478
          %v3797 = vunpack.c.h.b16 %v3478
          %v3798 = vunpack.c.l.b16 %v3479
          %v3799 = vunpack.c.h.b16 %v3479
          %v3800 = vunpack.c.l.b16 %v3480
          %v3801 = vunpack.c.h.b16 %v3480
          %v3802 = vunpack.c.l.b16 %v3481
          %v3803 = vunpack.c.h.b16 %v3481
          %v3804 = vunpack.c.l.b16 %v3482
          %v3805 = vunpack.c.h.b16 %v3482
          %v3806 = vunpack.c.l.b16 %v3483
          %v3807 = vunpack.c.h.b16 %v3483
          %v3808 = vunpack.c.l.b16 %v3484
          %v3809 = vunpack.c.h.b16 %v3484
          %v3810 = vunpack.c.l.b16 %v3485
          %v3811 = vunpack.c.h.b16 %v3485
          %v3812 = vunpack.c.l.b16 %v3486
          %v3813 = vunpack.c.h.b16 %v3486
          %v3814 = vunpack.c.l.b16 %v3487
          %v3815 = vunpack.c.h.b16 %v3487
          %v3816 = vunpack.c.l.b16 %v3488
          %v3817 = vunpack.c.h.b16 %v3488
          %v3818 = vunpack.c.l.b16 %v3489
          %v3819 = vunpack.c.h.b16 %v3489
          %v3820 = vunpack.c.l.b16 %v3490
          %v3821 = vunpack.c.h.b16 %v3490
          %v3822 = vunpack.c.l.b16 %v3491
          %v3823 = vunpack.c.h.b16 %v3491
          %v3824 = vunpack.c.l.b16 %v3492
          %v3825 = vunpack.c.h.b16 %v3492
          %v3826 = vunpack.c.l.b16 %v3493
          %v3827 = vunpack.c.h.b16 %v3493
          %v3828 = vunpack.c.l.b16 %v3494
          %v3829 = vunpack.c.h.b16 %v3494
          %v3830 = vunpack.c.l.b16 %v3495
          %v3831 = vunpack.c.h.b16 %v3495
          %v3832 = vunpack.c.l.b16 %v3496
          %v3833 = vunpack.c.h.b16 %v3496
          %v3834 = vunpack.c.l.b16 %v3497
          %v3835 = vunpack.c.h.b16 %v3497
          %v3836 = vunpack.c.l.b16 %v3498
          %v3837 = vunpack.c.h.b16 %v3498
          %v3838 = vunpack.c.l.b16 %v3499
          %v3839 = vunpack.c.h.b16 %v3499
          %v3840 = vunpack.c.l.b16 %v3500
          %v3841 = vunpack.c.h.b16 %v3500
          %v3842 = vunpack.c.l.b16 %v3501
          %v3843 = vunpack.c.h.b16 %v3501
          %v3844 = vunpack.c.l.b16 %v3502
          %v3845 = vunpack.c.h.b16 %v3502
          %v3846 = vunpack.c.l.b16 %v3503
          %v3847 = vunpack.c.h.b16 %v3503
          %v3848 = vunpack.c.l.b16 %v3504
          %v3849 = vunpack.c.h.b16 %v3504
          %v3850 = vunpack.c.l.b16 %v3505
          %v3851 = vunpack.c.h.b16 %v3505
          %v3852 = vunpack.c.l.b16 %v3506
          %v3853 = vunpack.c.h.b16 %v3506
          %v3854 = vunpack.c.l.b16 %v3507
          %v3855 = vunpack.c.h.b16 %v3507
          %v3856 = vunpack.c.l.b16 %v3508
          %v3857 = vunpack.c.h.b16 %v3508
          %v3858 = vunpack.c.l.b16 %v3509
          %v3859 = vunpack.c.h.b16 %v3509
          %v3860 = vunpack.c.l.b16 %v3510
          %v3861 = vunpack.c.h.b16 %v3510
          %v3862 = vunpack.c.l.b16 %v3511
          %v3863 = vunpack.c.h.b16 %v3511
          %v3864 = vunpack.c.l.b16 %v3512
          %v3865 = vunpack.c.h.b16 %v3512
          %v3866 = vunpack.c.l.b16 %v3513
          %v3867 = vunpack.c.h.b16 %v3513
          %v3868 = vunpack.c.l.b16 %v3514
          %v3869 = vunpack.c.h.b16 %v3514
          %v3870 = vunpack.c.l.b16 %v3515
          %v3871 = vunpack.c.h.b16 %v3515
          %v3872 = vunpack.c.l.b16 %v3516
          %v3873 = vunpack.c.h.b16 %v3516
          %v3874 = vunpack.c.l.b16 %v3517
          %v3875 = vunpack.c.h.b16 %v3517
          %v3876 = vunpack.c.l.b16 %v3518
          %v3877 = vunpack.c.h.b16 %v3518
          %v3878 = vunpack.c.l.b16 %v3519
          %v3879 = vunpack.c.h.b16 %v3519
          %v3880 = vunpack.c.l.b16 %v3520
          %v3881 = vunpack.c.h.b16 %v3520
          %v3882 = vunpack.c.l.b16 %v3521
          %v3883 = vunpack.c.h.b16 %v3521
          %v3884 = vunpack.c.l.b16 %v3522
          %v3885 = vunpack.c.h.b16 %v3522
          %v3886 = vunpack.c.l.b16 %v3523
          %v3887 = vunpack.c.h.b16 %v3523
          %v3888 = vunpack.c.l.b16 %v3524
          %v3889 = vunpack.c.h.b16 %v3524
          %v3890 = vunpack.c.l.b16 %v3525
          %v3891 = vunpack.c.h.b16 %v3525
          %v3892 = vunpack.c.l.b16 %v3526
          %v3893 = vunpack.c.h.b16 %v3526
          %v3894 = vunpack.c.l.b16 %v3527
          %v3895 = vunpack.c.h.b16 %v3527
          %v3896 = vunpack.c.l.b16 %v3528
          %v3897 = vunpack.c.h.b16 %v3528
          %v3898 = vunpack.c.l.b16 %v3529
          %v3899 = vunpack.c.h.b16 %v3529
          %v3900 = vunpack.c.l.b16 %v3530
          %v3901 = vunpack.c.h.b16 %v3530
          %v3902 = vunpack.c.l.b16 %v3531
          %v3903 = vunpack.c.h.b16 %v3531
          %v3904 = vunpack.c.l.b16 %v3532
          %v3905 = vunpack.c.h.b16 %v3532
          %v3906 = vunpack.c.l.b16 %v3533
          %v3907 = vunpack.c.h.b16 %v3533
          %v3908 = vunpack.c.l.b16 %v3534
          %v3909 = vunpack.c.h.b16 %v3534
          %v3910 = vunpack.c.l.b16 %v3535
          %v3911 = vunpack.c.h.b16 %v3535
          %v3912 = vunpack.c.l.b16 %v3536
          %v3913 = vunpack.c.h.b16 %v3536
          %v3914 = vunpack.c.l.b16 %v3537
          %v3915 = vunpack.c.h.b16 %v3537
          %v3916 = vunpack.c.l.b16 %v3538
          %v3917 = vunpack.c.h.b16 %v3538
          %v3918 = vunpack.c.l.b16 %v3539
          %v3919 = vunpack.c.h.b16 %v3539
          %v3920 = vunpack.c.l.b16 %v3540
          %v3921 = vunpack.c.h.b16 %v3540
          %v3922 = vunpack.c.l.b16 %v3541
          %v3923 = vunpack.c.h.b16 %v3541
          %v3924 = vunpack.c.l.b16 %v3542
          %v3925 = vunpack.c.h.b16 %v3542
          %v3926 = vunpack.c.l.b16 %v3543
          %v3927 = vunpack.c.h.b16 %v3543
          %v3928 = vunpack.c.l.b16 %v3544
          %v3929 = vunpack.c.h.b16 %v3544
          %v3930 = vunpack.c.l.b16 %v3545
          %v3931 = vunpack.c.h.b16 %v3545
          %v3932 = vunpack.c.l.b16 %v3546
          %v3933 = vunpack.c.h.b16 %v3546
          %v3934 = vunpack.c.l.b16 %v3547
          %v3935 = vunpack.c.h.b16 %v3547
          %v3936 = vunpack.c.l.b16 %v3548
          %v3937 = vunpack.c.h.b16 %v3548
          %v3938 = vunpack.c.l.b16 %v3549
          %v3939 = vunpack.c.h.b16 %v3549
          %v3940 = vunpack.c.l.b16 %v3550
          %v3941 = vunpack.c.h.b16 %v3550
          %v3942 = vunpack.c.l.b16 %v3551
          %v3943 = vunpack.c.h.b16 %v3551
          %v3944 = vunpack.c.l.b16 %v3552
          %v3945 = vunpack.c.h.b16 %v3552
          %v3946 = vunpack.c.l.b16 %v3553
          %v3947 = vunpack.c.h.b16 %v3553
          %v3948 = vunpack.c.l.b16 %v3554
          %v3949 = vunpack.c.h.b16 %v3554
          %v3950 = vunpack.c.l.b16 %v3555
          %v3951 = vunpack.c.h.b16 %v3555
          %v3952 = vunpack.c.l.b16 %v3556
          %v3953 = vunpack.c.h.b16 %v3556
          %v3954 = vunpack.c.l.b16 %v3557
          %v3955 = vunpack.c.h.b16 %v3557
          %v3956 = vunpack.c.l.b16 %v3558
          %v3957 = vunpack.c.h.b16 %v3558
          %v3958 = vunpack.c.l.b16 %v3559
          %v3959 = vunpack.c.h.b16 %v3559
          %v3960 = vunpack.c.l.b16 %v3560
          %v3961 = vunpack.c.h.b16 %v3560
          %v3962 = vunpack.c.l.b16 %v3561
          %v3963 = vunpack.c.h.b16 %v3561
          %v3964 = vunpack.c.l.b16 %v3562
          %v3965 = vunpack.c.h.b16 %v3562
          %v3966 = vunpack.c.l.b16 %v3563
          %v3967 = vunpack.c.h.b16 %v3563
          %v3968 = vunpack.c.l.b16 %v3564
          %v3969 = vunpack.c.h.b16 %v3564
          %v3970 = vunpack.c.l.b16 %v3565
          %v3971 = vunpack.c.h.b16 %v3565
          %v3972 = vunpack.c.l.b16 %v3566
          %v3973 = vunpack.c.h.b16 %v3566
          %v3974 = vunpack.c.l.b16 %v3567
          %v3975 = vunpack.c.h.b16 %v3567
          %v3976 = vunpack.c.l.b16 %v3568
          %v3977 = vunpack.c.h.b16 %v3568
          %v3978 = vunpack.c.l.b16 %v3569
          %v3979 = vunpack.c.h.b16 %v3569
          %v3980 = vunpack.c.l.b16 %v3570
          %v3981 = vunpack.c.h.b16 %v3570
          %v3982 = vunpack.c.l.b16 %v3571
          %v3983 = vunpack.c.h.b16 %v3571
          %v3984 = vunpack.c.l.b16 %v3572
          %v3985 = vunpack.c.h.b16 %v3572
          %v3986 = vunpack.c.l.b16 %v3573
          %v3987 = vunpack.c.h.b16 %v3573
          %v3988 = vunpack.c.l.b16 %v3574
          %v3989 = vunpack.c.h.b16 %v3574
          %v3990 = vunpack.c.l.b16 %v3575
          %v3991 = vunpack.c.h.b16 %v3575
          %v3992 = vunpack.c.l.b16 %v3576
          %v3993 = vunpack.c.h.b16 %v3576
          %v3994 = vunpack.c.l.b16 %v3577
          %v3995 = vunpack.c.h.b16 %v3577
          %v3996 = vunpack.c.l.b16 %v3578
          %v3997 = vunpack.c.h.b16 %v3578
          %v3998 = vunpack.c.l.b16 %v3579
          %v3999 = vunpack.c.h.b16 %v3579
          %v4000 = vpack.c.b16 %v3748, %v3744
          %v4001 = vpack.c.b16 %v3749, %v3745
          %v4002 = vpack.c.b16 %v3750, %v3746
          %v4003 = vpack.c.b16 %v3751, %v3747
          %v4004 = vpack.c.b16 %v3756, %v3752
          %v4005 = vpack.c.b16 %v3757, %v3753
          %v4006 = vpack.c.b16 %v3758, %v3754
          %v4007 = vpack.c.b16 %v3759, %v3755
          %v4008 = vpack.c.b16 %v3764, %v3760
          %v4009 = vpack.c.b16 %v3765, %v3761
          %v4010 = vpack.c.b16 %v3766, %v3762
          %v4011 = vpack.c.b16 %v3767, %v3763
          %v4012 = vpack.c.b16 %v3772, %v3768
          %v4013 = vpack.c.b16 %v3773, %v3769
          %v4014 = vpack.c.b16 %v3774, %v3770
          %v4015 = vpack.c.b16 %v3775, %v3771
          %v4016 = vpack.c.b16 %v3780, %v3776
          %v4017 = vpack.c.b16 %v3781, %v3777
          %v4018 = vpack.c.b16 %v3782, %v3778
          %v4019 = vpack.c.b16 %v3783, %v3779
          %v4020 = vpack.c.b16 %v3788, %v3784
          %v4021 = vpack.c.b16 %v3789, %v3785
          %v4022 = vpack.c.b16 %v3790, %v3786
          %v4023 = vpack.c.b16 %v3791, %v3787
          %v4024 = vpack.c.b16 %v3796, %v3792
          %v4025 = vpack.c.b16 %v3797, %v3793
          %v4026 = vpack.c.b16 %v3798, %v3794
          %v4027 = vpack.c.b16 %v3799, %v3795
          %v4028 = vpack.c.b16 %v3804, %v3800
          %v4029 = vpack.c.b16 %v3805, %v3801
          %v4030 = vpack.c.b16 %v3806, %v3802
          %v4031 = vpack.c.b16 %v3807, %v3803
          %v4032 = vpack.c.b16 %v3812, %v3808
          %v4033 = vpack.c.b16 %v3813, %v3809
          %v4034 = vpack.c.b16 %v3814, %v3810
          %v4035 = vpack.c.b16 %v3815, %v3811
          %v4036 = vpack.c.b16 %v3820, %v3816
          %v4037 = vpack.c.b16 %v3821, %v3817
          %v4038 = vpack.c.b16 %v3822, %v3818
          %v4039 = vpack.c.b16 %v3823, %v3819
          %v4040 = vpack.c.b16 %v3828, %v3824
          %v4041 = vpack.c.b16 %v3829, %v3825
          %v4042 = vpack.c.b16 %v3830, %v3826
          %v4043 = vpack.c.b16 %v3831, %v3827
          %v4044 = vpack.c.b16 %v3836, %v3832
          %v4045 = vpack.c.b16 %v3837, %v3833
          %v4046 = vpack.c.b16 %v3838, %v3834
          %v4047 = vpack.c.b16 %v3839, %v3835
          %v4048 = vpack.c.b16 %v3844, %v3840
          %v4049 = vpack.c.b16 %v3845, %v3841
          %v4050 = vpack.c.b16 %v3846, %v3842
          %v4051 = vpack.c.b16 %v3847, %v3843
          %v4052 = vpack.c.b16 %v3852, %v3848
          %v4053 = vpack.c.b16 %v3853, %v3849
          %v4054 = vpack.c.b16 %v3854, %v3850
          %v4055 = vpack.c.b16 %v3855, %v3851
          %v4056 = vpack.c.b16 %v3860, %v3856
          %v4057 = vpack.c.b16 %v3861, %v3857
          %v4058 = vpack.c.b16 %v3862, %v3858
          %v4059 = vpack.c.b16 %v3863, %v3859
          %v4060 = vpack.c.b16 %v3868, %v3864
          %v4061 = vpack.c.b16 %v3869, %v3865
          %v4062 = vpack.c.b16 %v3870, %v3866
          %v4063 = vpack.c.b16 %v3871, %v3867
          %v4064 = vpack.c.b16 %v3876, %v3872
          %v4065 = vpack.c.b16 %v3877, %v3873
          %v4066 = vpack.c.b16 %v3878, %v3874
          %v4067 = vpack.c.b16 %v3879, %v3875
          %v4068 = vpack.c.b16 %v3884, %v3880
          %v4069 = vpack.c.b16 %v3885, %v3881
          %v4070 = vpack.c.b16 %v3886, %v3882
          %v4071 = vpack.c.b16 %v3887, %v3883
          %v4072 = vpack.c.b16 %v3892, %v3888
          %v4073 = vpack.c.b16 %v3893, %v3889
          %v4074 = vpack.c.b16 %v3894, %v3890
          %v4075 = vpack.c.b16 %v3895, %v3891
          %v4076 = vpack.c.b16 %v3900, %v3896
          %v4077 = vpack.c.b16 %v3901, %v3897
          %v4078 = vpack.c.b16 %v3902, %v3898
          %v4079 = vpack.c.b16 %v3903, %v3899
          %v4080 = vpack.c.b16 %v3908, %v3904
          %v4081 = vpack.c.b16 %v3909, %v3905
          %v4082 = vpack.c.b16 %v3910, %v3906
          %v4083 = vpack.c.b16 %v3911, %v3907
          %v4084 = vpack.c.b16 %v3916, %v3912
          %v4085 = vpack.c.b16 %v3917, %v3913
          %v4086 = vpack.c.b16 %v3918, %v3914
          %v4087 = vpack.c.b16 %v3919, %v3915
          %v4088 = vpack.c.b16 %v3924, %v3920
          %v4089 = vpack.c.b16 %v3925, %v3921
          %v4090 = vpack.c.b16 %v3926, %v3922
          %v4091 = vpack.c.b16 %v3927, %v3923
          %v4092 = vpack.c.b16 %v3932, %v3928
          %v4093 = vpack.c.b16 %v3933, %v3929
          %v4094 = vpack.c.b16 %v3934, %v3930
          %v4095 = vpack.c.b16 %v3935, %v3931
          %v4096 = vpack.c.b16 %v3940, %v3936
          %v4097 = vpack.c.b16 %v3941, %v3937
          %v4098 = vpack.c.b16 %v3942, %v3938
          %v4099 = vpack.c.b16 %v3943, %v3939
          %v4100 = vpack.c.b16 %v3948, %v3944
          %v4101 = vpack.c.b16 %v3949, %v3945
          %v4102 = vpack.c.b16 %v3950, %v3946
          %v4103 = vpack.c.b16 %v3951, %v3947
          %v4104 = vpack.c.b16 %v3956, %v3952
          %v4105 = vpack.c.b16 %v3957, %v3953
          %v4106 = vpack.c.b16 %v3958, %v3954
          %v4107 = vpack.c.b16 %v3959, %v3955
          %v4108 = vpack.c.b16 %v3964, %v3960
          %v4109 = vpack.c.b16 %v3965, %v3961
          %v4110 = vpack.c.b16 %v3966, %v3962
          %v4111 = vpack.c.b16 %v3967, %v3963
          %v4112 = vpack.c.b16 %v3972, %v3968
          %v4113 = vpack.c.b16 %v3973, %v3969
          %v4114 = vpack.c.b16 %v3974, %v3970
          %v4115 = vpack.c.b16 %v3975, %v3971
          %v4116 = vpack.c.b16 %v3980, %v3976
          %v4117 = vpack.c.b16 %v3981, %v3977
          %v4118 = vpack.c.b16 %v3982, %v3978
          %v4119 = vpack.c.b16 %v3983, %v3979
          %v4120 = vpack.c.b16 %v3988, %v3984
          %v4121 = vpack.c.b16 %v3989, %v3985
          %v4122 = vpack.c.b16 %v3990, %v3986
          %v4123 = vpack.c.b16 %v3991, %v3987
          %v4124 = vpack.c.b16 %v3996, %v3992
          %v4125 = vpack.c.b16 %v3997, %v3993
          %v4126 = vpack.c.b16 %v3998, %v3994
          %v4127 = vpack.c.b16 %v3999, %v3995
          %4256 = vmatprep.subr.bf16.mxu0 0
          %4257 = vmatpush1.bf16.msra.mxu0 %v3584
          %4258 = vmatprep.subr.bf16.mxu0 0
          %4259 = vmatpush1.bf16.msra.mxu0 %v3585
          %4260 = vmatprep.subr.bf16.mxu0 0
          %4261 = vmatpush1.bf16.msra.mxu0 %v3586
          %4262 = vmatprep.subr.bf16.mxu0 0
          %4263 = vmatpush1.bf16.msra.mxu0 %v3587
          %4264 = vmatprep.subr.bf16.mxu0 0
          %4265 = vmatpush1.bf16.msra.mxu0 %v3588
          %4266 = vmatprep.subr.bf16.mxu0 0
          %4267 = vmatpush1.bf16.msra.mxu0 %v3589
          %4268 = vmatprep.subr.bf16.mxu0 0
          %4269 = vmatpush1.bf16.msra.mxu0 %v3590
          %4270 = vmatprep.subr.bf16.mxu0 0
          %4271 = vmatpush1.bf16.msra.mxu0 %v3591
          %4272 = vmatprep.subr.bf16.mxu0 0
          %4273 = vmatpush1.bf16.msra.mxu0 %v3592
          %4274 = vmatprep.subr.bf16.mxu0 0
          %4275 = vmatpush1.bf16.msra.mxu0 %v3593
          %4276 = vmatprep.subr.bf16.mxu0 0
          %4277 = vmatpush1.bf16.msra.mxu0 %v3594
          %4278 = vmatprep.subr.bf16.mxu0 0
          %4279 = vmatpush1.bf16.msra.mxu0 %v3595
          %4280 = vmatprep.subr.bf16.mxu0 0
          %4281 = vmatpush1.bf16.msra.mxu0 %v3596
          %4282 = vmatprep.subr.bf16.mxu0 0
          %4283 = vmatpush1.bf16.msra.mxu0 %v3597
          %4284 = vmatprep.subr.bf16.mxu0 0
          %4285 = vmatpush1.bf16.msra.mxu0 %v3598
          %4286 = vmatprep.subr.bf16.mxu0 0
          %4287 = vmatpush1.bf16.msra.mxu0 %v3599
          %4288 = vmatprep.mubr.bf16.mxu0 %v4001
          %4289 = vmatmul.mubr.bf16.gmra.mrb[0].mxu0 %v4000
          %v4290 = vpop.f32.mrb[0].mxu0
          %v4291 = vadd.f32 0.0, %v4290
          %v4292 = vpop.f32.mrb[0].mxu0
          %v4293 = vpop.f32.mrb[0].mxu0
          %v4294 = vadd.f32 0.0, %v4293
          %v4295 = vpop.f32.mrb[0].mxu0
          %4296 = vmatprep.mubr.bf16.mxu0 %v4005
          %4297 = vmatmul.mubr.bf16.gmra.mrb[0].mxu0 %v4004
          %v4298 = vpop.f32.mrb[0].mxu0
          %v4299 = vadd.f32 0.0, %v4298
          %v4300 = vpop.f32.mrb[0].mxu0
          %v4301 = vpop.f32.mrb[0].mxu0
          %v4302 = vadd.f32 0.0, %v4301
          %v4303 = vpop.f32.mrb[0].mxu0
          %4304 = vmatprep.mubr.bf16.mxu0 %v4009
          %4305 = vmatmul.mubr.bf16.gmra.mrb[0].mxu0 %v4008
          %v4306 = vpop.f32.mrb[0].mxu0
          %v4307 = vadd.f32 0.0, %v4306
          %v4308 = vpop.f32.mrb[0].mxu0
          %v4309 = vpop.f32.mrb[0].mxu0
          %v4310 = vadd.f32 0.0, %v4309
          %v4311 = vpop.f32.mrb[0].mxu0
          %4312 = vmatprep.mubr.bf16.mxu0 %v4013
          %4313 = vmatmul.mubr.bf16.gmra.mrb[0].mxu0 %v4012
          %v4314 = vpop.f32.mrb[0].mxu0
          %v4315 = vadd.f32 0.0, %v4314
          %v4316 = vpop.f32.mrb[0].mxu0
          %v4317 = vpop.f32.mrb[0].mxu0
          %v4318 = vadd.f32 0.0, %v4317
          %v4319 = vpop.f32.mrb[0].mxu0
          %4320 = vmatprep.mubr.bf16.mxu0 %v4017
          %4321 = vmatmul.mubr.bf16.gmra.mrb[0].mxu0 %v4016
          %v4322 = vpop.f32.mrb[0].mxu0
          %v4323 = vadd.f32 0.0, %v4322
          %v4324 = vpop.f32.mrb[0].mxu0
          %v4325 = vpop.f32.mrb[0].mxu0
          %v4326 = vadd.f32 0.0, %v4325
          %v4327 = vpop.f32.mrb[0].mxu0
          %4328 = vmatprep.mubr.bf16.mxu0 %v4021
          %4329 = vmatmul.mubr.bf16.gmra.mrb[0].mxu0 %v4020
          %v4330 = vpop.f32.mrb[0].mxu0
          %v4331 = vadd.f32 0.0, %v4330
          %v4332 = vpop.f32.mrb[0].mxu0
          %v4333 = vpop.f32.mrb[0].mxu0
          %v4334 = vadd.f32 0.0, %v4333
          %v4335 = vpop.f32.mrb[0].mxu0
          %4336 = vmatprep.mubr.bf16.mxu0 %v4025
          %4337 = vmatmul.mubr.bf16.gmra.mrb[0].mxu0 %v4024
          %v4338 = vpop.f32.mrb[0].mxu0
          %v4339 = vadd.f32 0.0, %v4338
          %v4340 = vpop.f32.mrb[0].mxu0
          %v4341 = vpop.f32.mrb[0].mxu0
          %v4342 = vadd.f32 0.0, %v4341
          %v4343 = vpop.f32.mrb[0].mxu0
          %4344 = vmatprep.mubr.bf16.mxu0 %v4029
          %4345 = vmatmul.mubr.bf16.gmra.mrb[0].mxu0 %v4028
          %v4346 = vpop.f32.mrb[0].mxu0
          %v4347 = vadd.f32 0.0, %v4346
          %v4348 = vpop.f32.mrb[0].mxu0
          %v4349 = vpop.f32.mrb[0].mxu0
          %v4350 = vadd.f32 0.0, %v4349
          %v4351 = vpop.f32.mrb[0].mxu0
          %4352 = vmatprep.mubr.bf16.mxu0 %v4033
          %4353 = vmatmul.mubr.bf16.gmra.mrb[0].mxu0 %v4032
          %v4354 = vpop.f32.mrb[0].mxu0
          %v4355 = vadd.f32 0.0, %v4354
          %v4356 = vpop.f32.mrb[0].mxu0
          %v4357 = vpop.f32.mrb[0].mxu0
          %v4358 = vadd.f32 0.0, %v4357
          %v4359 = vpop.f32.mrb[0].mxu0
          %4360 = vmatprep.mubr.bf16.mxu0 %v4037
          %4361 = vmatmul.mubr.bf16.gmra.mrb[0].mxu0 %v4036
          %v4362 = vpop.f32.mrb[0].mxu0
          %v4363 = vadd.f32 0.0, %v4362
          %v4364 = vpop.f32.mrb[0].mxu0
          %v4365 = vpop.f32.mrb[0].mxu0
          %v4366 = vadd.f32 0.0, %v4365
          %v4367 = vpop.f32.mrb[0].mxu0
          %4368 = vmatprep.mubr.bf16.mxu0 %v4041
          %4369 = vmatmul.mubr.bf16.gmra.mrb[0].mxu0 %v4040
          %v4370 = vpop.f32.mrb[0].mxu0
          %v4371 = vadd.f32 0.0, %v4370
          %v4372 = vpop.f32.mrb[0].mxu0
          %v4373 = vpop.f32.mrb[0].mxu0
          %v4374 = vadd.f32 0.0, %v4373
          %v4375 = vpop.f32.mrb[0].mxu0
          %4376 = vmatprep.mubr.bf16.mxu0 %v4045
          %4377 = vmatmul.mubr.bf16.gmra.mrb[0].mxu0 %v4044
          %v4378 = vpop.f32.mrb[0].mxu0
          %v4379 = vadd.f32 0.0, %v4378
          %v4380 = vpop.f32.mrb[0].mxu0
          %v4381 = vpop.f32.mrb[0].mxu0
          %v4382 = vadd.f32 0.0, %v4381
          %v4383 = vpop.f32.mrb[0].mxu0
          %4384 = vmatprep.mubr.bf16.mxu0 %v4049
          %4385 = vmatmul.mubr.bf16.gmra.mrb[0].mxu0 %v4048
          %v4386 = vpop.f32.mrb[0].mxu0
          %v4387 = vadd.f32 0.0, %v4386
          %v4388 = vpop.f32.mrb[0].mxu0
          %v4389 = vpop.f32.mrb[0].mxu0
          %v4390 = vadd.f32 0.0, %v4389
          %v4391 = vpop.f32.mrb[0].mxu0
          %4392 = vmatprep.mubr.bf16.mxu0 %v4053
          %4393 = vmatmul.mubr.bf16.gmra.mrb[0].mxu0 %v4052
          %v4394 = vpop.f32.mrb[0].mxu0
          %v4395 = vadd.f32 0.0, %v4394
          %v4396 = vpop.f32.mrb[0].mxu0
          %v4397 = vpop.f32.mrb[0].mxu0
          %v4398 = vadd.f32 0.0, %v4397
          %v4399 = vpop.f32.mrb[0].mxu0
          %4400 = vmatprep.mubr.bf16.mxu0 %v4057
          %4401 = vmatmul.mubr.bf16.gmra.mrb[0].mxu0 %v4056
          %v4402 = vpop.f32.mrb[0].mxu0
          %v4403 = vadd.f32 0.0, %v4402
          %v4404 = vpop.f32.mrb[0].mxu0
          %v4405 = vpop.f32.mrb[0].mxu0
          %v4406 = vadd.f32 0.0, %v4405
          %v4407 = vpop.f32.mrb[0].mxu0
          %4408 = vmatprep.mubr.bf16.mxu0 %v4061
          %4409 = vmatmul.mubr.bf16.gmra.mrb[0].mxu0 %v4060
          %v4410 = vpop.f32.mrb[0].mxu0
          %v4411 = vadd.f32 0.0, %v4410
          %v4412 = vpop.f32.mrb[0].mxu0
          %v4413 = vpop.f32.mrb[0].mxu0
          %v4414 = vadd.f32 0.0, %v4413
          %v4415 = vpop.f32.mrb[0].mxu0
          %4416 = vmatprep.mubr.bf16.mxu0 %v4065
          %4417 = vmatmul.mubr.bf16.gmra.mrb[0].mxu0 %v4064
          %v4418 = vpop.f32.mrb[0].mxu0
          %v4419 = vadd.f32 0.0, %v4418
          %v4420 = vpop.f32.mrb[0].mxu0
          %v4421 = vpop.f32.mrb[0].mxu0
          %v4422 = vadd.f32 0.0, %v4421
          %v4423 = vpop.f32.mrb[0].mxu0
          %4424 = vmatprep.mubr.bf16.mxu0 %v4069
          %4425 = vmatmul.mubr.bf16.gmra.mrb[0].mxu0 %v4068
          %v4426 = vpop.f32.mrb[0].mxu0
          %v4427 = vadd.f32 0.0, %v4426
          %v4428 = vpop.f32.mrb[0].mxu0
          %v4429 = vpop.f32.mrb[0].mxu0
          %v4430 = vadd.f32 0.0, %v4429
          %v4431 = vpop.f32.mrb[0].mxu0
          %4432 = vmatprep.mubr.bf16.mxu0 %v4073
          %4433 = vmatmul.mubr.bf16.gmra.mrb[0].mxu0 %v4072
          %v4434 = vpop.f32.mrb[0].mxu0
          %v4435 = vadd.f32 0.0, %v4434
          %v4436 = vpop.f32.mrb[0].mxu0
          %v4437 = vpop.f32.mrb[0].mxu0
          %v4438 = vadd.f32 0.0, %v4437
          %v4439 = vpop.f32.mrb[0].mxu0
          %4440 = vmatprep.mubr.bf16.mxu0 %v4077
          %4441 = vmatmul.mubr.bf16.gmra.mrb[0].mxu0 %v4076
          %v4442 = vpop.f32.mrb[0].mxu0
          %v4443 = vadd.f32 0.0, %v4442
          %v4444 = vpop.f32.mrb[0].mxu0
          %v4445 = vpop.f32.mrb[0].mxu0
          %v4446 = vadd.f32 0.0, %v4445
          %v4447 = vpop.f32.mrb[0].mxu0
          %4448 = vmatprep.mubr.bf16.mxu0 %v4081
          %4449 = vmatmul.mubr.bf16.gmra.mrb[0].mxu0 %v4080
          %v4450 = vpop.f32.mrb[0].mxu0
          %v4451 = vadd.f32 0.0, %v4450
          %v4452 = vpop.f32.mrb[0].mxu0
          %v4453 = vpop.f32.mrb[0].mxu0
          %v4454 = vadd.f32 0.0, %v4453
          %v4455 = vpop.f32.mrb[0].mxu0
          %4456 = vmatprep.mubr.bf16.mxu0 %v4085
          %4457 = vmatmul.mubr.bf16.gmra.mrb[0].mxu0 %v4084
          %v4458 = vpop.f32.mrb[0].mxu0
          %v4459 = vadd.f32 0.0, %v4458
          %v4460 = vpop.f32.mrb[0].mxu0
          %v4461 = vpop.f32.mrb[0].mxu0
          %v4462 = vadd.f32 0.0, %v4461
          %v4463 = vpop.f32.mrb[0].mxu0
          %4464 = vmatprep.mubr.bf16.mxu0 %v4089
          %4465 = vmatmul.mubr.bf16.gmra.mrb[0].mxu0 %v4088
          %v4466 = vpop.f32.mrb[0].mxu0
          %v4467 = vadd.f32 0.0, %v4466
          %v4468 = vpop.f32.mrb[0].mxu0
          %v4469 = vpop.f32.mrb[0].mxu0
          %v4470 = vadd.f32 0.0, %v4469
          %v4471 = vpop.f32.mrb[0].mxu0
          %4472 = vmatprep.mubr.bf16.mxu0 %v4093
          %4473 = vmatmul.mubr.bf16.gmra.mrb[0].mxu0 %v4092
          %v4474 = vpop.f32.mrb[0].mxu0
          %v4475 = vadd.f32 0.0, %v4474
          %v4476 = vpop.f32.mrb[0].mxu0
          %v4477 = vpop.f32.mrb[0].mxu0
          %v4478 = vadd.f32 0.0, %v4477
          %v4479 = vpop.f32.mrb[0].mxu0
          %4480 = vmatprep.mubr.bf16.mxu0 %v4097
          %4481 = vmatmul.mubr.bf16.gmra.mrb[0].mxu0 %v4096
          %v4482 = vpop.f32.mrb[0].mxu0
          %v4483 = vadd.f32 0.0, %v4482
          %v4484 = vpop.f32.mrb[0].mxu0
          %v4485 = vpop.f32.mrb[0].mxu0
          %v4486 = vadd.f32 0.0, %v4485
          %v4487 = vpop.f32.mrb[0].mxu0
          %4488 = vmatprep.mubr.bf16.mxu0 %v4101
          %4489 = vmatmul.mubr.bf16.gmra.mrb[0].mxu0 %v4100
          %v4490 = vpop.f32.mrb[0].mxu0
          %v4491 = vadd.f32 0.0, %v4490
          %v4492 = vpop.f32.mrb[0].mxu0
          %v4493 = vpop.f32.mrb[0].mxu0
          %v4494 = vadd.f32 0.0, %v4493
          %v4495 = vpop.f32.mrb[0].mxu0
          %4496 = vmatprep.mubr.bf16.mxu0 %v4105
          %4497 = vmatmul.mubr.bf16.gmra.mrb[0].mxu0 %v4104
          %v4498 = vpop.f32.mrb[0].mxu0
          %v4499 = vadd.f32 0.0, %v4498
          %v4500 = vpop.f32.mrb[0].mxu0
          %v4501 = vpop.f32.mrb[0].mxu0
          %v4502 = vadd.f32 0.0, %v4501
          %v4503 = vpop.f32.mrb[0].mxu0
          %4504 = vmatprep.mubr.bf16.mxu0 %v4109
          %4505 = vmatmul.mubr.bf16.gmra.mrb[0].mxu0 %v4108
          %v4506 = vpop.f32.mrb[0].mxu0
          %v4507 = vadd.f32 0.0, %v4506
          %v4508 = vpop.f32.mrb[0].mxu0
          %v4509 = vpop.f32.mrb[0].mxu0
          %v4510 = vadd.f32 0.0, %v4509
          %v4511 = vpop.f32.mrb[0].mxu0
          %4512 = vmatprep.mubr.bf16.mxu0 %v4113
          %4513 = vmatmul.mubr.bf16.gmra.mrb[0].mxu0 %v4112
          %v4514 = vpop.f32.mrb[0].mxu0
          %v4515 = vadd.f32 0.0, %v4514
          %v4516 = vpop.f32.mrb[0].mxu0
          %v4517 = vpop.f32.mrb[0].mxu0
          %v4518 = vadd.f32 0.0, %v4517
          %v4519 = vpop.f32.mrb[0].mxu0
          %4520 = vmatprep.mubr.bf16.mxu0 %v4117
          %4521 = vmatmul.mubr.bf16.gmra.mrb[0].mxu0 %v4116
          %v4522 = vpop.f32.mrb[0].mxu0
          %v4523 = vadd.f32 0.0, %v4522
          %v4524 = vpop.f32.mrb[0].mxu0
          %v4525 = vpop.f32.mrb[0].mxu0
          %v4526 = vadd.f32 0.0, %v4525
          %v4527 = vpop.f32.mrb[0].mxu0
          %4528 = vmatprep.mubr.bf16.mxu0 %v4121
          %4529 = vmatmul.mubr.bf16.gmra.mrb[0].mxu0 %v4120
          %v4530 = vpop.f32.mrb[0].mxu0
          %v4531 = vadd.f32 0.0, %v4530
          %v4532 = vpop.f32.mrb[0].mxu0
          %v4533 = vpop.f32.mrb[0].mxu0
          %v4534 = vadd.f32 0.0, %v4533
          %v4535 = vpop.f32.mrb[0].mxu0
          %4536 = vmatprep.mubr.bf16.mxu0 %v4125
          %4537 = vmatmul.mubr.bf16.gmra.mrb[0].mxu0 %v4124
          %v4538 = vpop.f32.mrb[0].mxu0
          %v4539 = vadd.f32 0.0, %v4538
          %v4540 = vpop.f32.mrb[0].mxu0
          %v4541 = vpop.f32.mrb[0].mxu0
          %v4542 = vadd.f32 0.0, %v4541
          %v4543 = vpop.f32.mrb[0].mxu0
          %4544 = vdwg.mxu0
          %4545 = vmatprep.subr.bf16.mxu0 0
          %4546 = vmatpush1.bf16.msra.mxu0 %v3600
          %4547 = vmatprep.subr.bf16.mxu0 0
          %4548 = vmatpush1.bf16.msra.mxu0 %v3601
          %4549 = vmatprep.subr.bf16.mxu0 0
          %4550 = vmatpush1.bf16.msra.mxu0 %v3602
          %4551 = vmatprep.subr.bf16.mxu0 0
          %4552 = vmatpush1.bf16.msra.mxu0 %v3603
          %4553 = vmatprep.subr.bf16.mxu0 0
          %4554 = vmatpush1.bf16.msra.mxu0 %v3604
          %4555 = vmatprep.subr.bf16.mxu0 0
          %4556 = vmatpush1.bf16.msra.mxu0 %v3605
          %4557 = vmatprep.subr.bf16.mxu0 0
          %4558 = vmatpush1.bf16.msra.mxu0 %v3606
          %4559 = vmatprep.subr.bf16.mxu0 0
          %4560 = vmatpush1.bf16.msra.mxu0 %v3607
          %4561 = vmatprep.subr.bf16.mxu0 0
          %4562 = vmatpush1.bf16.msra.mxu0 %v3608
          %4563 = vmatprep.subr.bf16.mxu0 0
          %4564 = vmatpush1.bf16.msra.mxu0 %v3609
          %4565 = vmatprep.subr.bf16.mxu0 0
          %4566 = vmatpush1.bf16.msra.mxu0 %v3610
          %4567 = vmatprep.subr.bf16.mxu0 0
          %4568 = vmatpush1.bf16.msra.mxu0 %v3611
          %4569 = vmatprep.subr.bf16.mxu0 0
          %4570 = vmatpush1.bf16.msra.mxu0 %v3612
          %4571 = vmatprep.subr.bf16.mxu0 0
          %4572 = vmatpush1.bf16.msra.mxu0 %v3613
          %4573 = vmatprep.subr.bf16.mxu0 0
          %4574 = vmatpush1.bf16.msra.mxu0 %v3614
          %4575 = vmatprep.subr.bf16.mxu0 0
          %4576 = vmatpush1.bf16.msra.mxu0 %v3615
          %4577 = vmatprep.mubr.bf16.mxu0 %v4003
          %4578 = vmatmul.mubr.bf16.gmra.mrb[0].mxu0 %v4002
          %v4579 = vpop.f32.mrb[0].mxu0
          %v4580 = vadd.f32 %v4291, %v4579
          %v4581 = vpop.f32.mrb[0].mxu0
          %v4582 = vpop.f32.mrb[0].mxu0
          %v4583 = vadd.f32 %v4294, %v4582
          %v4584 = vpop.f32.mrb[0].mxu0
          %4585 = vmatprep.mubr.bf16.mxu0 %v4007
          %4586 = vmatmul.mubr.bf16.gmra.mrb[0].mxu0 %v4006
          %v4587 = vpop.f32.mrb[0].mxu0
          %v4588 = vadd.f32 %v4299, %v4587
          %v4589 = vpop.f32.mrb[0].mxu0
          %v4590 = vpop.f32.mrb[0].mxu0
          %v4591 = vadd.f32 %v4302, %v4590
          %v4592 = vpop.f32.mrb[0].mxu0
          %4593 = vmatprep.mubr.bf16.mxu0 %v4011
          %4594 = vmatmul.mubr.bf16.gmra.mrb[0].mxu0 %v4010
          %v4595 = vpop.f32.mrb[0].mxu0
          %v4596 = vadd.f32 %v4307, %v4595
          %v4597 = vpop.f32.mrb[0].mxu0
          %v4598 = vpop.f32.mrb[0].mxu0
          %v4599 = vadd.f32 %v4310, %v4598
          %v4600 = vpop.f32.mrb[0].mxu0
          %4601 = vmatprep.mubr.bf16.mxu0 %v4015
          %4602 = vmatmul.mubr.bf16.gmra.mrb[0].mxu0 %v4014
          %v4603 = vpop.f32.mrb[0].mxu0
          %v4604 = vadd.f32 %v4315, %v4603
          %v4605 = vpop.f32.mrb[0].mxu0
          %v4606 = vpop.f32.mrb[0].mxu0
          %v4607 = vadd.f32 %v4318, %v4606
          %v4608 = vpop.f32.mrb[0].mxu0
          %4609 = vmatprep.mubr.bf16.mxu0 %v4019
          %4610 = vmatmul.mubr.bf16.gmra.mrb[0].mxu0 %v4018
          %v4611 = vpop.f32.mrb[0].mxu0
          %v4612 = vadd.f32 %v4323, %v4611
          %v4613 = vpop.f32.mrb[0].mxu0
          %v4614 = vpop.f32.mrb[0].mxu0
          %v4615 = vadd.f32 %v4326, %v4614
          %v4616 = vpop.f32.mrb[0].mxu0
          %4617 = vmatprep.mubr.bf16.mxu0 %v4023
          %4618 = vmatmul.mubr.bf16.gmra.mrb[0].mxu0 %v4022
          %v4619 = vpop.f32.mrb[0].mxu0
          %v4620 = vadd.f32 %v4331, %v4619
          %v4621 = vpop.f32.mrb[0].mxu0
          %v4622 = vpop.f32.mrb[0].mxu0
          %v4623 = vadd.f32 %v4334, %v4622
          %v4624 = vpop.f32.mrb[0].mxu0
          %4625 = vmatprep.mubr.bf16.mxu0 %v4027
          %4626 = vmatmul.mubr.bf16.gmra.mrb[0].mxu0 %v4026
          %v4627 = vpop.f32.mrb[0].mxu0
          %v4628 = vadd.f32 %v4339, %v4627
          %v4629 = vpop.f32.mrb[0].mxu0
          %v4630 = vpop.f32.mrb[0].mxu0
          %v4631 = vadd.f32 %v4342, %v4630
          %v4632 = vpop.f32.mrb[0].mxu0
          %4633 = vmatprep.mubr.bf16.mxu0 %v4031
          %4634 = vmatmul.mubr.bf16.gmra.mrb[0].mxu0 %v4030
          %v4635 = vpop.f32.mrb[0].mxu0
          %v4636 = vadd.f32 %v4347, %v4635
          %v4637 = vpop.f32.mrb[0].mxu0
          %v4638 = vpop.f32.mrb[0].mxu0
          %v4639 = vadd.f32 %v4350, %v4638
          %v4640 = vpop.f32.mrb[0].mxu0
          %4641 = vmatprep.mubr.bf16.mxu0 %v4035
          %4642 = vmatmul.mubr.bf16.gmra.mrb[0].mxu0 %v4034
          %v4643 = vpop.f32.mrb[0].mxu0
          %v4644 = vadd.f32 %v4355, %v4643
          %v4645 = vpop.f32.mrb[0].mxu0
          %v4646 = vpop.f32.mrb[0].mxu0
          %v4647 = vadd.f32 %v4358, %v4646
          %v4648 = vpop.f32.mrb[0].mxu0
          %4649 = vmatprep.mubr.bf16.mxu0 %v4039
          %4650 = vmatmul.mubr.bf16.gmra.mrb[0].mxu0 %v4038
          %v4651 = vpop.f32.mrb[0].mxu0
          %v4652 = vadd.f32 %v4363, %v4651
          %v4653 = vpop.f32.mrb[0].mxu0
          %v4654 = vpop.f32.mrb[0].mxu0
          %v4655 = vadd.f32 %v4366, %v4654
          %v4656 = vpop.f32.mrb[0].mxu0
          %4657 = vmatprep.mubr.bf16.mxu0 %v4043
          %4658 = vmatmul.mubr.bf16.gmra.mrb[0].mxu0 %v4042
          %v4659 = vpop.f32.mrb[0].mxu0
          %v4660 = vadd.f32 %v4371, %v4659
          %v4661 = vpop.f32.mrb[0].mxu0
          %v4662 = vpop.f32.mrb[0].mxu0
          %v4663 = vadd.f32 %v4374, %v4662
          %v4664 = vpop.f32.mrb[0].mxu0
          %4665 = vmatprep.mubr.bf16.mxu0 %v4047
          %4666 = vmatmul.mubr.bf16.gmra.mrb[0].mxu0 %v4046
          %v4667 = vpop.f32.mrb[0].mxu0
          %v4668 = vadd.f32 %v4379, %v4667
          %v4669 = vpop.f32.mrb[0].mxu0
          %v4670 = vpop.f32.mrb[0].mxu0
          %v4671 = vadd.f32 %v4382, %v4670
          %v4672 = vpop.f32.mrb[0].mxu0
          %4673 = vmatprep.mubr.bf16.mxu0 %v4051
          %4674 = vmatmul.mubr.bf16.gmra.mrb[0].mxu0 %v4050
          %v4675 = vpop.f32.mrb[0].mxu0
          %v4676 = vadd.f32 %v4387, %v4675
          %v4677 = vpop.f32.mrb[0].mxu0
          %v4678 = vpop.f32.mrb[0].mxu0
          %v4679 = vadd.f32 %v4390, %v4678
          %v4680 = vpop.f32.mrb[0].mxu0
          %4681 = vmatprep.mubr.bf16.mxu0 %v4055
          %4682 = vmatmul.mubr.bf16.gmra.mrb[0].mxu0 %v4054
          %v4683 = vpop.f32.mrb[0].mxu0
          %v4684 = vadd.f32 %v4395, %v4683
          %v4685 = vpop.f32.mrb[0].mxu0
          %v4686 = vpop.f32.mrb[0].mxu0
          %v4687 = vadd.f32 %v4398, %v4686
          %v4688 = vpop.f32.mrb[0].mxu0
          %4689 = vmatprep.mubr.bf16.mxu0 %v4059
          %4690 = vmatmul.mubr.bf16.gmra.mrb[0].mxu0 %v4058
          %v4691 = vpop.f32.mrb[0].mxu0
          %v4692 = vadd.f32 %v4403, %v4691
          %v4693 = vpop.f32.mrb[0].mxu0
          %v4694 = vpop.f32.mrb[0].mxu0
          %v4695 = vadd.f32 %v4406, %v4694
          %v4696 = vpop.f32.mrb[0].mxu0
          %4697 = vmatprep.mubr.bf16.mxu0 %v4063
          %4698 = vmatmul.mubr.bf16.gmra.mrb[0].mxu0 %v4062
          %v4699 = vpop.f32.mrb[0].mxu0
          %v4700 = vadd.f32 %v4411, %v4699
          %v4701 = vpop.f32.mrb[0].mxu0
          %v4702 = vpop.f32.mrb[0].mxu0
          %v4703 = vadd.f32 %v4414, %v4702
          %v4704 = vpop.f32.mrb[0].mxu0
          %4705 = vmatprep.mubr.bf16.mxu0 %v4067
          %4706 = vmatmul.mubr.bf16.gmra.mrb[0].mxu0 %v4066
          %v4707 = vpop.f32.mrb[0].mxu0
          %v4708 = vadd.f32 %v4419, %v4707
          %v4709 = vpop.f32.mrb[0].mxu0
          %v4710 = vpop.f32.mrb[0].mxu0
          %v4711 = vadd.f32 %v4422, %v4710
          %v4712 = vpop.f32.mrb[0].mxu0
          %4713 = vmatprep.mubr.bf16.mxu0 %v4071
          %4714 = vmatmul.mubr.bf16.gmra.mrb[0].mxu0 %v4070
          %v4715 = vpop.f32.mrb[0].mxu0
          %v4716 = vadd.f32 %v4427, %v4715
          %v4717 = vpop.f32.mrb[0].mxu0
          %v4718 = vpop.f32.mrb[0].mxu0
          %v4719 = vadd.f32 %v4430, %v4718
          %v4720 = vpop.f32.mrb[0].mxu0
          %4721 = vmatprep.mubr.bf16.mxu0 %v4075
          %4722 = vmatmul.mubr.bf16.gmra.mrb[0].mxu0 %v4074
          %v4723 = vpop.f32.mrb[0].mxu0
          %v4724 = vadd.f32 %v4435, %v4723
          %v4725 = vpop.f32.mrb[0].mxu0
          %v4726 = vpop.f32.mrb[0].mxu0
          %v4727 = vadd.f32 %v4438, %v4726
          %v4728 = vpop.f32.mrb[0].mxu0
          %4729 = vmatprep.mubr.bf16.mxu0 %v4079
          %4730 = vmatmul.mubr.bf16.gmra.mrb[0].mxu0 %v4078
          %v4731 = vpop.f32.mrb[0].mxu0
          %v4732 = vadd.f32 %v4443, %v4731
          %v4733 = vpop.f32.mrb[0].mxu0
          %v4734 = vpop.f32.mrb[0].mxu0
          %v4735 = vadd.f32 %v4446, %v4734
          %v4736 = vpop.f32.mrb[0].mxu0
          %4737 = vmatprep.mubr.bf16.mxu0 %v4083
          %4738 = vmatmul.mubr.bf16.gmra.mrb[0].mxu0 %v4082
          %v4739 = vpop.f32.mrb[0].mxu0
          %v4740 = vadd.f32 %v4451, %v4739
          %v4741 = vpop.f32.mrb[0].mxu0
          %v4742 = vpop.f32.mrb[0].mxu0
          %v4743 = vadd.f32 %v4454, %v4742
          %v4744 = vpop.f32.mrb[0].mxu0
          %4745 = vmatprep.mubr.bf16.mxu0 %v4087
          %4746 = vmatmul.mubr.bf16.gmra.mrb[0].mxu0 %v4086
          %v4747 = vpop.f32.mrb[0].mxu0
          %v4748 = vadd.f32 %v4459, %v4747
          %v4749 = vpop.f32.mrb[0].mxu0
          %v4750 = vpop.f32.mrb[0].mxu0
          %v4751 = vadd.f32 %v4462, %v4750
          %v4752 = vpop.f32.mrb[0].mxu0
          %4753 = vmatprep.mubr.bf16.mxu0 %v4091
          %4754 = vmatmul.mubr.bf16.gmra.mrb[0].mxu0 %v4090
          %v4755 = vpop.f32.mrb[0].mxu0
          %v4756 = vadd.f32 %v4467, %v4755
          %v4757 = vpop.f32.mrb[0].mxu0
          %v4758 = vpop.f32.mrb[0].mxu0
          %v4759 = vadd.f32 %v4470, %v4758
          %v4760 = vpop.f32.mrb[0].mxu0
          %4761 = vmatprep.mubr.bf16.mxu0 %v4095
          %4762 = vmatmul.mubr.bf16.gmra.mrb[0].mxu0 %v4094
          %v4763 = vpop.f32.mrb[0].mxu0
          %v4764 = vadd.f32 %v4475, %v4763
          %v4765 = vpop.f32.mrb[0].mxu0
          %v4766 = vpop.f32.mrb[0].mxu0
          %v4767 = vadd.f32 %v4478, %v4766
          %v4768 = vpop.f32.mrb[0].mxu0
          %4769 = vmatprep.mubr.bf16.mxu0 %v4099
          %4770 = vmatmul.mubr.bf16.gmra.mrb[0].mxu0 %v4098
          %v4771 = vpop.f32.mrb[0].mxu0
          %v4772 = vadd.f32 %v4483, %v4771
          %v4773 = vpop.f32.mrb[0].mxu0
          %v4774 = vpop.f32.mrb[0].mxu0
          %v4775 = vadd.f32 %v4486, %v4774
          %v4776 = vpop.f32.mrb[0].mxu0
          %4777 = vmatprep.mubr.bf16.mxu0 %v4103
          %4778 = vmatmul.mubr.bf16.gmra.mrb[0].mxu0 %v4102
          %v4779 = vpop.f32.mrb[0].mxu0
          %v4780 = vadd.f32 %v4491, %v4779
          %v4781 = vpop.f32.mrb[0].mxu0
          %v4782 = vpop.f32.mrb[0].mxu0
          %v4783 = vadd.f32 %v4494, %v4782
          %v4784 = vpop.f32.mrb[0].mxu0
          %4785 = vmatprep.mubr.bf16.mxu0 %v4107
          %4786 = vmatmul.mubr.bf16.gmra.mrb[0].mxu0 %v4106
          %v4787 = vpop.f32.mrb[0].mxu0
          %v4788 = vadd.f32 %v4499, %v4787
          %v4789 = vpop.f32.mrb[0].mxu0
          %v4790 = vpop.f32.mrb[0].mxu0
          %v4791 = vadd.f32 %v4502, %v4790
          %v4792 = vpop.f32.mrb[0].mxu0
          %4793 = vmatprep.mubr.bf16.mxu0 %v4111
          %4794 = vmatmul.mubr.bf16.gmra.mrb[0].mxu0 %v4110
          %v4795 = vpop.f32.mrb[0].mxu0
          %v4796 = vadd.f32 %v4507, %v4795
          %v4797 = vpop.f32.mrb[0].mxu0
          %v4798 = vpop.f32.mrb[0].mxu0
          %v4799 = vadd.f32 %v4510, %v4798
          %v4800 = vpop.f32.mrb[0].mxu0
          %4801 = vmatprep.mubr.bf16.mxu0 %v4115
          %4802 = vmatmul.mubr.bf16.gmra.mrb[0].mxu0 %v4114
          %v4803 = vpop.f32.mrb[0].mxu0
          %v4804 = vadd.f32 %v4515, %v4803
          %v4805 = vpop.f32.mrb[0].mxu0
          %v4806 = vpop.f32.mrb[0].mxu0
          %v4807 = vadd.f32 %v4518, %v4806
          %v4808 = vpop.f32.mrb[0].mxu0
          %4809 = vmatprep.mubr.bf16.mxu0 %v4119
          %4810 = vmatmul.mubr.bf16.gmra.mrb[0].mxu0 %v4118
          %v4811 = vpop.f32.mrb[0].mxu0
          %v4812 = vadd.f32 %v4523, %v4811
          %v4813 = vpop.f32.mrb[0].mxu0
          %v4814 = vpop.f32.mrb[0].mxu0
          %v4815 = vadd.f32 %v4526, %v4814
          %v4816 = vpop.f32.mrb[0].mxu0
          %4817 = vmatprep.mubr.bf16.mxu0 %v4123
          %4818 = vmatmul.mubr.bf16.gmra.mrb[0].mxu0 %v4122
          %v4819 = vpop.f32.mrb[0].mxu0
          %v4820 = vadd.f32 %v4531, %v4819
          %v4821 = vpop.f32.mrb[0].mxu0
          %v4822 = vpop.f32.mrb[0].mxu0
          %v4823 = vadd.f32 %v4534, %v4822
          %v4824 = vpop.f32.mrb[0].mxu0
          %4825 = vmatprep.mubr.bf16.mxu0 %v4127
          %4826 = vmatmul.mubr.bf16.gmra.mrb[0].mxu0 %v4126
          %v4827 = vpop.f32.mrb[0].mxu0
          %v4828 = vadd.f32 %v4539, %v4827
          %v4829 = vpop.f32.mrb[0].mxu0
          %v4830 = vpop.f32.mrb[0].mxu0
          %v4831 = vadd.f32 %v4542, %v4830
          %v4832 = vpop.f32.mrb[0].mxu0
          %4833 = vdwg.mxu0
          %v4834 = vadd.f32 %v3388, %v4580
          %v4835 = vadd.f32 %v3389, %v4583
          %v4836 = vadd.f32 %v3390, %v4588
          %v4837 = vadd.f32 %v3391, %v4591
          %v4838 = vadd.f32 %v3392, %v4596
          %v4839 = vadd.f32 %v3393, %v4599
          %v4840 = vadd.f32 %v3394, %v4604
          %v4841 = vadd.f32 %v3395, %v4607
          %v4842 = vadd.f32 %v3396, %v4612
          %v4843 = vadd.f32 %v3397, %v4615
          %v4844 = vadd.f32 %v3398, %v4620
          %v4845 = vadd.f32 %v3399, %v4623
          %v4846 = vadd.f32 %v3400, %v4628
          %v4847 = vadd.f32 %v3401, %v4631
          %v4848 = vadd.f32 %v3402, %v4636
          %v4849 = vadd.f32 %v3403, %v4639
          %v4850 = vadd.f32 %v3404, %v4644
          %v4851 = vadd.f32 %v3405, %v4647
          %v4852 = vadd.f32 %v3406, %v4652
          %v4853 = vadd.f32 %v3407, %v4655
          %v4854 = vadd.f32 %v3408, %v4660
          %v4855 = vadd.f32 %v3409, %v4663
          %v4856 = vadd.f32 %v3410, %v4668
          %v4857 = vadd.f32 %v3411, %v4671
          %v4858 = vadd.f32 %v3412, %v4676
          %v4859 = vadd.f32 %v3413, %v4679
          %v4860 = vadd.f32 %v3414, %v4684
          %v4861 = vadd.f32 %v3415, %v4687
          %v4862 = vadd.f32 %v3416, %v4692
          %v4863 = vadd.f32 %v3417, %v4695
          %v4864 = vadd.f32 %v3418, %v4700
          %v4865 = vadd.f32 %v3419, %v4703
          %v4866 = vadd.f32 %v3420, %v4708
          %v4867 = vadd.f32 %v3421, %v4711
          %v4868 = vadd.f32 %v3422, %v4716
          %v4869 = vadd.f32 %v3423, %v4719
          %v4870 = vadd.f32 %v3424, %v4724
          %v4871 = vadd.f32 %v3425, %v4727
          %v4872 = vadd.f32 %v3426, %v4732
          %v4873 = vadd.f32 %v3427, %v4735
          %v4874 = vadd.f32 %v3428, %v4740
          %v4875 = vadd.f32 %v3429, %v4743
          %v4876 = vadd.f32 %v3430, %v4748
          %v4877 = vadd.f32 %v3431, %v4751
          %v4878 = vadd.f32 %v3432, %v4756
          %v4879 = vadd.f32 %v3433, %v4759
          %v4880 = vadd.f32 %v3434, %v4764
          %v4881 = vadd.f32 %v3435, %v4767
          %v4882 = vadd.f32 %v3436, %v4772
          %v4883 = vadd.f32 %v3437, %v4775
          %v4884 = vadd.f32 %v3438, %v4780
          %v4885 = vadd.f32 %v3439, %v4783
          %v4886 = vadd.f32 %v3440, %v4788
          %v4887 = vadd.f32 %v3441, %v4791
          %v4888 = vadd.f32 %v3442, %v4796
          %v4889 = vadd.f32 %v3443, %v4799
          %v4890 = vadd.f32 %v3444, %v4804
          %v4891 = vadd.f32 %v3445, %v4807
          %v4892 = vadd.f32 %v3446, %v4812
          %v4893 = vadd.f32 %v3447, %v4815
          %v4894 = vadd.f32 %v3448, %v4820
          %v4895 = vadd.f32 %v3449, %v4823
          %v4896 = vadd.f32 %v3450, %v4828
          %v4897 = vadd.f32 %v3451, %v4831
          %4898 = vst [vmem:[#allocation5] sm:$0xff] %v4834
          %4899 = vst [vmem:[#allocation5 + $0x8] sm:$0xff] %v4835
          %4900 = vst [vmem:[#allocation5 + $0x10] sm:$0xff] %v4836
          %4901 = vst [vmem:[#allocation5 + $0x18] sm:$0xff] %v4837
          %4902 = vst [vmem:[#allocation5 + $0x20] sm:$0xff] %v4838
          %4903 = vst [vmem:[#allocation5 + $0x28] sm:$0xff] %v4839
          %4904 = vst [vmem:[#allocation5 + $0x30] sm:$0xff] %v4840
          %4905 = vst [vmem:[#allocation5 + $0x38] sm:$0xff] %v4841
          %4906 = vst [vmem:[#allocation5 + $0x40] sm:$0xff] %v4842
          %4907 = vst [vmem:[#allocation5 + $0x48] sm:$0xff] %v4843
          %4908 = vst [vmem:[#allocation5 + $0x50] sm:$0xff] %v4844
          %4909 = vst [vmem:[#allocation5 + $0x58] sm:$0xff] %v4845
          %4910 = vst [vmem:[#allocation5 + $0x60] sm:$0xff] %v4846
          %4911 = vst [vmem:[#allocation5 + $0x68] sm:$0xff] %v4847
          %4912 = vst [vmem:[#allocation5 + $0x70] sm:$0xff] %v4848
          %4913 = vst [vmem:[#allocation5 + $0x78] sm:$0xff] %v4849
          %4914 = vst [vmem:[#allocation5 + $0x80] sm:$0xff] %v4850
          %4915 = vst [vmem:[#allocation5 + $0x88] sm:$0xff] %v4851
          %4916 = vst [vmem:[#allocation5 + $0x90] sm:$0xff] %v4852
          %4917 = vst [vmem:[#allocation5 + $0x98] sm:$0xff] %v4853
          %4918 = vst [vmem:[#allocation5 + $0xa0] sm:$0xff] %v4854
          %4919 = vst [vmem:[#allocation5 + $0xa8] sm:$0xff] %v4855
          %4920 = vst [vmem:[#allocation5 + $0xb0] sm:$0xff] %v4856
          %4921 = vst [vmem:[#allocation5 + $0xb8] sm:$0xff] %v4857
          %4922 = vst [vmem:[#allocation5 + $0xc0] sm:$0xff] %v4858
          %4923 = vst [vmem:[#allocation5 + $0xc8] sm:$0xff] %v4859
          %4924 = vst [vmem:[#allocation5 + $0xd0] sm:$0xff] %v4860
          %4925 = vst [vmem:[#allocation5 + $0xd8] sm:$0xff] %v4861
          %4926 = vst [vmem:[#allocation5 + $0xe0] sm:$0xff] %v4862
          %4927 = vst [vmem:[#allocation5 + $0xe8] sm:$0xff] %v4863
          %4928 = vst [vmem:[#allocation5 + $0xf0] sm:$0xff] %v4864
          %4929 = vst [vmem:[#allocation5 + $0xf8] sm:$0xff] %v4865
          %4930 = vst [vmem:[#allocation5 + $0x100] sm:$0xff] %v4866
          %4931 = vst [vmem:[#allocation5 + $0x108] sm:$0xff] %v4867
          %4932 = vst [vmem:[#allocation5 + $0x110] sm:$0xff] %v4868
          %4933 = vst [vmem:[#allocation5 + $0x118] sm:$0xff] %v4869
          %4934 = vst [vmem:[#allocation5 + $0x120] sm:$0xff] %v4870
          %4935 = vst [vmem:[#allocation5 + $0x128] sm:$0xff] %v4871
          %4936 = vst [vmem:[#allocation5 + $0x130] sm:$0xff] %v4872
          %4937 = vst [vmem:[#allocation5 + $0x138] sm:$0xff] %v4873
          %4938 = vst [vmem:[#allocation5 + $0x140] sm:$0xff] %v4874
          %4939 = vst [vmem:[#allocation5 + $0x148] sm:$0xff] %v4875
          %4940 = vst [vmem:[#allocation5 + $0x150] sm:$0xff] %v4876
          %4941 = vst [vmem:[#allocation5 + $0x158] sm:$0xff] %v4877
          %4942 = vst [vmem:[#allocation5 + $0x160] sm:$0xff] %v4878
          %4943 = vst [vmem:[#allocation5 + $0x168] sm:$0xff] %v4879
          %4944 = vst [vmem:[#allocation5 + $0x170] sm:$0xff] %v4880
          %4945 = vst [vmem:[#allocation5 + $0x178] sm:$0xff] %v4881
          %4946 = vst [vmem:[#allocation5 + $0x180] sm:$0xff] %v4882
          %4947 = vst [vmem:[#allocation5 + $0x188] sm:$0xff] %v4883
          %4948 = vst [vmem:[#allocation5 + $0x190] sm:$0xff] %v4884
          %4949 = vst [vmem:[#allocation5 + $0x198] sm:$0xff] %v4885
          %4950 = vst [vmem:[#allocation5 + $0x1a0] sm:$0xff] %v4886
          %4951 = vst [vmem:[#allocation5 + $0x1a8] sm:$0xff] %v4887
          %4952 = vst [vmem:[#allocation5 + $0x1b0] sm:$0xff] %v4888
          %4953 = vst [vmem:[#allocation5 + $0x1b8] sm:$0xff] %v4889
          %4954 = vst [vmem:[#allocation5 + $0x1c0] sm:$0xff] %v4890
          %4955 = vst [vmem:[#allocation5 + $0x1c8] sm:$0xff] %v4891
          %4956 = vst [vmem:[#allocation5 + $0x1d0] sm:$0xff] %v4892
          %4957 = vst [vmem:[#allocation5 + $0x1d8] sm:$0xff] %v4893
          %4958 = vst [vmem:[#allocation5 + $0x1e0] sm:$0xff] %v4894
          %4959 = vst [vmem:[#allocation5 + $0x1e8] sm:$0xff] %v4895
          %4960 = vst [vmem:[#allocation5 + $0x1f0] sm:$0xff] %v4896
          %4961 = vst [vmem:[#allocation5 + $0x1f8] sm:$0xff] %v4897
          // Predicated region
          $region85: #{tpu_custom_call.1} parent=79 // pred_check
            %p4962 = pneg %p3320
          $region86: #{tpu_custom_call.1} parent=79 // pred_check_branch
            %4964 = sbr.rel (%p4962) target = $region88
          $region87: #{tpu_custom_call.1} parent=79 // pred_region
            %v4965 = vld [vmem:[#allocation5] sm:$0xff]
            %v4966 = vld [vmem:[#allocation5 + $0x8] sm:$0xff]
            %v4967 = vld [vmem:[#allocation5 + $0x10] sm:$0xff]
            %v4968 = vld [vmem:[#allocation5 + $0x18] sm:$0xff]
            %v4969 = vld [vmem:[#allocation5 + $0x20] sm:$0xff]
            %v4970 = vld [vmem:[#allocation5 + $0x28] sm:$0xff]
            %v4971 = vld [vmem:[#allocation5 + $0x30] sm:$0xff]
            %v4972 = vld [vmem:[#allocation5 + $0x38] sm:$0xff]
            %v4973 = vld [vmem:[#allocation5 + $0x40] sm:$0xff]
            %v4974 = vld [vmem:[#allocation5 + $0x48] sm:$0xff]
            %v4975 = vld [vmem:[#allocation5 + $0x50] sm:$0xff]
            %v4976 = vld [vmem:[#allocation5 + $0x58] sm:$0xff]
            %v4977 = vld [vmem:[#allocation5 + $0x60] sm:$0xff]
            %v4978 = vld [vmem:[#allocation5 + $0x68] sm:$0xff]
            %v4979 = vld [vmem:[#allocation5 + $0x70] sm:$0xff]
            %v4980 = vld [vmem:[#allocation5 + $0x78] sm:$0xff]
            %v4981 = vld [vmem:[#allocation5 + $0x80] sm:$0xff]
            %v4982 = vld [vmem:[#allocation5 + $0x88] sm:$0xff]
            %v4983 = vld [vmem:[#allocation5 + $0x90] sm:$0xff]
            %v4984 = vld [vmem:[#allocation5 + $0x98] sm:$0xff]
            %v4985 = vld [vmem:[#allocation5 + $0xa0] sm:$0xff]
            %v4986 = vld [vmem:[#allocation5 + $0xa8] sm:$0xff]
            %v4987 = vld [vmem:[#allocation5 + $0xb0] sm:$0xff]
            %v4988 = vld [vmem:[#allocation5 + $0xb8] sm:$0xff]
            %v4989 = vld [vmem:[#allocation5 + $0xc0] sm:$0xff]
            %v4990 = vld [vmem:[#allocation5 + $0xc8] sm:$0xff]
            %v4991 = vld [vmem:[#allocation5 + $0xd0] sm:$0xff]
            %v4992 = vld [vmem:[#allocation5 + $0xd8] sm:$0xff]
            %v4993 = vld [vmem:[#allocation5 + $0xe0] sm:$0xff]
            %v4994 = vld [vmem:[#allocation5 + $0xe8] sm:$0xff]
            %v4995 = vld [vmem:[#allocation5 + $0xf0] sm:$0xff]
            %v4996 = vld [vmem:[#allocation5 + $0xf8] sm:$0xff]
            %v4997 = vld [vmem:[#allocation5 + $0x100] sm:$0xff]
            %v4998 = vld [vmem:[#allocation5 + $0x108] sm:$0xff]
            %v4999 = vld [vmem:[#allocation5 + $0x110] sm:$0xff]
            %v5000 = vld [vmem:[#allocation5 + $0x118] sm:$0xff]
            %v5001 = vld [vmem:[#allocation5 + $0x120] sm:$0xff]
            %v5002 = vld [vmem:[#allocation5 + $0x128] sm:$0xff]
            %v5003 = vld [vmem:[#allocation5 + $0x130] sm:$0xff]
            %v5004 = vld [vmem:[#allocation5 + $0x138] sm:$0xff]
            %v5005 = vld [vmem:[#allocation5 + $0x140] sm:$0xff]
            %v5006 = vld [vmem:[#allocation5 + $0x148] sm:$0xff]
            %v5007 = vld [vmem:[#allocation5 + $0x150] sm:$0xff]
            %v5008 = vld [vmem:[#allocation5 + $0x158] sm:$0xff]
            %v5009 = vld [vmem:[#allocation5 + $0x160] sm:$0xff]
            %v5010 = vld [vmem:[#allocation5 + $0x168] sm:$0xff]
            %v5011 = vld [vmem:[#allocation5 + $0x170] sm:$0xff]
            %v5012 = vld [vmem:[#allocation5 + $0x178] sm:$0xff]
            %v5013 = vld [vmem:[#allocation5 + $0x180] sm:$0xff]
            %v5014 = vld [vmem:[#allocation5 + $0x188] sm:$0xff]
            %v5015 = vld [vmem:[#allocation5 + $0x190] sm:$0xff]
            %v5016 = vld [vmem:[#allocation5 + $0x198] sm:$0xff]
            %v5017 = vld [vmem:[#allocation5 + $0x1a0] sm:$0xff]
            %v5018 = vld [vmem:[#allocation5 + $0x1a8] sm:$0xff]
            %v5019 = vld [vmem:[#allocation5 + $0x1b0] sm:$0xff]
            %v5020 = vld [vmem:[#allocation5 + $0x1b8] sm:$0xff]
            %v5021 = vld [vmem:[#allocation5 + $0x1c0] sm:$0xff]
            %v5022 = vld [vmem:[#allocation5 + $0x1c8] sm:$0xff]
            %v5023 = vld [vmem:[#allocation5 + $0x1d0] sm:$0xff]
            %v5024 = vld [vmem:[#allocation5 + $0x1d8] sm:$0xff]
            %v5025 = vld [vmem:[#allocation5 + $0x1e0] sm:$0xff]
            %v5026 = vld [vmem:[#allocation5 + $0x1e8] sm:$0xff]
            %v5027 = vld [vmem:[#allocation5 + $0x1f0] sm:$0xff]
            %v5028 = vld [vmem:[#allocation5 + $0x1f8] sm:$0xff]
            %v5029 = vld [vmem:[%s5] sm:$0x1]
            %v5031 = vlaneseq
            %v5032 = vshrl.u32 %v5031, 7
            %v5033 = vsub.s32 0, %v5032
            %v5034 = vrot.slane %v5029, %v5033
            %v5036 = vadd.f32 %v4965, %v5034
            %v5037 = vadd.f32 %v4966, %v5034
            %v5038 = vadd.f32 %v4967, %v5034
            %v5039 = vadd.f32 %v4968, %v5034
            %v5040 = vadd.f32 %v4969, %v5034
            %v5041 = vadd.f32 %v4970, %v5034
            %v5042 = vadd.f32 %v4971, %v5034
            %v5043 = vadd.f32 %v4972, %v5034
            %v5044 = vadd.f32 %v4973, %v5034
            %v5045 = vadd.f32 %v4974, %v5034
            %v5046 = vadd.f32 %v4975, %v5034
            %v5047 = vadd.f32 %v4976, %v5034
            %v5048 = vadd.f32 %v4977, %v5034
            %v5049 = vadd.f32 %v4978, %v5034
            %v5050 = vadd.f32 %v4979, %v5034
            %v5051 = vadd.f32 %v4980, %v5034
            %v5052 = vadd.f32 %v4981, %v5034
            %v5053 = vadd.f32 %v4982, %v5034
            %v5054 = vadd.f32 %v4983, %v5034
            %v5055 = vadd.f32 %v4984, %v5034
            %v5056 = vadd.f32 %v4985, %v5034
            %v5057 = vadd.f32 %v4986, %v5034
            %v5058 = vadd.f32 %v4987, %v5034
            %v5059 = vadd.f32 %v4988, %v5034
            %v5060 = vadd.f32 %v4989, %v5034
            %v5061 = vadd.f32 %v4990, %v5034
            %v5062 = vadd.f32 %v4991, %v5034
            %v5063 = vadd.f32 %v4992, %v5034
            %v5064 = vadd.f32 %v4993, %v5034
            %v5065 = vadd.f32 %v4994, %v5034
            %v5066 = vadd.f32 %v4995, %v5034
            %v5067 = vadd.f32 %v4996, %v5034
            %v5068 = vadd.f32 %v4997, %v5034
            %v5069 = vadd.f32 %v4998, %v5034
            %v5070 = vadd.f32 %v4999, %v5034
            %v5071 = vadd.f32 %v5000, %v5034
            %v5072 = vadd.f32 %v5001, %v5034
            %v5073 = vadd.f32 %v5002, %v5034
            %v5074 = vadd.f32 %v5003, %v5034
            %v5075 = vadd.f32 %v5004, %v5034
            %v5076 = vadd.f32 %v5005, %v5034
            %v5077 = vadd.f32 %v5006, %v5034
            %v5078 = vadd.f32 %v5007, %v5034
            %v5079 = vadd.f32 %v5008, %v5034
            %v5080 = vadd.f32 %v5009, %v5034
            %v5081 = vadd.f32 %v5010, %v5034
            %v5082 = vadd.f32 %v5011, %v5034
            %v5083 = vadd.f32 %v5012, %v5034
            %v5084 = vadd.f32 %v5013, %v5034
            %v5085 = vadd.f32 %v5014, %v5034
            %v5086 = vadd.f32 %v5015, %v5034
            %v5087 = vadd.f32 %v5016, %v5034
            %v5088 = vadd.f32 %v5017, %v5034
            %v5089 = vadd.f32 %v5018, %v5034
            %v5090 = vadd.f32 %v5019, %v5034
            %v5091 = vadd.f32 %v5020, %v5034
            %v5092 = vadd.f32 %v5021, %v5034
            %v5093 = vadd.f32 %v5022, %v5034
            %v5094 = vadd.f32 %v5023, %v5034
            %v5095 = vadd.f32 %v5024, %v5034
            %v5096 = vadd.f32 %v5025, %v5034
            %v5097 = vadd.f32 %v5026, %v5034
            %v5098 = vadd.f32 %v5027, %v5034
            %v5099 = vadd.f32 %v5028, %v5034
            %5100 = vst [vmem:[%s322] sm:$0xff] %v5036
            %5101 = vst [vmem:[%s322 + $0x8] sm:$0xff] %v5037
            %5102 = vst [vmem:[%s322 + $0x10] sm:$0xff] %v5038
            %5103 = vst [vmem:[%s322 + $0x18] sm:$0xff] %v5039
            %5104 = vst [vmem:[%s322 + $0x20] sm:$0xff] %v5040
            %5105 = vst [vmem:[%s322 + $0x28] sm:$0xff] %v5041
            %5106 = vst [vmem:[%s322 + $0x30] sm:$0xff] %v5042
            %5107 = vst [vmem:[%s322 + $0x38] sm:$0xff] %v5043
            %5108 = vst [vmem:[%s322 + $0x40] sm:$0xff] %v5044
            %5109 = vst [vmem:[%s322 + $0x48] sm:$0xff] %v5045
            %5110 = vst [vmem:[%s322 + $0x50] sm:$0xff] %v5046
            %5111 = vst [vmem:[%s322 + $0x58] sm:$0xff] %v5047
            %5112 = vst [vmem:[%s322 + $0x60] sm:$0xff] %v5048
            %5113 = vst [vmem:[%s322 + $0x68] sm:$0xff] %v5049
            %5114 = vst [vmem:[%s322 + $0x70] sm:$0xff] %v5050
            %5115 = vst [vmem:[%s322 + $0x78] sm:$0xff] %v5051
            %5116 = vst [vmem:[%s322 + $0x80] sm:$0xff] %v5052
            %5117 = vst [vmem:[%s322 + $0x88] sm:$0xff] %v5053
            %5118 = vst [vmem:[%s322 + $0x90] sm:$0xff] %v5054
            %5119 = vst [vmem:[%s322 + $0x98] sm:$0xff] %v5055
            %5120 = vst [vmem:[%s322 + $0xa0] sm:$0xff] %v5056
            %5121 = vst [vmem:[%s322 + $0xa8] sm:$0xff] %v5057
            %5122 = vst [vmem:[%s322 + $0xb0] sm:$0xff] %v5058
            %5123 = vst [vmem:[%s322 + $0xb8] sm:$0xff] %v5059
            %5124 = vst [vmem:[%s322 + $0xc0] sm:$0xff] %v5060
            %5125 = vst [vmem:[%s322 + $0xc8] sm:$0xff] %v5061
            %5126 = vst [vmem:[%s322 + $0xd0] sm:$0xff] %v5062
            %5127 = vst [vmem:[%s322 + $0xd8] sm:$0xff] %v5063
            %5128 = vst [vmem:[%s322 + $0xe0] sm:$0xff] %v5064
            %5129 = vst [vmem:[%s322 + $0xe8] sm:$0xff] %v5065
            %5130 = vst [vmem:[%s322 + $0xf0] sm:$0xff] %v5066
            %5131 = vst [vmem:[%s322 + $0xf8] sm:$0xff] %v5067
            %5132 = vst [vmem:[%s322 + $0x100] sm:$0xff] %v5068
            %5133 = vst [vmem:[%s322 + $0x108] sm:$0xff] %v5069
            %5134 = vst [vmem:[%s322 + $0x110] sm:$0xff] %v5070
            %5135 = vst [vmem:[%s322 + $0x118] sm:$0xff] %v5071
            %5136 = vst [vmem:[%s322 + $0x120] sm:$0xff] %v5072
            %5137 = vst [vmem:[%s322 + $0x128] sm:$0xff] %v5073
            %5138 = vst [vmem:[%s322 + $0x130] sm:$0xff] %v5074
            %5139 = vst [vmem:[%s322 + $0x138] sm:$0xff] %v5075
            %5140 = vst [vmem:[%s322 + $0x140] sm:$0xff] %v5076
            %5141 = vst [vmem:[%s322 + $0x148] sm:$0xff] %v5077
            %5142 = vst [vmem:[%s322 + $0x150] sm:$0xff] %v5078
            %5143 = vst [vmem:[%s322 + $0x158] sm:$0xff] %v5079
            %5144 = vst [vmem:[%s322 + $0x160] sm:$0xff] %v5080
            %5145 = vst [vmem:[%s322 + $0x168] sm:$0xff] %v5081
            %5146 = vst [vmem:[%s322 + $0x170] sm:$0xff] %v5082
            %5147 = vst [vmem:[%s322 + $0x178] sm:$0xff] %v5083
            %5148 = vst [vmem:[%s322 + $0x180] sm:$0xff] %v5084
            %5149 = vst [vmem:[%s322 + $0x188] sm:$0xff] %v5085
            %5150 = vst [vmem:[%s322 + $0x190] sm:$0xff] %v5086
            %5151 = vst [vmem:[%s322 + $0x198] sm:$0xff] %v5087
            %5152 = vst [vmem:[%s322 + $0x1a0] sm:$0xff] %v5088
            %5153 = vst [vmem:[%s322 + $0x1a8] sm:$0xff] %v5089
            %5154 = vst [vmem:[%s322 + $0x1b0] sm:$0xff] %v5090
            %5155 = vst [vmem:[%s322 + $0x1b8] sm:$0xff] %v5091
            %5156 = vst [vmem:[%s322 + $0x1c0] sm:$0xff] %v5092
            %5157 = vst [vmem:[%s322 + $0x1c8] sm:$0xff] %v5093
            %5158 = vst [vmem:[%s322 + $0x1d0] sm:$0xff] %v5094
            %5159 = vst [vmem:[%s322 + $0x1d8] sm:$0xff] %v5095
            %5160 = vst [vmem:[%s322 + $0x1e0] sm:$0xff] %v5096
            %5161 = vst [vmem:[%s322 + $0x1e8] sm:$0xff] %v5097
            %5162 = vst [vmem:[%s322 + $0x1f0] sm:$0xff] %v5098
            %5163 = vst [vmem:[%s322 + $0x1f8] sm:$0xff] %v5099
          $region88: #{tpu_custom_call.1} parent=79 // pred_fallthru
            _
        $region80: #{tpu_custom_call.1} parent=43 // pred_fallthru
          _
        %s5164 = sand.u32 %s185, 1
        %s5165 = scalar_lea.sflag [#allocation8], %s5164
        %s5166 = sand.u32 %s185, 1
        %s5167 = smul.addr %s5166, 512
        %s5168 = scalar_lea.vmem [#allocation14], %s5167
        // Predicated region
        $region89: #{tpu_custom_call.1} parent=43 // pred_check
          %p5169 = pneg %p195
        $region90: #{tpu_custom_call.1} parent=43 // pred_check_branch
          %5171 = sbr.rel (%p5169) target = $region92
        $region91: #{tpu_custom_call.1} parent=43 // pred_region
          %s5172 = smul.u32 %s28, %s29
          %s5173 = smul.u32 64, %s5172
          %s5175 = ssub.s32 8192, 8192
          %5176 = vsyncadd %s5165, %s5175
          %s5177 = smul.addr %s5173, 128
          %s5178 = scalar_lea.hbm %s6, %s5177
          %s5179 = sshll.u32 %s5168, 4
          %s5180 = int_to_ptr.vmem [resolvable:$true] %s5179
          %5185 = dma.vmem_to_hbm [thread:$0]  %s5180, 8192, %s5178, %s5165, 128, 128, 8
        $region92: #{tpu_custom_call.1} parent=43 // pred_fallthru
          _
      $region44: #{tpu_custom_call.1} parent=5 // pred_fallthru
        _
      %p5186 = scmp.le.s32.totalorder 2, %s18
      // Predicated region
      $region93: #{tpu_custom_call.1} parent=5 // pred_check
        %p5187 = pneg %p5186
      $region94: #{tpu_custom_call.1} parent=5 // pred_check_branch
        %5189 = sbr.rel (%p5187) target = $region96
      $region95: #{tpu_custom_call.1} parent=5 // pred_region
        %s5190 = ssub.s32 %s18, 2
        // Predicated region
        $region97: #{tpu_custom_call.1} parent=95 // pred_check
          %p5191 = pneg %p201
        $region98: #{tpu_custom_call.1} parent=95 // pred_check_branch
          %5193 = sbr.rel (%p5191) target = $region100
        $region99: #{tpu_custom_call.1} parent=95 // pred_region
          %s5194 = sand.u32 %s186, 1
          %s5195 = scalar_lea.sflag [#allocation8], %s5194
          %s5196 = sand.u32 %s186, 1
          %s5197 = smul.addr %s5196, 512
          %s5198 = scalar_lea.vmem [#allocation14], %s5197
          %5199 = dma.done %s5195, 8192
        $region100: #{tpu_custom_call.1} parent=95 // pred_fallthru
          _
      $region96: #{tpu_custom_call.1} parent=5 // pred_fallthru
        _
    $region6: #{tpu_custom_call.1} parent=1 // loop_footer
      %s22 = sadd.s32 1, %s18
    $region7: #{tpu_custom_call.1} parent=1 // loop_footer_branch
      %17 = sbr.rel target = $region3
    $region8: #{tpu_custom_call.1} parent=1 // loop_exit
      _
    %5200 = vsyncpa [#allocation7], 1
    %s5201 = scalar_lea.sflag [#allocation7], 1
    %5202 = vsyncpa %s5201, 1
    %5203 = vsyncpa [#allocation10], 1
    %5204 = vsyncpa [#allocation13], 1
    %5205 = vsyncpa [#allocation8], 1
    %s5206 = scalar_lea.sflag [#allocation8], 1
    %5207 = vsyncpa %s5206, 1

</llo_original>
